<compile_context>
chip_gen: v5e
topology: v5e:2x2
jax: 0.10.0
libtpu: 0.0.40
codegen_flags: <defaults>
</compile_context>

<pallas_src>
import functools

import jax
import jax.numpy as jnp
from jax.experimental import pallas as pl
from jax.experimental.pallas import tpu as pltpu


def _round_up(x, m):
    return (x + m - 1) // m * m


def _cdiv(a, b):
    return -(-a // b)


# ----------------------------------------------------------------------------
# Kernel 1: tiled matmul + bias (+ relu) for the conv layers (im2col form).
# ----------------------------------------------------------------------------
def _linear_kernel(x_ref, w_ref, b_ref, o_ref, *, apply_relu):
    acc = jnp.dot(x_ref[...], w_ref[...], preferred_element_type=jnp.float32)
    acc = acc + b_ref[...]
    if apply_relu:
        acc = jnp.maximum(acc, 0.0)
    o_ref[...] = acc.astype(o_ref.dtype)


def pallas_linear(x, w, b, *, relu, tm_cap=512, out_dtype=jnp.bfloat16):
    """relu?(x @ w + b). w: (K, N) bf16; b: (1, N) f32. Real (unpadded) K and N."""
    M, K = x.shape
    Kw, N = w.shape
    assert K == Kw, (K, Kw)
    x = x.astype(jnp.bfloat16)

    # Batch-robust row tiling: fixed-ish tile, blocks = cdiv(M, tile).
    m_blocks = _cdiv(M, tm_cap)
    tm = _round_up(_cdiv(M, m_blocks), 16)       # bf16-friendly sublane multiple
    Mp = tm * m_blocks
    if Mp > M:
        x = jnp.pad(x, ((0, Mp - M), (0, 0)))

    out = pl.pallas_call(
        functools.partial(_linear_kernel, apply_relu=relu),
        out_shape=jax.ShapeDtypeStruct((Mp, N), out_dtype),
        grid=(m_blocks,),
        in_specs=[
            pl.BlockSpec((tm, K), lambda i: (i, 0)),
            # Weight/bias blocks never change -> single VMEM buffer each.
            pl.BlockSpec((K, N), lambda i: (0, 0), pipeline_mode=pl.Buffered(1)),
            pl.BlockSpec((1, N), lambda i: (0, 0), pipeline_mode=pl.Buffered(1)),
        ],
        out_specs=pl.BlockSpec((tm, N), lambda i: (i, 0)),
        compiler_params=pltpu.CompilerParams(
            dimension_semantics=("parallel",),
            # Footprint here is < 2 MiB; 32 MiB is safe on v5e/v6e/v7x (64 MiB).
            vmem_limit_bytes=32 * 1024 * 1024),
    )(x, w, b)
    return out[:M]


# ----------------------------------------------------------------------------
# Kernel 2: fused conv3 + fc + fc_2.
#   * conv3 (as an im2col matmul) runs on grid step 0 and parks its output
#     (49 spatial positions x padded-batch rows, 64 channels) in VMEM scratch.
#   * The fc weight is laid out as (49, 64, 512) and blocked over the grid
#     (7 positions / step), so its 3.2 MB bf16 DMA overlaps the accumulation.
#   * The last step applies the fc bias+relu and the fc_2 matmul; the hidden
#     (BP, 512) activation never leaves VMEM.
# ----------------------------------------------------------------------------
_N_POS = 49          # 7x7 conv3 output positions
_POS_PER_STEP = 7    # fc-weight K blocking: 7 grid steps


def _conv3_fc_kernel(p3_ref, w3_ref, b3_ref, wfc_ref, bfc_ref, w2_ref, b2_ref,
                     o_ref, h3_ref, acc_ref, *, bp, gp):
    k = pl.program_id(0)

    @pl.when(k == 0)
    def _():
        # conv3: (49*bp, 576) @ (576, 64) + b, relu -> VMEM scratch.
        h3 = jnp.dot(p3_ref[...], w3_ref[...],
                     preferred_element_type=jnp.float32)
        h3 = jnp.maximum(h3 + b3_ref[...], 0.0)
        h3_ref[...] = h3.astype(jnp.bfloat16)
        acc_ref[...] = jnp.zeros_like(acc_ref)

    # fc: accumulate this step's block of spatial positions.
    acc = acc_ref[...]
    for g in range(gp):
        start = pl.multiple_of((k * gp + g) * bp, 8)
        rows = h3_ref[pl.ds(start, bp), :]                       # (bp, 64) bf16
        acc += jnp.dot(rows, wfc_ref[g],
                       preferred_element_type=jnp.float32)       # (bp, 512)
    acc_ref[...] = acc

    @pl.when(k == pl.num_programs(0) - 1)
    def _():
        h = jnp.maximum(acc_ref[...] + bfc_ref[...], 0.0).astype(jnp.bfloat16)
        o_ref[...] = (jnp.dot(h, w2_ref[...],
                              preferred_element_type=jnp.float32)
                      + b2_ref[...])


def pallas_conv3_fc_fused(p3, w3, b3, wfc, bfc, w2, b2, *, bp):
    """p3: (49*bp, 576) conv3 im2col patches in (position, padded-batch) row order."""
    n2 = w2.shape[1]
    gp = _POS_PER_STEP
    out = pl.pallas_call(
        functools.partial(_conv3_fc_kernel, bp=bp, gp=gp),
        out_shape=jax.ShapeDtypeStruct((bp, n2), jnp.float32),
        grid=(_N_POS // gp,),
        in_specs=[
            pl.BlockSpec((_N_POS * bp, 576), lambda k: (0, 0),
                         pipeline_mode=pl.Buffered(1)),
            pl.BlockSpec((576, 64), lambda k: (0, 0),
                         pipeline_mode=pl.Buffered(1)),
            pl.BlockSpec((1, 64), lambda k: (0, 0),
                         pipeline_mode=pl.Buffered(1)),
            # fc weight blocks advance with the grid -> double-buffered/pipelined.
            pl.BlockSpec((gp, 64, 512), lambda k: (k, 0, 0)),
            pl.BlockSpec((1, 512), lambda k: (0, 0),
                         pipeline_mode=pl.Buffered(1)),
            pl.BlockSpec((512, n2), lambda k: (0, 0),
                         pipeline_mode=pl.Buffered(1)),
            pl.BlockSpec((1, n2), lambda k: (0, 0),
                         pipeline_mode=pl.Buffered(1)),
        ],
        out_specs=pl.BlockSpec((bp, n2), lambda k: (0, 0)),
        scratch_shapes=[
            pltpu.VMEM((_N_POS * bp, 64), jnp.bfloat16),   # conv3 output
            pltpu.VMEM((bp, 512), jnp.float32),            # fc accumulator
        ],
        compiler_params=pltpu.CompilerParams(
            dimension_semantics=("arbitrary",),            # fc reduction axis
            vmem_limit_bytes=32 * 1024 * 1024),
    )(p3, w3, b3, wfc, bfc, w2, b2)
    return out


# ----------------------------------------------------------------------------
# XLA-side im2col (lane-contiguous channel concat, NHWC).
# ----------------------------------------------------------------------------
def _im2col(x, kh, kw, stride):
    B, H, W, C = x.shape
    OH = (H - kh) // stride + 1
    OW = (W - kw) // stride + 1
    cols = [x[:, i:i + stride * OH:stride, j:j + stride * OW:stride, :]
            for i in range(kh) for j in range(kw)]
    return jnp.concatenate(cols, axis=-1)        # (B, OH, OW, kh*kw*C)


# ----------------------------------------------------------------------------
# Parameter init (deterministic, PyTorch-style uniform fan-in bounds).
# ----------------------------------------------------------------------------
def init_params(key, input_channel_size, output_size):
    ks = jax.random.split(key, 10)

    def u(k, shape, fan_in):
        bound = 1.0 / jnp.sqrt(float(fan_in))
        return jax.random.uniform(k, shape, jnp.float32, -bound, bound)

    return dict(
        conv1_w=u(ks[0], (32, input_channel_size, 8, 8), input_channel_size * 64),
        conv1_b=u(ks[1], (32,), input_channel_size * 64),
        conv2_w=u(ks[2], (64, 32, 4, 4), 32 * 16),
        conv2_b=u(ks[3], (64,), 32 * 16),
        conv3_w=u(ks[4], (64, 64, 3, 3), 64 * 9),
        conv3_b=u(ks[5], (64,), 64 * 9),
        fc_w=u(ks[6], (512, 3136), 3136),
        fc_b=u(ks[7], (512,), 3136),
        fc2_w=u(ks[8], (output_size, 512), 512),
        fc2_b=u(ks[9], (512,), 512) if False else u(ks[9], (output_size,), 512),
    )


# ----------------------------------------------------------------------------
# One-time weight preparation (hoisted out of the forward path). No channel
# padding anywhere: conv weights at real K, fc weight as (49, 64, 512).
# ----------------------------------------------------------------------------
def prepare_params(params, output_size):
    def prep_conv(w, b):
        O, C, kh, kw = w.shape
        # feature order (kh, kw, cin) matches the NHWC im2col concatenation
        wq = w.astype(jnp.float32).transpose(2, 3, 1, 0).reshape(kh * kw * C, O)
        return wq.astype(jnp.bfloat16), b.astype(jnp.float32).reshape(1, O)

    c1_w, c1_b = prep_conv(params["conv1_w"], params["conv1_b"])   # (256, 32)
    c2_w, c2_b = prep_conv(params["conv2_w"], params["conv2_b"])   # (512, 64)
    c3_w, c3_b = prep_conv(params["conv3_w"], params["conv3_b"])   # (576, 64)

    # fc: torch flattens conv3's (B,64,7,7) as (c,h,w), i.e. col = c*49 + p with
    # p = h*7 + w. The fused kernel contracts per spatial position p with a
    # (bp,64)@(64,512) matmul, so lay the weight out as (p, c, n).
    fcw = params["fc_w"].astype(jnp.float32)                 # (512, 3136)
    fc_w = fcw.reshape(512, 64, _N_POS).transpose(2, 1, 0).astype(jnp.bfloat16)
    fc_b = params["fc_b"].astype(jnp.float32).reshape(1, 512)

    n2 = _round_up(output_size, 128)
    fc2_w = jnp.zeros((512, n2), jnp.bfloat16).at[:, :output_size].set(
        params["fc2_w"].T.astype(jnp.bfloat16))
    fc2_b = jnp.zeros((1, n2), jnp.float32).at[0, :output_size].set(
        params["fc2_b"].astype(jnp.float32))

    return dict(c1_w=c1_w, c1_b=c1_b, c2_w=c2_w, c2_b=c2_b,
                c3_w=c3_w, c3_b=c3_b, fc_w=fc_w, fc_b=fc_b,
                fc2_w=fc2_w, fc2_b=fc2_b)


# ----------------------------------------------------------------------------
# Net.forward (semantics of the PyTorch module; expects prepared params).
# ----------------------------------------------------------------------------
def net_forward(prep, x, *, output_size):
    B = x.shape[0]
    # NCHW f32 -> NHWC bf16 once; conv activations stay NHWC at real channels.
    x = x.transpose(0, 2, 3, 1).astype(jnp.bfloat16)

    # conv1: 8x8 stride 4 -> (B, 20, 20, 32)
    p1 = _im2col(x, 8, 8, 4).reshape(B * 400, 8 * 8 * x.shape[-1])
    h1 = pallas_linear(p1, prep["c1_w"], prep["c1_b"], relu=True)
    h1 = h1.reshape(B, 20, 20, 32)

    # conv2: 4x4 stride 2 -> (B, 9, 9, 64)
    p2 = _im2col(h1, 4, 4, 2).reshape(B * 81, 512)
    h2 = pallas_linear(p2, prep["c2_w"], prep["c2_b"], relu=True)
    h2 = h2.reshape(B, 9, 9, 64)

    # conv3 + fc + fc_2 fused. Patch rows are ordered (position, padded batch)
    # so the fc can read an aligned (bp, 64) block per spatial position.
    bp = _round_up(B, 8)
    p3 = _im2col(h2, 3, 3, 1).reshape(B, _N_POS, 576).transpose(1, 0, 2)
    p3 = jnp.pad(p3, ((0, 0), (0, bp - B), (0, 0))).reshape(_N_POS * bp, 576)
    out = pallas_conv3_fc_fused(p3, prep["c3_w"], prep["c3_b"],
                                prep["fc_w"], prep["fc_b"],
                                prep["fc2_w"], prep["fc2_b"], bp=bp)
    return out[:B, :output_size]


# Pure-JAX f32 reference for verification (uses the raw PyTorch-layout params).
def reference_forward(params, x):
    def conv(x, w, b, s):
        y = jax.lax.conv_general_dilated(
            x, w, (s, s), "VALID",
            dimension_numbers=("NCHW", "OIHW", "NCHW"))
        return y + b[None, :, None, None]

    x = jax.nn.relu(conv(x, params["conv1_w"], params["conv1_b"], 4))
    x = jax.nn.relu(conv(x, params["conv2_w"], params["conv2_b"], 2))
    x = jax.nn.relu(conv(x, params["conv3_w"], params["conv3_b"], 1))
    x = x.reshape(x.shape[0], -1)
    x = jax.nn.relu(x @ params["fc_w"].T + params["fc_b"])
    return x @ params["fc2_w"].T + params["fc2_b"]


if __name__ == "__main__":
    key = jax.random.PRNGKey(0)
    k_param, k_x = jax.random.split(key)

    input_channel_size = 4
    output_size = 6
    batch = 2

    params = init_params(k_param, input_channel_size, output_size)
    prep = prepare_params(params, output_size)          # one-time weight prep
    x = jax.random.normal(k_x, (batch, input_channel_size, 84, 84), jnp.float32)

    fwd = jax.jit(functools.partial(net_forward, output_size=output_size))
    out = jax.block_until_ready(fwd(prep, x))
    assert out.shape == (batch, output_size), out.shape

    ref = jax.block_until_ready(reference_forward(params, x))
    # bf16 MXU operands with f32 accumulation: observed error is a few 1e-3.
    assert jnp.allclose(out, ref, rtol=1e-2, atol=1e-2), (
        float(jnp.max(jnp.abs(out - ref))))

    print("KERNEL_OK")
</pallas_src>

<mosaic_0001>
module attributes {stable_mosaic.version = 11 : i64} {
  func.func @_linear_kernel(%arg0: i32, %arg1: memref<400x256xbf16, #tpu.memory_space<vmem>>, %arg2: memref<256x32xbf16, #tpu.memory_space<vmem>>, %arg3: memref<1x32xf32, #tpu.memory_space<vmem>>, %arg4: memref<400x32xbf16, #tpu.memory_space<vmem>>) attributes {dimension_semantics = [#tpu.dimension_semantics<parallel>], iteration_bounds = array<i64: 2>, scalar_prefetch = 0 : i64, scratch_operands = 0 : i64, tpu.core_type = #tpu.core_type<tc>, window_params = [{transform_indices = @transform_0, window_bounds = array<i64: 400, 256>}, {pipeline_mode = #tpu.pipeline_mode<synchronous>, transform_indices = @transform_1, window_bounds = array<i64: 256, 32>}, {pipeline_mode = #tpu.pipeline_mode<synchronous>, transform_indices = @transform_2, window_bounds = array<i64: 1, 32>}, {transform_indices = @transform_3, window_bounds = array<i64: 400, 32>}]} {
    %c0 = arith.constant 0 : index
    %c0_0 = arith.constant 0 : index
    %0 = vector.load %arg1[%c0, %c0_0] : memref<400x256xbf16, #tpu.memory_space<vmem>>, vector<400x256xbf16>
    %c0_1 = arith.constant 0 : index
    %c0_2 = arith.constant 0 : index
    %1 = vector.load %arg2[%c0_1, %c0_2] : memref<256x32xbf16, #tpu.memory_space<vmem>>, vector<256x32xbf16>
    %cst = arith.constant dense<0.000000e+00> : vector<400x32xf32>
    %2 = tpu.matmul %0, %1, %cst {dimension_numbers = #tpu.dot_dimension_numbers<[1], [0], [0], [1], [0, 0, 1, 1], [], []>} : vector<400x256xbf16>, vector<256x32xbf16>, vector<400x32xf32> -> vector<400x32xf32>
    %c0_3 = arith.constant 0 : index
    %c0_4 = arith.constant 0 : index
    %3 = vector.load %arg3[%c0_3, %c0_4] : memref<1x32xf32, #tpu.memory_space<vmem>>, vector<1x32xf32>
    %4 = vector.broadcast %3 : vector<1x32xf32> to vector<400x32xf32>
    %5 = arith.addf %2, %4 : vector<400x32xf32>
    %cst_5 = arith.constant 0.000000e+00 : f32
    %6 = vector.broadcast %cst_5 : f32 to vector<400x32xf32>
    %7 = arith.maximumf %5, %6 : vector<400x32xf32>
    %8 = arith.truncf %7 : vector<400x32xf32> to vector<400x32xbf16>
    %c0_6 = arith.constant 0 : index
    %c0_7 = arith.constant 0 : index
    %9 = vector.load %arg4[%c0_6, %c0_7] : memref<400x32xbf16, #tpu.memory_space<vmem>>, vector<400x32xbf16>
    tpu.vector_store %arg4[%c0_6, %c0_7], %8 {strides = array<i32>} : memref<400x32xbf16, #tpu.memory_space<vmem>>, vector<400x32xbf16>,
    return
  }
  func.func @transform_0(%arg0: i32) -> (i32, i32) {
    %c0_i32 = arith.constant 0 : i32
    %c0_i32_0 = arith.constant 0 : i32
    return %arg0, %c0_i32 : i32, i32
  }
  func.func @transform_1(%arg0: i32) -> (i32, i32) {
    %c0_i32 = arith.constant 0 : i32
    %c0_i32_0 = arith.constant 0 : i32
    %c0_i32_1 = arith.constant 0 : i32
    return %c0_i32, %c0_i32_0 : i32, i32
  }
  func.func @transform_2(%arg0: i32) -> (i32, i32) {
    %c0_i32 = arith.constant 0 : i32
    %c0_i32_0 = arith.constant 0 : i32
    %c0_i32_1 = arith.constant 0 : i32
    return %c0_i32, %c0_i32_0 : i32, i32
  }
  func.func @transform_3(%arg0: i32) -> (i32, i32) {
    %c0_i32 = arith.constant 0 : i32
    %c0_i32_0 = arith.constant 0 : i32
    return %arg0, %c0_i32 : i32, i32
  }
}

module attributes {stable_mosaic.version = 11 : i64} {
  func.func @_linear_kernel(%arg0: i32, %arg1: memref<176x512xbf16, #tpu.memory_space<vmem>>, %arg2: memref<512x64xbf16, #tpu.memory_space<vmem>>, %arg3: memref<1x64xf32, #tpu.memory_space<vmem>>, %arg4: memref<176x64xbf16, #tpu.memory_space<vmem>>) attributes {dimension_semantics = [#tpu.dimension_semantics<parallel>], iteration_bounds = array<i64: 1>, scalar_prefetch = 0 : i64, scratch_operands = 0 : i64, tpu.core_type = #tpu.core_type<tc>, window_params = [{transform_indices = @transform_0, window_bounds = array<i64: 176, 512>}, {pipeline_mode = #tpu.pipeline_mode<synchronous>, transform_indices = @transform_1, window_bounds = array<i64: 512, 64>}, {pipeline_mode = #tpu.pipeline_mode<synchronous>, transform_indices = @transform_2, window_bounds = array<i64: 1, 64>}, {transform_indices = @transform_3, window_bounds = array<i64: 176, 64>}]} {
    %c0 = arith.constant 0 : index
    %c0_0 = arith.constant 0 : index
    %0 = vector.load %arg1[%c0, %c0_0] : memref<176x512xbf16, #tpu.memory_space<vmem>>, vector<176x512xbf16>
    %c0_1 = arith.constant 0 : index
    %c0_2 = arith.constant 0 : index
    %1 = vector.load %arg2[%c0_1, %c0_2] : memref<512x64xbf16, #tpu.memory_space<vmem>>, vector<512x64xbf16>
    %cst = arith.constant dense<0.000000e+00> : vector<176x64xf32>
    %2 = tpu.matmul %0, %1, %cst {dimension_numbers = #tpu.dot_dimension_numbers<[1], [0], [0], [1], [0, 0, 1, 1], [], []>} : vector<176x512xbf16>, vector<512x64xbf16>, vector<176x64xf32> -> vector<176x64xf32>
    %c0_3 = arith.constant 0 : index
    %c0_4 = arith.constant 0 : index
    %3 = vector.load %arg3[%c0_3, %c0_4] : memref<1x64xf32, #tpu.memory_space<vmem>>, vector<1x64xf32>
    %4 = vector.broadcast %3 : vector<1x64xf32> to vector<176x64xf32>
    %5 = arith.addf %2, %4 : vector<176x64xf32>
    %cst_5 = arith.constant 0.000000e+00 : f32
    %6 = vector.broadcast %cst_5 : f32 to vector<176x64xf32>
    %7 = arith.maximumf %5, %6 : vector<176x64xf32>
    %8 = arith.truncf %7 : vector<176x64xf32> to vector<176x64xbf16>
    %c0_6 = arith.constant 0 : index
    %c0_7 = arith.constant 0 : index
    %9 = vector.load %arg4[%c0_6, %c0_7] : memref<176x64xbf16, #tpu.memory_space<vmem>>, vector<176x64xbf16>
    tpu.vector_store %arg4[%c0_6, %c0_7], %8 {strides = array<i32>} : memref<176x64xbf16, #tpu.memory_space<vmem>>, vector<176x64xbf16>,
    return
  }
  func.func @transform_0(%arg0: i32) -> (i32, i32) {
    %c0_i32 = arith.constant 0 : i32
    %c0_i32_0 = arith.constant 0 : i32
    return %arg0, %c0_i32 : i32, i32
  }
  func.func @transform_1(%arg0: i32) -> (i32, i32) {
    %c0_i32 = arith.constant 0 : i32
    %c0_i32_0 = arith.constant 0 : i32
    %c0_i32_1 = arith.constant 0 : i32
    return %c0_i32, %c0_i32_0 : i32, i32
  }
  func.func @transform_2(%arg0: i32) -> (i32, i32) {
    %c0_i32 = arith.constant 0 : i32
    %c0_i32_0 = arith.constant 0 : i32
    %c0_i32_1 = arith.constant 0 : i32
    return %c0_i32, %c0_i32_0 : i32, i32
  }
  func.func @transform_3(%arg0: i32) -> (i32, i32) {
    %c0_i32 = arith.constant 0 : i32
    %c0_i32_0 = arith.constant 0 : i32
    return %arg0, %c0_i32 : i32, i32
  }
}

module attributes {stable_mosaic.version = 11 : i64} {
  func.func @_conv3_fc_kernel(%arg0: i32, %arg1: memref<392x576xbf16, #tpu.memory_space<vmem>>, %arg2: memref<576x64xbf16, #tpu.memory_space<vmem>>, %arg3: memref<1x64xf32, #tpu.memory_space<vmem>>, %arg4: memref<7x64x512xbf16, #tpu.memory_space<vmem>>, %arg5: memref<1x512xf32, #tpu.memory_space<vmem>>, %arg6: memref<512x128xbf16, #tpu.memory_space<vmem>>, %arg7: memref<1x128xf32, #tpu.memory_space<vmem>>, %arg8: memref<8x128xf32, #tpu.memory_space<vmem>>, %arg9: memref<392x64xbf16, #tpu.memory_space<vmem>>, %arg10: memref<8x512xf32, #tpu.memory_space<vmem>>) attributes {dimension_semantics = [#tpu.dimension_semantics<arbitrary>], iteration_bounds = array<i64: 7>, scalar_prefetch = 0 : i64, scratch_operands = 2 : i64, tpu.core_type = #tpu.core_type<tc>, window_params = [{pipeline_mode = #tpu.pipeline_mode<synchronous>, transform_indices = @transform_0, window_bounds = array<i64: 392, 576>}, {pipeline_mode = #tpu.pipeline_mode<synchronous>, transform_indices = @transform_1, window_bounds = array<i64: 576, 64>}, {pipeline_mode = #tpu.pipeline_mode<synchronous>, transform_indices = @transform_2, window_bounds = array<i64: 1, 64>}, {transform_indices = @transform_3, window_bounds = array<i64: 7, 64, 512>}, {pipeline_mode = #tpu.pipeline_mode<synchronous>, transform_indices = @transform_4, window_bounds = array<i64: 1, 512>}, {pipeline_mode = #tpu.pipeline_mode<synchronous>, transform_indices = @transform_5, window_bounds = array<i64: 512, 128>}, {pipeline_mode = #tpu.pipeline_mode<synchronous>, transform_indices = @transform_6, window_bounds = array<i64: 1, 128>}, {pipeline_mode = #tpu.pipeline_mode<synchronous>, transform_indices = @transform_7, window_bounds = array<i64: 8, 128>}]} {
    %c0_i32 = arith.constant 0 : i32
    %0 = arith.cmpi eq, %arg0, %c0_i32 : i32
    %1 = arith.extui %0 : i1 to i32
    %c0_i32_0 = arith.constant 0 : i32
    %2 = arith.cmpi ne, %1, %c0_i32_0 : i32
    scf.if %2 {
      %c0_47 = arith.constant 0 : index
      %c0_48 = arith.constant 0 : index
      %78 = vector.load %arg1[%c0_47, %c0_48] : memref<392x576xbf16, #tpu.memory_space<vmem>>, vector<392x576xbf16>
      %c0_49 = arith.constant 0 : index
      %c0_50 = arith.constant 0 : index
      %79 = vector.load %arg2[%c0_49, %c0_50] : memref<576x64xbf16, #tpu.memory_space<vmem>>, vector<576x64xbf16>
      %cst_51 = arith.constant dense<0.000000e+00> : vector<392x64xf32>
      %80 = tpu.matmul %78, %79, %cst_51 {dimension_numbers = #tpu.dot_dimension_numbers<[1], [0], [0], [1], [0, 0, 1, 1], [], []>} : vector<392x576xbf16>, vector<576x64xbf16>, vector<392x64xf32> -> vector<392x64xf32>
      %c0_52 = arith.constant 0 : index
      %c0_53 = arith.constant 0 : index
      %81 = vector.load %arg3[%c0_52, %c0_53] : memref<1x64xf32, #tpu.memory_space<vmem>>, vector<1x64xf32>
      %82 = vector.broadcast %81 : vector<1x64xf32> to vector<392x64xf32>
      %83 = arith.addf %80, %82 : vector<392x64xf32>
      %cst_54 = arith.constant 0.000000e+00 : f32
      %84 = vector.broadcast %cst_54 : f32 to vector<392x64xf32>
      %85 = arith.maximumf %83, %84 : vector<392x64xf32>
      %86 = arith.truncf %85 : vector<392x64xf32> to vector<392x64xbf16>
      %c0_55 = arith.constant 0 : index
      %c0_56 = arith.constant 0 : index
      %87 = vector.load %arg9[%c0_55, %c0_56] : memref<392x64xbf16, #tpu.memory_space<vmem>>, vector<392x64xbf16>
      tpu.vector_store %arg9[%c0_55, %c0_56], %86 {strides = array<i32>} : memref<392x64xbf16, #tpu.memory_space<vmem>>, vector<392x64xbf16>,
      %cst_57 = arith.constant 0.000000e+00 : f32
      %88 = vector.broadcast %cst_57 : f32 to vector<8x512xf32>
      %c0_58 = arith.constant 0 : index
      %c0_59 = arith.constant 0 : index
      %89 = vector.load %arg10[%c0_58, %c0_59] : memref<8x512xf32, #tpu.memory_space<vmem>>, vector<8x512xf32>
      tpu.vector_store %arg10[%c0_58, %c0_59], %88 {strides = array<i32>} : memref<8x512xf32, #tpu.memory_space<vmem>>, vector<8x512xf32>,
    } else {
    }
    %c0 = arith.constant 0 : index
    %c0_1 = arith.constant 0 : index
    %3 = vector.load %arg10[%c0, %c0_1] : memref<8x512xf32, #tpu.memory_space<vmem>>, vector<8x512xf32>
    %c7_i32 = arith.constant 7 : i32
    %4 = arith.muli %arg0, %c7_i32 : i32
    %c0_i32_2 = arith.constant 0 : i32
    %5 = arith.addi %4, %c0_i32_2 : i32
    %c8_i32 = arith.constant 8 : i32
    %6 = arith.muli %5, %c8_i32 : i32
    %7 = tpu.assume_multiple %6, 8 : i32
    %8 = arith.index_cast %7 : i32 to index
    %c0_3 = arith.constant 0 : index
    %9 = vector.load %arg9[%8, %c0_3] : memref<392x64xbf16, #tpu.memory_space<vmem>>, vector<8x64xbf16>
    %c0_4 = arith.constant 0 : index
    %c0_5 = arith.constant 0 : index
    %c0_6 = arith.constant 0 : index
    %10 = vector.load %arg4[%c0_4, %c0_5, %c0_6] : memref<7x64x512xbf16, #tpu.memory_space<vmem>>, vector<1x64x512xbf16>
    %11 = vector.shape_cast %10 : vector<1x64x512xbf16> to vector<64x512xbf16>
    %cst = arith.constant dense<0.000000e+00> : vector<8x512xf32>
    %12 = tpu.matmul %9, %11, %cst {dimension_numbers = #tpu.dot_dimension_numbers<[1], [0], [0], [1], [0, 0, 1, 1], [], []>} : vector<8x64xbf16>, vector<64x512xbf16>, vector<8x512xf32> -> vector<8x512xf32>
    %13 = arith.addf %3, %12 : vector<8x512xf32>
    %c7_i32_7 = arith.constant 7 : i32
    %14 = arith.muli %arg0, %c7_i32_7 : i32
    %c1_i32 = arith.constant 1 : i32
    %15 = arith.addi %14, %c1_i32 : i32
    %c8_i32_8 = arith.constant 8 : i32
    %16 = arith.muli %15, %c8_i32_8 : i32
    %17 = tpu.assume_multiple %16, 8 : i32
    %18 = arith.index_cast %17 : i32 to index
    %c0_9 = arith.constant 0 : index
    %19 = vector.load %arg9[%18, %c0_9] : memref<392x64xbf16, #tpu.memory_space<vmem>>, vector<8x64xbf16>
    %c1 = arith.constant 1 : index
    %c0_10 = arith.constant 0 : index
    %c0_11 = arith.constant 0 : index
    %20 = vector.load %arg4[%c1, %c0_10, %c0_11] : memref<7x64x512xbf16, #tpu.memory_space<vmem>>, vector<1x64x512xbf16>
    %21 = vector.shape_cast %20 : vector<1x64x512xbf16> to vector<64x512xbf16>
    %cst_12 = arith.constant dense<0.000000e+00> : vector<8x512xf32>
    %22 = tpu.matmul %19, %21, %cst_12 {dimension_numbers = #tpu.dot_dimension_numbers<[1], [0], [0], [1], [0, 0, 1, 1], [], []>} : vector<8x64xbf16>, vector<64x512xbf16>, vector<8x512xf32> -> vector<8x512xf32>
    %23 = arith.addf %13, %22 : vector<8x512xf32>
    %c7_i32_13 = arith.constant 7 : i32
    %24 = arith.muli %arg0, %c7_i32_13 : i32
    %c2_i32 = arith.constant 2 : i32
    %25 = arith.addi %24, %c2_i32 : i32
    %c8_i32_14 = arith.constant 8 : i32
    %26 = arith.muli %25, %c8_i32_14 : i32
    %27 = tpu.assume_multiple %26, 8 : i32
    %28 = arith.index_cast %27 : i32 to index
    %c0_15 = arith.constant 0 : index
    %29 = vector.load %arg9[%28, %c0_15] : memref<392x64xbf16, #tpu.memory_space<vmem>>, vector<8x64xbf16>
    %c2 = arith.constant 2 : index
    %c0_16 = arith.constant 0 : index
    %c0_17 = arith.constant 0 : index
    %30 = vector.load %arg4[%c2, %c0_16, %c0_17] : memref<7x64x512xbf16, #tpu.memory_space<vmem>>, vector<1x64x512xbf16>
    %31 = vector.shape_cast %30 : vector<1x64x512xbf16> to vector<64x512xbf16>
    %cst_18 = arith.constant dense<0.000000e+00> : vector<8x512xf32>
    %32 = tpu.matmul %29, %31, %cst_18 {dimension_numbers = #tpu.dot_dimension_numbers<[1], [0], [0], [1], [0, 0, 1, 1], [], []>} : vector<8x64xbf16>, vector<64x512xbf16>, vector<8x512xf32> -> vector<8x512xf32>
    %33 = arith.addf %23, %32 : vector<8x512xf32>
    %c7_i32_19 = arith.constant 7 : i32
    %34 = arith.muli %arg0, %c7_i32_19 : i32
    %c3_i32 = arith.constant 3 : i32
    %35 = arith.addi %34, %c3_i32 : i32
    %c8_i32_20 = arith.constant 8 : i32
    %36 = arith.muli %35, %c8_i32_20 : i32
    %37 = tpu.assume_multiple %36, 8 : i32
    %38 = arith.index_cast %37 : i32 to index
    %c0_21 = arith.constant 0 : index
    %39 = vector.load %arg9[%38, %c0_21] : memref<392x64xbf16, #tpu.memory_space<vmem>>, vector<8x64xbf16>
    %c3 = arith.constant 3 : index
    %c0_22 = arith.constant 0 : index
    %c0_23 = arith.constant 0 : index
    %40 = vector.load %arg4[%c3, %c0_22, %c0_23] : memref<7x64x512xbf16, #tpu.memory_space<vmem>>, vector<1x64x512xbf16>
    %41 = vector.shape_cast %40 : vector<1x64x512xbf16> to vector<64x512xbf16>
    %cst_24 = arith.constant dense<0.000000e+00> : vector<8x512xf32>
    %42 = tpu.matmul %39, %41, %cst_24 {dimension_numbers = #tpu.dot_dimension_numbers<[1], [0], [0], [1], [0, 0, 1, 1], [], []>} : vector<8x64xbf16>, vector<64x512xbf16>, vector<8x512xf32> -> vector<8x512xf32>
    %43 = arith.addf %33, %42 : vector<8x512xf32>
    %c7_i32_25 = arith.constant 7 : i32
    %44 = arith.muli %arg0, %c7_i32_25 : i32
    %c4_i32 = arith.constant 4 : i32
    %45 = arith.addi %44, %c4_i32 : i32
    %c8_i32_26 = arith.constant 8 : i32
    %46 = arith.muli %45, %c8_i32_26 : i32
    %47 = tpu.assume_multiple %46, 8 : i32
    %48 = arith.index_cast %47 : i32 to index
    %c0_27 = arith.constant 0 : index
    %49 = vector.load %arg9[%48, %c0_27] : memref<392x64xbf16, #tpu.memory_space<vmem>>, vector<8x64xbf16>
    %c4 = arith.constant 4 : index
    %c0_28 = arith.constant 0 : index
    %c0_29 = arith.constant 0 : index
    %50 = vector.load %arg4[%c4, %c0_28, %c0_29] : memref<7x64x512xbf16, #tpu.memory_space<vmem>>, vector<1x64x512xbf16>
    %51 = vector.shape_cast %50 : vector<1x64x512xbf16> to vector<64x512xbf16>
    %cst_30 = arith.constant dense<0.000000e+00> : vector<8x512xf32>
    %52 = tpu.matmul %49, %51, %cst_30 {dimension_numbers = #tpu.dot_dimension_numbers<[1], [0], [0], [1], [0, 0, 1, 1], [], []>} : vector<8x64xbf16>, vector<64x512xbf16>, vector<8x512xf32> -> vector<8x512xf32>
    %53 = arith.addf %43, %52 : vector<8x512xf32>
    %c7_i32_31 = arith.constant 7 : i32
    %54 = arith.muli %arg0, %c7_i32_31 : i32
    %c5_i32 = arith.constant 5 : i32
    %55 = arith.addi %54, %c5_i32 : i32
    %c8_i32_32 = arith.constant 8 : i32
    %56 = arith.muli %55, %c8_i32_32 : i32
    %57 = tpu.assume_multiple %56, 8 : i32
    %58 = arith.index_cast %57 : i32 to index
    %c0_33 = arith.constant 0 : index
    %59 = vector.load %arg9[%58, %c0_33] : memref<392x64xbf16, #tpu.memory_space<vmem>>, vector<8x64xbf16>
    %c5 = arith.constant 5 : index
    %c0_34 = arith.constant 0 : index
    %c0_35 = arith.constant 0 : index
    %60 = vector.load %arg4[%c5, %c0_34, %c0_35] : memref<7x64x512xbf16, #tpu.memory_space<vmem>>, vector<1x64x512xbf16>
    %61 = vector.shape_cast %60 : vector<1x64x512xbf16> to vector<64x512xbf16>
    %cst_36 = arith.constant dense<0.000000e+00> : vector<8x512xf32>
    %62 = tpu.matmul %59, %61, %cst_36 {dimension_numbers = #tpu.dot_dimension_numbers<[1], [0], [0], [1], [0, 0, 1, 1], [], []>} : vector<8x64xbf16>, vector<64x512xbf16>, vector<8x512xf32> -> vector<8x512xf32>
    %63 = arith.addf %53, %62 : vector<8x512xf32>
    %c7_i32_37 = arith.constant 7 : i32
    %64 = arith.muli %arg0, %c7_i32_37 : i32
    %c6_i32 = arith.constant 6 : i32
    %65 = arith.addi %64, %c6_i32 : i32
    %c8_i32_38 = arith.constant 8 : i32
    %66 = arith.muli %65, %c8_i32_38 : i32
    %67 = tpu.assume_multiple %66, 8 : i32
    %68 = arith.index_cast %67 : i32 to index
    %c0_39 = arith.constant 0 : index
    %69 = vector.load %arg9[%68, %c0_39] : memref<392x64xbf16, #tpu.memory_space<vmem>>, vector<8x64xbf16>
    %c6 = arith.constant 6 : index
    %c0_40 = arith.constant 0 : index
    %c0_41 = arith.constant 0 : index
    %70 = vector.load %arg4[%c6, %c0_40, %c0_41] : memref<7x64x512xbf16, #tpu.memory_space<vmem>>, vector<1x64x512xbf16>
    %71 = vector.shape_cast %70 : vector<1x64x512xbf16> to vector<64x512xbf16>
    %cst_42 = arith.constant dense<0.000000e+00> : vector<8x512xf32>
    %72 = tpu.matmul %69, %71, %cst_42 {dimension_numbers = #tpu.dot_dimension_numbers<[1], [0], [0], [1], [0, 0, 1, 1], [], []>} : vector<8x64xbf16>, vector<64x512xbf16>, vector<8x512xf32> -> vector<8x512xf32>
    %73 = arith.addf %63, %72 : vector<8x512xf32>
    %c0_43 = arith.constant 0 : index
    %c0_44 = arith.constant 0 : index
    %74 = vector.load %arg10[%c0_43, %c0_44] : memref<8x512xf32, #tpu.memory_space<vmem>>, vector<8x512xf32>
    tpu.vector_store %arg10[%c0_43, %c0_44], %73 {strides = array<i32>} : memref<8x512xf32, #tpu.memory_space<vmem>>, vector<8x512xf32>,
    %c6_i32_45 = arith.constant 6 : i32
    %75 = arith.cmpi eq, %arg0, %c6_i32_45 : i32
    %76 = arith.extui %75 : i1 to i32
    %c0_i32_46 = arith.constant 0 : i32
    %77 = arith.cmpi ne, %76, %c0_i32_46 : i32
    scf.if %77 {
      %c0_47 = arith.constant 0 : index
      %c0_48 = arith.constant 0 : index
      %78 = vector.load %arg10[%c0_47, %c0_48] : memref<8x512xf32, #tpu.memory_space<vmem>>, vector<8x512xf32>
      %c0_49 = arith.constant 0 : index
      %c0_50 = arith.constant 0 : index
      %79 = vector.load %arg5[%c0_49, %c0_50] : memref<1x512xf32, #tpu.memory_space<vmem>>, vector<1x512xf32>
      %80 = vector.broadcast %79 : vector<1x512xf32> to vector<8x512xf32>
      %81 = arith.addf %78, %80 : vector<8x512xf32>
      %cst_51 = arith.constant 0.000000e+00 : f32
      %82 = vector.broadcast %cst_51 : f32 to vector<8x512xf32>
      %83 = arith.maximumf %81, %82 : vector<8x512xf32>
      %84 = arith.truncf %83 : vector<8x512xf32> to vector<8x512xbf16>
      %c0_52 = arith.constant 0 : index
      %c0_53 = arith.constant 0 : index
      %85 = vector.load %arg6[%c0_52, %c0_53] : memref<512x128xbf16, #tpu.memory_space<vmem>>, vector<512x128xbf16>
      %cst_54 = arith.constant dense<0.000000e+00> : vector<8x128xf32>
      %86 = tpu.matmul %84, %85, %cst_54 {dimension_numbers = #tpu.dot_dimension_numbers<[1], [0], [0], [1], [0, 0, 1, 1], [], []>} : vector<8x512xbf16>, vector<512x128xbf16>, vector<8x128xf32> -> vector<8x128xf32>
      %c0_55 = arith.constant 0 : index
      %c0_56 = arith.constant 0 : index
      %87 = vector.load %arg7[%c0_55, %c0_56] : memref<1x128xf32, #tpu.memory_space<vmem>>, vector<1x128xf32>
      %88 = vector.broadcast %87 : vector<1x128xf32> to vector<8x128xf32>
      %89 = arith.addf %86, %88 : vector<8x128xf32>
      %c0_57 = arith.constant 0 : index
      %c0_58 = arith.constant 0 : index
      %90 = vector.load %arg8[%c0_57, %c0_58] : memref<8x128xf32, #tpu.memory_space<vmem>>, vector<8x128xf32>
      tpu.vector_store %arg8[%c0_57, %c0_58], %89 {strides = array<i32>} : memref<8x128xf32, #tpu.memory_space<vmem>>, vector<8x128xf32>,
    } else {
    }
    return
  }
  func.func @transform_0(%arg0: i32) -> (i32, i32) {
    %c0_i32 = arith.constant 0 : i32
    %c0_i32_0 = arith.constant 0 : i32
    %c0_i32_1 = arith.constant 0 : i32
    return %c0_i32, %c0_i32_0 : i32, i32
  }
  func.func @transform_1(%arg0: i32) -> (i32, i32) {
    %c0_i32 = arith.constant 0 : i32
    %c0_i32_0 = arith.constant 0 : i32
    %c0_i32_1 = arith.constant 0 : i32
    return %c0_i32, %c0_i32_0 : i32, i32
  }
  func.func @transform_2(%arg0: i32) -> (i32, i32) {
    %c0_i32 = arith.constant 0 : i32
    %c0_i32_0 = arith.constant 0 : i32
    %c0_i32_1 = arith.constant 0 : i32
    return %c0_i32, %c0_i32_0 : i32, i32
  }
  func.func @transform_3(%arg0: i32) -> (i32, i32, i32) {
    %c0_i32 = arith.constant 0 : i32
    %c0_i32_0 = arith.constant 0 : i32
    %c0_i32_1 = arith.constant 0 : i32
    return %arg0, %c0_i32, %c0_i32_0 : i32, i32, i32
  }
  func.func @transform_4(%arg0: i32) -> (i32, i32) {
    %c0_i32 = arith.constant 0 : i32
    %c0_i32_0 = arith.constant 0 : i32
    %c0_i32_1 = arith.constant 0 : i32
    return %c0_i32, %c0_i32_0 : i32, i32
  }
  func.func @transform_5(%arg0: i32) -> (i32, i32) {
    %c0_i32 = arith.constant 0 : i32
    %c0_i32_0 = arith.constant 0 : i32
    %c0_i32_1 = arith.constant 0 : i32
    return %c0_i32, %c0_i32_0 : i32, i32
  }
  func.func @transform_6(%arg0: i32) -> (i32, i32) {
    %c0_i32 = arith.constant 0 : i32
    %c0_i32_0 = arith.constant 0 : i32
    %c0_i32_1 = arith.constant 0 : i32
    return %c0_i32, %c0_i32_0 : i32, i32
  }
  func.func @transform_7(%arg0: i32) -> (i32, i32) {
    %c0_i32 = arith.constant 0 : i32
    %c0_i32_0 = arith.constant 0 : i32
    %c0_i32_1 = arith.constant 0 : i32
    return %c0_i32, %c0_i32_0 : i32, i32
  }
}

</mosaic_0001>

<llo_original>
// kernel: net_forward.3
$region0: #{net_forward.3}
  #allocation0 [shape = 'u32[]', space=smem, size = 0x4, offset = 0x4, fixed_abs, tag = 'smem constant byte address 0x4 - core index']
  #allocation1 [shape = 'u32[72,128]{1,0:T(1,128)}', space=vmem, size = 0x9000, scoped, tag = 'internal scratch']
  %s0 = inlined_call_operand.vmem [shape: bf16[800,256], index: 0, kind: input, shape index: {}]
  %s1 = inlined_call_operand.vmem [shape: bf16[256,32], index: 1, kind: input, shape index: {}]
  %s2 = inlined_call_operand.vmem [shape: f32[1,32], index: 2, kind: input, shape index: {}]
  %s3 = inlined_call_operand.vmem [shape: bf16[800,32], index: 3, kind: output, shape index: {}]
  %s4 = sld [smem:[#allocation0]]
  $region45: #{net_forward.3} parent=0
    _
  %s6 = ssub.s32 1, %s4
  %s7 = scalar_select 0, %s6, %s4
  loop: start=0, step=1, limit=4
  $region2: #{net_forward.3} parent=0 // loop_pre_header
    _
  $region3: #{net_forward.3} parent=0 // loop_header
    %s9 = sphi 0, %s13
    %p10 = scmp.ge.s32.totalorder %s9, 4
    %s19 = sphi 0, %s21
    %s22 = sphi 0, %s19
    %s23 = sphi 0, %s22
    %s39 = sphi 0, %s23
    %s43 = sphi 0, %s43
    %s45 = sphi 0, %s43
    %s46 = sphi 0, %s45
    %s60 = sphi 0, %s46
    %s64 = sphi 0, %s64
    %s66 = sphi 0, %s64
    %s67 = sphi 0, %s66
    %s81 = sphi 0, %s67
    %s87 = sphi 0, %s89
    %s90 = sphi 0, %s87
    %s91 = sphi 0, %s90
    %s107 = sphi 0, %s91
  $region4: #{net_forward.3} parent=0 // loop_header_branch
    %12 = sbr.rel (%p10) target = $region8
  $region5: #{net_forward.3} parent=0 // loop_body
    %s14 = ssub.s32 %s9, 1
    %s15 = ssub.s32 %s9, 2
    %s16 = sadd.s32 %s9, 1
    %s17 = ssub.s32 %s9, %s16
    %p18 = scmp.eq.s32.totalorder %s17, 0
    %s20 = sadd.s32 %s19, 1
    %s21 = scalar_select %p18, %s19, %s20
    %p24 = pneg %p18
    %p25 = scmp.eq.s32.totalorder %s9, 1
    %p26 = por %p24, %p25
    %p27 = scmp.ne.s32.totalorder %s19, %s22
    %p28 = scmp.eq.s32.totalorder %s9, 0
    %p29 = por %p27, %p28
    %p30 = scmp.ne.s32.totalorder %s19, %s22
    %p31 = scmp.eq.s32.totalorder %s14, 1
    %p32 = por %p30, %p31
    %p33 = scmp.ne.s32.totalorder %s22, %s23
    %p34 = scmp.eq.s32.totalorder %s14, 0
    %p35 = por %p33, %p34
    %p36 = scmp.ne.s32.totalorder %s22, %s23
    %p37 = scmp.eq.s32.totalorder %s15, 1
    %p38 = por %p36, %p37
    %p40 = scmp.ne.s32.totalorder %s23, %s39
    %p41 = scmp.eq.s32.totalorder %s15, 0
    %p42 = por %p40, %p41
    %s44 = sadd.s32 %s43, 1
    %p47 = scmp.eq.s32.totalorder %s9, 1
    %p48 = scmp.ne.s32.totalorder %s43, %s45
    %p49 = scmp.eq.s32.totalorder %s9, 0
    %p50 = por %p48, %p49
    %p51 = scmp.ne.s32.totalorder %s43, %s45
    %p52 = scmp.eq.s32.totalorder %s14, 1
    %p53 = por %p51, %p52
    %p54 = scmp.ne.s32.totalorder %s45, %s46
    %p55 = scmp.eq.s32.totalorder %s14, 0
    %p56 = por %p54, %p55
    %p57 = scmp.ne.s32.totalorder %s45, %s46
    %p58 = scmp.eq.s32.totalorder %s15, 1
    %p59 = por %p57, %p58
    %p61 = scmp.ne.s32.totalorder %s46, %s60
    %p62 = scmp.eq.s32.totalorder %s15, 0
    %p63 = por %p61, %p62
    %s65 = sadd.s32 %s64, 1
    %p68 = scmp.eq.s32.totalorder %s9, 1
    %p69 = scmp.ne.s32.totalorder %s64, %s66
    %p70 = scmp.eq.s32.totalorder %s9, 0
    %p71 = por %p69, %p70
    %p72 = scmp.ne.s32.totalorder %s64, %s66
    %p73 = scmp.eq.s32.totalorder %s14, 1
    %p74 = por %p72, %p73
    %p75 = scmp.ne.s32.totalorder %s66, %s67
    %p76 = scmp.eq.s32.totalorder %s14, 0
    %p77 = por %p75, %p76
    %p78 = scmp.ne.s32.totalorder %s66, %s67
    %p79 = scmp.eq.s32.totalorder %s15, 1
    %p80 = por %p78, %p79
    %p82 = scmp.ne.s32.totalorder %s67, %s81
    %p83 = scmp.eq.s32.totalorder %s15, 0
    %p84 = por %p82, %p83
    %s85 = ssub.s32 %s9, %s16
    %p86 = scmp.eq.s32.totalorder %s85, 0
    %s88 = sadd.s32 %s87, 1
    %s89 = scalar_select %p86, %s87, %s88
    %p92 = pneg %p86
    %p93 = scmp.eq.s32.totalorder %s9, 1
    %p94 = por %p92, %p93
    %p95 = scmp.ne.s32.totalorder %s87, %s90
    %p96 = scmp.eq.s32.totalorder %s9, 0
    %p97 = por %p95, %p96
    %p98 = scmp.ne.s32.totalorder %s87, %s90
    %p99 = scmp.eq.s32.totalorder %s14, 1
    %p100 = por %p98, %p99
    %p101 = scmp.ne.s32.totalorder %s90, %s91
    %p102 = scmp.eq.s32.totalorder %s14, 0
    %p103 = por %p101, %p102
    %p104 = scmp.ne.s32.totalorder %s90, %s91
    %p105 = scmp.eq.s32.totalorder %s15, 1
    %p106 = por %p104, %p105
    %p108 = scmp.ne.s32.totalorder %s91, %s107
    %p109 = scmp.eq.s32.totalorder %s15, 0
    %p110 = por %p108, %p109
    %p111 = scmp.le.s32.totalorder 1, %s9
    %p112 = scmp.lt.s32.totalorder %s9, 3
    %p113 = pnand %p111, %p112
    %p114 = pneg %p113
    // Predicated region
    $region9: #{net_forward.3} parent=5 // pred_check
      _
    $region10: #{net_forward.3} parent=5 // pred_check_branch
      %116 = sbr.rel (%p113) target = $region12
    $region11: #{net_forward.3} parent=5 // pred_region
      %s117 = ssub.s32 %s9, 1
      // Predicated region
      $region13: #{net_forward.3} parent=11 // pred_check
        %p118 = pneg %p56
      $region14: #{net_forward.3} parent=11 // pred_check_branch
        %120 = sbr.rel (%p118) target = $region16
      $region15: #{net_forward.3} parent=11 // pred_region
        _
      $region16: #{net_forward.3} parent=11 // pred_fallthru
        _
      // Predicated region
      $region17: #{net_forward.3} parent=11 // pred_check
        %p121 = pneg %p77
      $region18: #{net_forward.3} parent=11 // pred_check_branch
        %123 = sbr.rel (%p121) target = $region20
      $region19: #{net_forward.3} parent=11 // pred_region
        _
      $region20: #{net_forward.3} parent=11 // pred_fallthru
        _
    $region12: #{net_forward.3} parent=5 // pred_fallthru
      _
    %p124 = scmp.lt.s32.totalorder %s9, 2
    // Predicated region
    $region21: #{net_forward.3} parent=5 // pred_check
      %p125 = pneg %p124
    $region22: #{net_forward.3} parent=5 // pred_check_branch
      %127 = sbr.rel (%p125) target = $region24
    $region23: #{net_forward.3} parent=5 // pred_region
      // Predicated region
      $region25: #{net_forward.3} parent=23 // pred_check
        %p128 = pneg %p29
      $region26: #{net_forward.3} parent=23 // pred_check_branch
        %130 = sbr.rel (%p128) target = $region28
      $region27: #{net_forward.3} parent=23 // pred_region
        %s131 = smul.u32 50, %s9
        %p132 = scmp.lt.s32.totalorder %s131, 99
        %s133 = scalar_select %p132, %s131, 99
        %s134 = smul.addr %s133, 2
        %s135 = smul.addr %s134, 4
        %s136 = scalar_lea.vmem %s0, %s135
        %s137 = smul.u32 50, %s9
      $region28: #{net_forward.3} parent=23 // pred_fallthru
        _
    $region24: #{net_forward.3} parent=5 // pred_fallthru
      _
    %p138 = scmp.le.s32.totalorder 1, %s9
    %p139 = scmp.lt.s32.totalorder %s9, 3
    %p140 = pnand %p138, %p139
    %p141 = pneg %p140
    // Predicated region
    $region29: #{net_forward.3} parent=5 // pred_check
      _
    $region30: #{net_forward.3} parent=5 // pred_check_branch
      %143 = sbr.rel (%p140) target = $region32
    $region31: #{net_forward.3} parent=5 // pred_region
      %s144 = ssub.s32 %s9, 1
      %s145 = smul.u32 50, %s14
      %p146 = scmp.lt.s32.totalorder %s145, 99
      %s147 = scalar_select %p146, %s145, 99
      %s148 = smul.addr %s147, 2
      %s149 = smul.addr %s148, 4
      %s150 = scalar_lea.vmem %s0, %s149
      %p151 = pneg %p35
      %p152 = pneg %p32
      %p153 = pneg %p56
      %p154 = pneg %p53
      %p155 = pneg %p77
      %p156 = pneg %p74
      %p157 = pneg %p103
      %p158 = pneg %p100
      %s159 = smul.u32 50, %s14
      %p160 = scmp.lt.s32.totalorder %s159, 99
      %s161 = scalar_select %p160, %s159, 99
      %s162 = smul.addr %s161, 4
      %s163 = scalar_lea.vmem %s3, %s162
      %s164 = smul.u32 50, %s14
      %p165 = scmp.lt.s32.totalorder %s164, 99
      %s166 = scalar_select %p165, %s164, 99
      %s167 = smul.addr %s166, 2
      %s168 = smul.addr %s167, 4
      %s169 = scalar_lea.vmem %s0, %s168
      %s170 = smul.u32 50, %s14
      %s171 = smul.u32 50, %s14
      %p172 = scmp.lt.s32.totalorder %s171, 99
      %s173 = scalar_select %p172, %s171, 99
      %s174 = smul.addr %s173, 4
      %s175 = scalar_lea.vmem %s3, %s174
      %s176 = smul.u32 50, %s14
      %v177 = vld [vmem:[%s169] sm:$0xff]
      %v178 = vld [vmem:[%s169 + $0x8] sm:$0xff]
      %v179 = vld [vmem:[%s169 + $0x10] sm:$0xff]
      %v180 = vld [vmem:[%s169 + $0x18] sm:$0xff]
      %v181 = vld [vmem:[%s169 + $0x20] sm:$0xff]
      %v182 = vld [vmem:[%s169 + $0x28] sm:$0xff]
      %v183 = vld [vmem:[%s169 + $0x30] sm:$0xff]
      %v184 = vld [vmem:[%s169 + $0x38] sm:$0xff]
      %v185 = vld [vmem:[%s169 + $0x40] sm:$0xff]
      %v186 = vld [vmem:[%s169 + $0x48] sm:$0xff]
      %v187 = vld [vmem:[%s169 + $0x50] sm:$0xff]
      %v188 = vld [vmem:[%s169 + $0x58] sm:$0xff]
      %v189 = vld [vmem:[%s169 + $0x60] sm:$0xff]
      %v190 = vld [vmem:[%s169 + $0x68] sm:$0xff]
      %v191 = vld [vmem:[%s169 + $0x70] sm:$0xff]
      %v192 = vld [vmem:[%s169 + $0x78] sm:$0xff]
      %v193 = vld [vmem:[%s169 + $0x80] sm:$0xff]
      %v194 = vld [vmem:[%s169 + $0x88] sm:$0xff]
      %v195 = vld [vmem:[%s169 + $0x90] sm:$0xff]
      %v196 = vld [vmem:[%s169 + $0x98] sm:$0xff]
      %v197 = vld [vmem:[%s169 + $0xa0] sm:$0xff]
      %v198 = vld [vmem:[%s169 + $0xa8] sm:$0xff]
      %v199 = vld [vmem:[%s169 + $0xb0] sm:$0xff]
      %v200 = vld [vmem:[%s169 + $0xb8] sm:$0xff]
      %v201 = vld [vmem:[%s169 + $0xc0] sm:$0xff]
      %v202 = vld [vmem:[%s169 + $0xc8] sm:$0xff]
      %v203 = vld [vmem:[%s169 + $0xd0] sm:$0xff]
      %v204 = vld [vmem:[%s169 + $0xd8] sm:$0xff]
      %v205 = vld [vmem:[%s169 + $0xe0] sm:$0xff]
      %v206 = vld [vmem:[%s169 + $0xe8] sm:$0xff]
      %v207 = vld [vmem:[%s169 + $0xf0] sm:$0xff]
      %v208 = vld [vmem:[%s169 + $0xf8] sm:$0xff]
      %v209 = vld [vmem:[%s169 + $0x100] sm:$0xff]
      %v210 = vld [vmem:[%s169 + $0x108] sm:$0xff]
      %v211 = vld [vmem:[%s169 + $0x110] sm:$0xff]
      %v212 = vld [vmem:[%s169 + $0x118] sm:$0xff]
      %v213 = vld [vmem:[%s169 + $0x120] sm:$0xff]
      %v214 = vld [vmem:[%s169 + $0x128] sm:$0xff]
      %v215 = vld [vmem:[%s169 + $0x130] sm:$0xff]
      %v216 = vld [vmem:[%s169 + $0x138] sm:$0xff]
      %v217 = vld [vmem:[%s169 + $0x140] sm:$0xff]
      %v218 = vld [vmem:[%s169 + $0x148] sm:$0xff]
      %v219 = vld [vmem:[%s169 + $0x150] sm:$0xff]
      %v220 = vld [vmem:[%s169 + $0x158] sm:$0xff]
      %v221 = vld [vmem:[%s169 + $0x160] sm:$0xff]
      %v222 = vld [vmem:[%s169 + $0x168] sm:$0xff]
      %v223 = vld [vmem:[%s169 + $0x170] sm:$0xff]
      %v224 = vld [vmem:[%s169 + $0x178] sm:$0xff]
      %v225 = vld [vmem:[%s169 + $0x180] sm:$0xff]
      %v226 = vld [vmem:[%s169 + $0x188] sm:$0xff]
      %v227 = vld [vmem:[%s1] sm:$0xf]
      %v228 = vld [vmem:[%s1 + $0x4] sm:$0xf]
      %v229 = vld [vmem:[%s1 + $0x8] sm:$0xf]
      %v230 = vld [vmem:[%s1 + $0xc] sm:$0xf]
      %v231 = vld [vmem:[%s1 + $0x10] sm:$0xf]
      %v232 = vld [vmem:[%s1 + $0x14] sm:$0xf]
      %v233 = vld [vmem:[%s1 + $0x18] sm:$0xf]
      %v234 = vld [vmem:[%s1 + $0x1c] sm:$0xf]
      %v235 = vld [vmem:[%s1 + $0x20] sm:$0xf]
      %v236 = vld [vmem:[%s1 + $0x24] sm:$0xf]
      %v237 = vld [vmem:[%s1 + $0x28] sm:$0xf]
      %v238 = vld [vmem:[%s1 + $0x2c] sm:$0xf]
      %v239 = vld [vmem:[%s1 + $0x30] sm:$0xf]
      %v240 = vld [vmem:[%s1 + $0x34] sm:$0xf]
      %v241 = vld [vmem:[%s1 + $0x38] sm:$0xf]
      %v242 = vld [vmem:[%s1 + $0x3c] sm:$0xf]
      %v243 = vld [vmem:[%s1 + $0x40] sm:$0xf]
      %v244 = vld [vmem:[%s1 + $0x44] sm:$0xf]
      %v245 = vld [vmem:[%s1 + $0x48] sm:$0xf]
      %v246 = vld [vmem:[%s1 + $0x4c] sm:$0xf]
      %v247 = vld [vmem:[%s1 + $0x50] sm:$0xf]
      %v248 = vld [vmem:[%s1 + $0x54] sm:$0xf]
      %v249 = vld [vmem:[%s1 + $0x58] sm:$0xf]
      %v250 = vld [vmem:[%s1 + $0x5c] sm:$0xf]
      %v251 = vld [vmem:[%s1 + $0x60] sm:$0xf]
      %v252 = vld [vmem:[%s1 + $0x64] sm:$0xf]
      %v253 = vld [vmem:[%s1 + $0x68] sm:$0xf]
      %v254 = vld [vmem:[%s1 + $0x6c] sm:$0xf]
      %v255 = vld [vmem:[%s1 + $0x70] sm:$0xf]
      %v256 = vld [vmem:[%s1 + $0x74] sm:$0xf]
      %v257 = vld [vmem:[%s1 + $0x78] sm:$0xf]
      %v258 = vld [vmem:[%s1 + $0x7c] sm:$0xf]
      %v259 = vld [vmem:[%s2] sm:$0x1]
      %v261 = vperm.slane %v259, 0
      %v313 = vunpack.c.l.b16 %v177
      %v314 = vunpack.c.h.b16 %v177
      %v315 = vunpack.c.l.b16 %v178
      %v316 = vunpack.c.h.b16 %v178
      %v317 = vunpack.c.l.b16 %v179
      %v318 = vunpack.c.h.b16 %v179
      %v319 = vunpack.c.l.b16 %v180
      %v320 = vunpack.c.h.b16 %v180
      %v321 = vunpack.c.l.b16 %v181
      %v322 = vunpack.c.h.b16 %v181
      %v323 = vunpack.c.l.b16 %v182
      %v324 = vunpack.c.h.b16 %v182
      %v325 = vunpack.c.l.b16 %v183
      %v326 = vunpack.c.h.b16 %v183
      %v327 = vunpack.c.l.b16 %v184
      %v328 = vunpack.c.h.b16 %v184
      %v329 = vunpack.c.l.b16 %v185
      %v330 = vunpack.c.h.b16 %v185
      %v331 = vunpack.c.l.b16 %v186
      %v332 = vunpack.c.h.b16 %v186
      %v333 = vunpack.c.l.b16 %v187
      %v334 = vunpack.c.h.b16 %v187
      %v335 = vunpack.c.l.b16 %v188
      %v336 = vunpack.c.h.b16 %v188
      %v337 = vunpack.c.l.b16 %v189
      %v338 = vunpack.c.h.b16 %v189
      %v339 = vunpack.c.l.b16 %v190
      %v340 = vunpack.c.h.b16 %v190
      %v341 = vunpack.c.l.b16 %v191
      %v342 = vunpack.c.h.b16 %v191
      %v343 = vunpack.c.l.b16 %v192
      %v344 = vunpack.c.h.b16 %v192
      %v345 = vunpack.c.l.b16 %v193
      %v346 = vunpack.c.h.b16 %v193
      %v347 = vunpack.c.l.b16 %v194
      %v348 = vunpack.c.h.b16 %v194
      %v349 = vunpack.c.l.b16 %v195
      %v350 = vunpack.c.h.b16 %v195
      %v351 = vunpack.c.l.b16 %v196
      %v352 = vunpack.c.h.b16 %v196
      %v353 = vunpack.c.l.b16 %v197
      %v354 = vunpack.c.h.b16 %v197
      %v355 = vunpack.c.l.b16 %v198
      %v356 = vunpack.c.h.b16 %v198
      %v357 = vunpack.c.l.b16 %v199
      %v358 = vunpack.c.h.b16 %v199
      %v359 = vunpack.c.l.b16 %v200
      %v360 = vunpack.c.h.b16 %v200
      %v361 = vunpack.c.l.b16 %v201
      %v362 = vunpack.c.h.b16 %v201
      %v363 = vunpack.c.l.b16 %v202
      %v364 = vunpack.c.h.b16 %v202
      %v365 = vunpack.c.l.b16 %v203
      %v366 = vunpack.c.h.b16 %v203
      %v367 = vunpack.c.l.b16 %v204
      %v368 = vunpack.c.h.b16 %v204
      %v369 = vunpack.c.l.b16 %v205
      %v370 = vunpack.c.h.b16 %v205
      %v371 = vunpack.c.l.b16 %v206
      %v372 = vunpack.c.h.b16 %v206
      %v373 = vunpack.c.l.b16 %v207
      %v374 = vunpack.c.h.b16 %v207
      %v375 = vunpack.c.l.b16 %v208
      %v376 = vunpack.c.h.b16 %v208
      %v377 = vunpack.c.l.b16 %v209
      %v378 = vunpack.c.h.b16 %v209
      %v379 = vunpack.c.l.b16 %v210
      %v380 = vunpack.c.h.b16 %v210
      %v381 = vunpack.c.l.b16 %v211
      %v382 = vunpack.c.h.b16 %v211
      %v383 = vunpack.c.l.b16 %v212
      %v384 = vunpack.c.h.b16 %v212
      %v385 = vunpack.c.l.b16 %v213
      %v386 = vunpack.c.h.b16 %v213
      %v387 = vunpack.c.l.b16 %v214
      %v388 = vunpack.c.h.b16 %v214
      %v389 = vunpack.c.l.b16 %v215
      %v390 = vunpack.c.h.b16 %v215
      %v391 = vunpack.c.l.b16 %v216
      %v392 = vunpack.c.h.b16 %v216
      %v393 = vunpack.c.l.b16 %v217
      %v394 = vunpack.c.h.b16 %v217
      %v395 = vunpack.c.l.b16 %v218
      %v396 = vunpack.c.h.b16 %v218
      %v397 = vunpack.c.l.b16 %v219
      %v398 = vunpack.c.h.b16 %v219
      %v399 = vunpack.c.l.b16 %v220
      %v400 = vunpack.c.h.b16 %v220
      %v401 = vunpack.c.l.b16 %v221
      %v402 = vunpack.c.h.b16 %v221
      %v403 = vunpack.c.l.b16 %v222
      %v404 = vunpack.c.h.b16 %v222
      %v405 = vunpack.c.l.b16 %v223
      %v406 = vunpack.c.h.b16 %v223
      %v407 = vunpack.c.l.b16 %v224
      %v408 = vunpack.c.h.b16 %v224
      %v409 = vunpack.c.l.b16 %v225
      %v410 = vunpack.c.h.b16 %v225
      %v411 = vunpack.c.l.b16 %v226
      %v412 = vunpack.c.h.b16 %v226
      %v413 = vpack.c.b16 %v315, %v313
      %v414 = vpack.c.b16 %v316, %v314
      %v415 = vpack.c.b16 %v319, %v317
      %v416 = vpack.c.b16 %v320, %v318
      %v417 = vpack.c.b16 %v323, %v321
      %v418 = vpack.c.b16 %v324, %v322
      %v419 = vpack.c.b16 %v327, %v325
      %v420 = vpack.c.b16 %v328, %v326
      %v421 = vpack.c.b16 %v331, %v329
      %v422 = vpack.c.b16 %v332, %v330
      %v423 = vpack.c.b16 %v335, %v333
      %v424 = vpack.c.b16 %v336, %v334
      %v425 = vpack.c.b16 %v339, %v337
      %v426 = vpack.c.b16 %v340, %v338
      %v427 = vpack.c.b16 %v343, %v341
      %v428 = vpack.c.b16 %v344, %v342
      %v429 = vpack.c.b16 %v347, %v345
      %v430 = vpack.c.b16 %v348, %v346
      %v431 = vpack.c.b16 %v351, %v349
      %v432 = vpack.c.b16 %v352, %v350
      %v433 = vpack.c.b16 %v355, %v353
      %v434 = vpack.c.b16 %v356, %v354
      %v435 = vpack.c.b16 %v359, %v357
      %v436 = vpack.c.b16 %v360, %v358
      %v437 = vpack.c.b16 %v363, %v361
      %v438 = vpack.c.b16 %v364, %v362
      %v439 = vpack.c.b16 %v367, %v365
      %v440 = vpack.c.b16 %v368, %v366
      %v441 = vpack.c.b16 %v371, %v369
      %v442 = vpack.c.b16 %v372, %v370
      %v443 = vpack.c.b16 %v375, %v373
      %v444 = vpack.c.b16 %v376, %v374
      %v445 = vpack.c.b16 %v379, %v377
      %v446 = vpack.c.b16 %v380, %v378
      %v447 = vpack.c.b16 %v383, %v381
      %v448 = vpack.c.b16 %v384, %v382
      %v449 = vpack.c.b16 %v387, %v385
      %v450 = vpack.c.b16 %v388, %v386
      %v451 = vpack.c.b16 %v391, %v389
      %v452 = vpack.c.b16 %v392, %v390
      %v453 = vpack.c.b16 %v395, %v393
      %v454 = vpack.c.b16 %v396, %v394
      %v455 = vpack.c.b16 %v399, %v397
      %v456 = vpack.c.b16 %v400, %v398
      %v457 = vpack.c.b16 %v403, %v401
      %v458 = vpack.c.b16 %v404, %v402
      %v459 = vpack.c.b16 %v407, %v405
      %v460 = vpack.c.b16 %v408, %v406
      %v461 = vpack.c.b16 %v411, %v409
      %v462 = vpack.c.b16 %v412, %v410
      %v545 = vunpack.c.l.b16 %v227
      %v546 = vunpack.c.l.b16 %v228
      %v547 = vunpack.c.l.b16 %v229
      %v548 = vunpack.c.l.b16 %v230
      %v549 = vunpack.c.l.b16 %v231
      %v550 = vunpack.c.l.b16 %v232
      %v551 = vunpack.c.l.b16 %v233
      %v552 = vunpack.c.l.b16 %v234
      %v553 = vunpack.c.l.b16 %v235
      %v554 = vunpack.c.l.b16 %v236
      %v555 = vunpack.c.l.b16 %v237
      %v556 = vunpack.c.l.b16 %v238
      %v557 = vunpack.c.l.b16 %v239
      %v558 = vunpack.c.l.b16 %v240
      %v559 = vunpack.c.l.b16 %v241
      %v560 = vunpack.c.l.b16 %v242
      %v561 = vunpack.c.l.b16 %v243
      %v562 = vunpack.c.l.b16 %v244
      %v563 = vunpack.c.l.b16 %v245
      %v564 = vunpack.c.l.b16 %v246
      %v565 = vunpack.c.l.b16 %v247
      %v566 = vunpack.c.l.b16 %v248
      %v567 = vunpack.c.l.b16 %v249
      %v568 = vunpack.c.l.b16 %v250
      %v569 = vunpack.c.l.b16 %v251
      %v570 = vunpack.c.l.b16 %v252
      %v571 = vunpack.c.l.b16 %v253
      %v572 = vunpack.c.l.b16 %v254
      %v573 = vunpack.c.l.b16 %v255
      %v574 = vunpack.c.l.b16 %v256
      %v575 = vunpack.c.l.b16 %v257
      %v576 = vunpack.c.l.b16 %v258
      %v577 = vpack.c.b16 %v546, %v545
      %v578 = vpack.c.b16 %v548, %v547
      %v579 = vpack.c.b16 %v550, %v549
      %v580 = vpack.c.b16 %v552, %v551
      %v581 = vpack.c.b16 %v554, %v553
      %v582 = vpack.c.b16 %v556, %v555
      %v583 = vpack.c.b16 %v558, %v557
      %v584 = vpack.c.b16 %v560, %v559
      %v585 = vpack.c.b16 %v562, %v561
      %v586 = vpack.c.b16 %v564, %v563
      %v587 = vpack.c.b16 %v566, %v565
      %v588 = vpack.c.b16 %v568, %v567
      %v589 = vpack.c.b16 %v570, %v569
      %v590 = vpack.c.b16 %v572, %v571
      %v591 = vpack.c.b16 %v574, %v573
      %v592 = vpack.c.b16 %v576, %v575
      %609 = vmatpush.bf16.msra.mxu0 %v584
      %610 = vmatpush.bf16.msra.mxu0 %v583
      %611 = vmatpush.bf16.msra.mxu0 %v582
      %612 = vmatpush.bf16.msra.mxu0 %v581
      %613 = vmatpush.bf16.msra.mxu0 %v580
      %614 = vmatpush.bf16.msra.mxu0 %v579
      %615 = vmatpush.bf16.msra.mxu0 %v578
      %616 = vmatpush.bf16.msra.mxu0 %v577
      %617 = vmatmul.bf16.gmra.mxu0 %v413
      %v618 = vpop.f32.mrf.mxu0
      %v619 = vadd.f32 %v261, %v618
      %v620 = vpop.f32.mrf.mxu0
      %v621 = vadd.f32 %v261, %v620
      %622 = vmatmul.bf16.gmra.mxu0 %v415
      %v623 = vpop.f32.mrf.mxu0
      %v624 = vadd.f32 %v261, %v623
      %v625 = vpop.f32.mrf.mxu0
      %v626 = vadd.f32 %v261, %v625
      %627 = vmatmul.bf16.gmra.mxu0 %v417
      %v628 = vpop.f32.mrf.mxu0
      %v629 = vadd.f32 %v261, %v628
      %v630 = vpop.f32.mrf.mxu0
      %v631 = vadd.f32 %v261, %v630
      %632 = vmatmul.bf16.gmra.mxu0 %v419
      %v633 = vpop.f32.mrf.mxu0
      %v634 = vadd.f32 %v261, %v633
      %v635 = vpop.f32.mrf.mxu0
      %v636 = vadd.f32 %v261, %v635
      %637 = vmatmul.bf16.gmra.mxu0 %v421
      %v638 = vpop.f32.mrf.mxu0
      %v639 = vadd.f32 %v261, %v638
      %v640 = vpop.f32.mrf.mxu0
      %v641 = vadd.f32 %v261, %v640
      %642 = vmatmul.bf16.gmra.mxu0 %v423
      %v643 = vpop.f32.mrf.mxu0
      %v644 = vadd.f32 %v261, %v643
      %v645 = vpop.f32.mrf.mxu0
      %v646 = vadd.f32 %v261, %v645
      %647 = vmatmul.bf16.gmra.mxu0 %v425
      %v648 = vpop.f32.mrf.mxu0
      %v649 = vadd.f32 %v261, %v648
      %v650 = vpop.f32.mrf.mxu0
      %v651 = vadd.f32 %v261, %v650
      %652 = vmatmul.bf16.gmra.mxu0 %v427
      %v653 = vpop.f32.mrf.mxu0
      %v654 = vadd.f32 %v261, %v653
      %v655 = vpop.f32.mrf.mxu0
      %v656 = vadd.f32 %v261, %v655
      %657 = vmatmul.bf16.gmra.mxu0 %v429
      %v658 = vpop.f32.mrf.mxu0
      %v659 = vadd.f32 %v261, %v658
      %v660 = vpop.f32.mrf.mxu0
      %v661 = vadd.f32 %v261, %v660
      %662 = vmatmul.bf16.gmra.mxu0 %v431
      %v663 = vpop.f32.mrf.mxu0
      %v664 = vadd.f32 %v261, %v663
      %v665 = vpop.f32.mrf.mxu0
      %v666 = vadd.f32 %v261, %v665
      %667 = vmatmul.bf16.gmra.mxu0 %v433
      %v668 = vpop.f32.mrf.mxu0
      %v669 = vadd.f32 %v261, %v668
      %v670 = vpop.f32.mrf.mxu0
      %v671 = vadd.f32 %v261, %v670
      %672 = vmatmul.bf16.gmra.mxu0 %v435
      %v673 = vpop.f32.mrf.mxu0
      %v674 = vadd.f32 %v261, %v673
      %v675 = vpop.f32.mrf.mxu0
      %v676 = vadd.f32 %v261, %v675
      %677 = vmatmul.bf16.gmra.mxu0 %v437
      %v678 = vpop.f32.mrf.mxu0
      %v679 = vadd.f32 %v261, %v678
      %v680 = vpop.f32.mrf.mxu0
      %v681 = vadd.f32 %v261, %v680
      %682 = vmatmul.bf16.gmra.mxu0 %v439
      %v683 = vpop.f32.mrf.mxu0
      %v684 = vadd.f32 %v261, %v683
      %v685 = vpop.f32.mrf.mxu0
      %v686 = vadd.f32 %v261, %v685
      %687 = vmatmul.bf16.gmra.mxu0 %v441
      %v688 = vpop.f32.mrf.mxu0
      %v689 = vadd.f32 %v261, %v688
      %v690 = vpop.f32.mrf.mxu0
      %v691 = vadd.f32 %v261, %v690
      %692 = vmatmul.bf16.gmra.mxu0 %v443
      %v693 = vpop.f32.mrf.mxu0
      %v694 = vadd.f32 %v261, %v693
      %v695 = vpop.f32.mrf.mxu0
      %v696 = vadd.f32 %v261, %v695
      %697 = vmatmul.bf16.gmra.mxu0 %v445
      %v698 = vpop.f32.mrf.mxu0
      %v699 = vadd.f32 %v261, %v698
      %v700 = vpop.f32.mrf.mxu0
      %v701 = vadd.f32 %v261, %v700
      %702 = vmatmul.bf16.gmra.mxu0 %v447
      %v703 = vpop.f32.mrf.mxu0
      %v704 = vadd.f32 %v261, %v703
      %v705 = vpop.f32.mrf.mxu0
      %v706 = vadd.f32 %v261, %v705
      %707 = vmatmul.bf16.gmra.mxu0 %v449
      %v708 = vpop.f32.mrf.mxu0
      %v709 = vadd.f32 %v261, %v708
      %v710 = vpop.f32.mrf.mxu0
      %v711 = vadd.f32 %v261, %v710
      %712 = vmatmul.bf16.gmra.mxu0 %v451
      %v713 = vpop.f32.mrf.mxu0
      %v714 = vadd.f32 %v261, %v713
      %v715 = vpop.f32.mrf.mxu0
      %v716 = vadd.f32 %v261, %v715
      %717 = vmatmul.bf16.gmra.mxu0 %v453
      %v718 = vpop.f32.mrf.mxu0
      %v719 = vadd.f32 %v261, %v718
      %v720 = vpop.f32.mrf.mxu0
      %v721 = vadd.f32 %v261, %v720
      %722 = vmatmul.bf16.gmra.mxu0 %v455
      %v723 = vpop.f32.mrf.mxu0
      %v724 = vadd.f32 %v261, %v723
      %v725 = vpop.f32.mrf.mxu0
      %v726 = vadd.f32 %v261, %v725
      %727 = vmatmul.bf16.gmra.mxu0 %v457
      %v728 = vpop.f32.mrf.mxu0
      %v729 = vadd.f32 %v261, %v728
      %v730 = vpop.f32.mrf.mxu0
      %v731 = vadd.f32 %v261, %v730
      %732 = vmatmul.bf16.gmra.mxu0 %v459
      %v733 = vpop.f32.mrf.mxu0
      %v734 = vadd.f32 %v261, %v733
      %v735 = vpop.f32.mrf.mxu0
      %v736 = vadd.f32 %v261, %v735
      %737 = vmatmul.bf16.gmra.mxu0 %v461
      %v738 = vpop.f32.mrf.mxu0
      %v739 = vadd.f32 %v261, %v738
      %v740 = vpop.f32.mrf.mxu0
      %v741 = vadd.f32 %v261, %v740
      %742 = vdwg.mxu0
      %743 = vmatpush.bf16.msra.mxu0 %v592
      %744 = vmatpush.bf16.msra.mxu0 %v591
      %745 = vmatpush.bf16.msra.mxu0 %v590
      %746 = vmatpush.bf16.msra.mxu0 %v589
      %747 = vmatpush.bf16.msra.mxu0 %v588
      %748 = vmatpush.bf16.msra.mxu0 %v587
      %749 = vmatpush.bf16.msra.mxu0 %v586
      %750 = vmatpush.bf16.msra.mxu0 %v585
      %751 = vmatmul.bf16.gmra.mxu0 %v414
      %v752 = vpop.f32.mrf.mxu0
      %v753 = vadd.f32 %v619, %v752
      %v754 = vpop.f32.mrf.mxu0
      %v755 = vadd.f32 %v621, %v754
      %756 = vmatmul.bf16.gmra.mxu0 %v416
      %v757 = vpop.f32.mrf.mxu0
      %v758 = vadd.f32 %v624, %v757
      %v759 = vpop.f32.mrf.mxu0
      %v760 = vadd.f32 %v626, %v759
      %761 = vmatmul.bf16.gmra.mxu0 %v418
      %v762 = vpop.f32.mrf.mxu0
      %v763 = vadd.f32 %v629, %v762
      %v764 = vpop.f32.mrf.mxu0
      %v765 = vadd.f32 %v631, %v764
      %766 = vmatmul.bf16.gmra.mxu0 %v420
      %v767 = vpop.f32.mrf.mxu0
      %v768 = vadd.f32 %v634, %v767
      %v769 = vpop.f32.mrf.mxu0
      %v770 = vadd.f32 %v636, %v769
      %771 = vmatmul.bf16.gmra.mxu0 %v422
      %v772 = vpop.f32.mrf.mxu0
      %v773 = vadd.f32 %v639, %v772
      %v774 = vpop.f32.mrf.mxu0
      %v775 = vadd.f32 %v641, %v774
      %776 = vmatmul.bf16.gmra.mxu0 %v424
      %v777 = vpop.f32.mrf.mxu0
      %v778 = vadd.f32 %v644, %v777
      %v779 = vpop.f32.mrf.mxu0
      %v780 = vadd.f32 %v646, %v779
      %781 = vmatmul.bf16.gmra.mxu0 %v426
      %v782 = vpop.f32.mrf.mxu0
      %v783 = vadd.f32 %v649, %v782
      %v784 = vpop.f32.mrf.mxu0
      %v785 = vadd.f32 %v651, %v784
      %786 = vmatmul.bf16.gmra.mxu0 %v428
      %v787 = vpop.f32.mrf.mxu0
      %v788 = vadd.f32 %v654, %v787
      %v789 = vpop.f32.mrf.mxu0
      %v790 = vadd.f32 %v656, %v789
      %791 = vmatmul.bf16.gmra.mxu0 %v430
      %v792 = vpop.f32.mrf.mxu0
      %v793 = vadd.f32 %v659, %v792
      %v794 = vpop.f32.mrf.mxu0
      %v795 = vadd.f32 %v661, %v794
      %796 = vmatmul.bf16.gmra.mxu0 %v432
      %v797 = vpop.f32.mrf.mxu0
      %v798 = vadd.f32 %v664, %v797
      %v799 = vpop.f32.mrf.mxu0
      %v800 = vadd.f32 %v666, %v799
      %801 = vmatmul.bf16.gmra.mxu0 %v434
      %v802 = vpop.f32.mrf.mxu0
      %v803 = vadd.f32 %v669, %v802
      %v804 = vpop.f32.mrf.mxu0
      %v805 = vadd.f32 %v671, %v804
      %806 = vmatmul.bf16.gmra.mxu0 %v436
      %v807 = vpop.f32.mrf.mxu0
      %v808 = vadd.f32 %v674, %v807
      %v809 = vpop.f32.mrf.mxu0
      %v810 = vadd.f32 %v676, %v809
      %811 = vmatmul.bf16.gmra.mxu0 %v438
      %v812 = vpop.f32.mrf.mxu0
      %v813 = vadd.f32 %v679, %v812
      %v814 = vpop.f32.mrf.mxu0
      %v815 = vadd.f32 %v681, %v814
      %816 = vmatmul.bf16.gmra.mxu0 %v440
      %v817 = vpop.f32.mrf.mxu0
      %v818 = vadd.f32 %v684, %v817
      %v819 = vpop.f32.mrf.mxu0
      %v820 = vadd.f32 %v686, %v819
      %821 = vmatmul.bf16.gmra.mxu0 %v442
      %v822 = vpop.f32.mrf.mxu0
      %v823 = vadd.f32 %v689, %v822
      %v824 = vpop.f32.mrf.mxu0
      %v825 = vadd.f32 %v691, %v824
      %826 = vmatmul.bf16.gmra.mxu0 %v444
      %v827 = vpop.f32.mrf.mxu0
      %v828 = vadd.f32 %v694, %v827
      %v829 = vpop.f32.mrf.mxu0
      %v830 = vadd.f32 %v696, %v829
      %831 = vmatmul.bf16.gmra.mxu0 %v446
      %v832 = vpop.f32.mrf.mxu0
      %v833 = vadd.f32 %v699, %v832
      %v834 = vpop.f32.mrf.mxu0
      %v835 = vadd.f32 %v701, %v834
      %836 = vmatmul.bf16.gmra.mxu0 %v448
      %v837 = vpop.f32.mrf.mxu0
      %v838 = vadd.f32 %v704, %v837
      %v839 = vpop.f32.mrf.mxu0
      %v840 = vadd.f32 %v706, %v839
      %841 = vmatmul.bf16.gmra.mxu0 %v450
      %v842 = vpop.f32.mrf.mxu0
      %v843 = vadd.f32 %v709, %v842
      %v844 = vpop.f32.mrf.mxu0
      %v845 = vadd.f32 %v711, %v844
      %846 = vmatmul.bf16.gmra.mxu0 %v452
      %v847 = vpop.f32.mrf.mxu0
      %v848 = vadd.f32 %v714, %v847
      %v849 = vpop.f32.mrf.mxu0
      %v850 = vadd.f32 %v716, %v849
      %851 = vmatmul.bf16.gmra.mxu0 %v454
      %v852 = vpop.f32.mrf.mxu0
      %v853 = vadd.f32 %v719, %v852
      %v854 = vpop.f32.mrf.mxu0
      %v855 = vadd.f32 %v721, %v854
      %856 = vmatmul.bf16.gmra.mxu0 %v456
      %v857 = vpop.f32.mrf.mxu0
      %v858 = vadd.f32 %v724, %v857
      %v859 = vpop.f32.mrf.mxu0
      %v860 = vadd.f32 %v726, %v859
      %861 = vmatmul.bf16.gmra.mxu0 %v458
      %v862 = vpop.f32.mrf.mxu0
      %v863 = vadd.f32 %v729, %v862
      %v864 = vpop.f32.mrf.mxu0
      %v865 = vadd.f32 %v731, %v864
      %866 = vmatmul.bf16.gmra.mxu0 %v460
      %v867 = vpop.f32.mrf.mxu0
      %v868 = vadd.f32 %v734, %v867
      %v869 = vpop.f32.mrf.mxu0
      %v870 = vadd.f32 %v736, %v869
      %871 = vmatmul.bf16.gmra.mxu0 %v462
      %v872 = vpop.f32.mrf.mxu0
      %v873 = vadd.f32 %v739, %v872
      %v874 = vpop.f32.mrf.mxu0
      %v875 = vadd.f32 %v741, %v874
      %876 = vdwg.mxu0
      %v877 = vmax.f32 %v753, 0.0
      %v878 = vmax.f32 %v755, 0.0
      %v879 = vmax.f32 %v758, 0.0
      %v880 = vmax.f32 %v760, 0.0
      %v881 = vmax.f32 %v763, 0.0
      %v882 = vmax.f32 %v765, 0.0
      %v883 = vmax.f32 %v768, 0.0
      %v884 = vmax.f32 %v770, 0.0
      %v885 = vmax.f32 %v773, 0.0
      %v886 = vmax.f32 %v775, 0.0
      %v887 = vmax.f32 %v778, 0.0
      %v888 = vmax.f32 %v780, 0.0
      %v889 = vmax.f32 %v783, 0.0
      %v890 = vmax.f32 %v785, 0.0
      %v891 = vmax.f32 %v788, 0.0
      %v892 = vmax.f32 %v790, 0.0
      %v893 = vmax.f32 %v793, 0.0
      %v894 = vmax.f32 %v795, 0.0
      %v895 = vmax.f32 %v798, 0.0
      %v896 = vmax.f32 %v800, 0.0
      %v897 = vmax.f32 %v803, 0.0
      %v898 = vmax.f32 %v805, 0.0
      %v899 = vmax.f32 %v808, 0.0
      %v900 = vmax.f32 %v810, 0.0
      %v901 = vmax.f32 %v813, 0.0
      %v902 = vmax.f32 %v815, 0.0
      %v903 = vmax.f32 %v818, 0.0
      %v904 = vmax.f32 %v820, 0.0
      %v905 = vmax.f32 %v823, 0.0
      %v906 = vmax.f32 %v825, 0.0
      %v907 = vmax.f32 %v828, 0.0
      %v908 = vmax.f32 %v830, 0.0
      %v909 = vmax.f32 %v833, 0.0
      %v910 = vmax.f32 %v835, 0.0
      %v911 = vmax.f32 %v838, 0.0
      %v912 = vmax.f32 %v840, 0.0
      %v913 = vmax.f32 %v843, 0.0
      %v914 = vmax.f32 %v845, 0.0
      %v915 = vmax.f32 %v848, 0.0
      %v916 = vmax.f32 %v850, 0.0
      %v917 = vmax.f32 %v853, 0.0
      %v918 = vmax.f32 %v855, 0.0
      %v919 = vmax.f32 %v858, 0.0
      %v920 = vmax.f32 %v860, 0.0
      %v921 = vmax.f32 %v863, 0.0
      %v922 = vmax.f32 %v865, 0.0
      %v923 = vmax.f32 %v868, 0.0
      %v924 = vmax.f32 %v870, 0.0
      %v925 = vmax.f32 %v873, 0.0
      %v926 = vmax.f32 %v875, 0.0
      %v927 = vpack.c.bf16 %v877, %v877
      %v928 = vpack.c.bf16 %v878, %v878
      %v929 = vpack.c.bf16 %v879, %v879
      %v930 = vpack.c.bf16 %v880, %v880
      %v931 = vpack.c.bf16 %v881, %v881
      %v932 = vpack.c.bf16 %v882, %v882
      %v933 = vpack.c.bf16 %v883, %v883
      %v934 = vpack.c.bf16 %v884, %v884
      %v935 = vpack.c.bf16 %v885, %v885
      %v936 = vpack.c.bf16 %v886, %v886
      %v937 = vpack.c.bf16 %v887, %v887
      %v938 = vpack.c.bf16 %v888, %v888
      %v939 = vpack.c.bf16 %v889, %v889
      %v940 = vpack.c.bf16 %v890, %v890
      %v941 = vpack.c.bf16 %v891, %v891
      %v942 = vpack.c.bf16 %v892, %v892
      %v943 = vpack.c.bf16 %v893, %v893
      %v944 = vpack.c.bf16 %v894, %v894
      %v945 = vpack.c.bf16 %v895, %v895
      %v946 = vpack.c.bf16 %v896, %v896
      %v947 = vpack.c.bf16 %v897, %v897
      %v948 = vpack.c.bf16 %v898, %v898
      %v949 = vpack.c.bf16 %v899, %v899
      %v950 = vpack.c.bf16 %v900, %v900
      %v951 = vpack.c.bf16 %v901, %v901
      %v952 = vpack.c.bf16 %v902, %v902
      %v953 = vpack.c.bf16 %v903, %v903
      %v954 = vpack.c.bf16 %v904, %v904
      %v955 = vpack.c.bf16 %v905, %v905
      %v956 = vpack.c.bf16 %v906, %v906
      %v957 = vpack.c.bf16 %v907, %v907
      %v958 = vpack.c.bf16 %v908, %v908
      %v959 = vpack.c.bf16 %v909, %v909
      %v960 = vpack.c.bf16 %v910, %v910
      %v961 = vpack.c.bf16 %v911, %v911
      %v962 = vpack.c.bf16 %v912, %v912
      %v963 = vpack.c.bf16 %v913, %v913
      %v964 = vpack.c.bf16 %v914, %v914
      %v965 = vpack.c.bf16 %v915, %v915
      %v966 = vpack.c.bf16 %v916, %v916
      %v967 = vpack.c.bf16 %v917, %v917
      %v968 = vpack.c.bf16 %v918, %v918
      %v969 = vpack.c.bf16 %v919, %v919
      %v970 = vpack.c.bf16 %v920, %v920
      %v971 = vpack.c.bf16 %v921, %v921
      %v972 = vpack.c.bf16 %v922, %v922
      %v973 = vpack.c.bf16 %v923, %v923
      %v974 = vpack.c.bf16 %v924, %v924
      %v975 = vpack.c.bf16 %v925, %v925
      %v976 = vpack.c.bf16 %v926, %v926
      %vm977 = vcmask 257024
      %978 = vst.msk [vmem:[%s175] sm:$0xf] %vm977, %v927
      %979 = vst.msk [vmem:[%s175 + $0x4] sm:$0xf] %vm977, %v928
      %980 = vst.msk [vmem:[%s175 + $0x8] sm:$0xf] %vm977, %v929
      %981 = vst.msk [vmem:[%s175 + $0xc] sm:$0xf] %vm977, %v930
      %982 = vst.msk [vmem:[%s175 + $0x10] sm:$0xf] %vm977, %v931
      %983 = vst.msk [vmem:[%s175 + $0x14] sm:$0xf] %vm977, %v932
      %984 = vst.msk [vmem:[%s175 + $0x18] sm:$0xf] %vm977, %v933
      %985 = vst.msk [vmem:[%s175 + $0x1c] sm:$0xf] %vm977, %v934
      %986 = vst.msk [vmem:[%s175 + $0x20] sm:$0xf] %vm977, %v935
      %987 = vst.msk [vmem:[%s175 + $0x24] sm:$0xf] %vm977, %v936
      %988 = vst.msk [vmem:[%s175 + $0x28] sm:$0xf] %vm977, %v937
      %989 = vst.msk [vmem:[%s175 + $0x2c] sm:$0xf] %vm977, %v938
      %990 = vst.msk [vmem:[%s175 + $0x30] sm:$0xf] %vm977, %v939
      %991 = vst.msk [vmem:[%s175 + $0x34] sm:$0xf] %vm977, %v940
      %992 = vst.msk [vmem:[%s175 + $0x38] sm:$0xf] %vm977, %v941
      %993 = vst.msk [vmem:[%s175 + $0x3c] sm:$0xf] %vm977, %v942
      %994 = vst.msk [vmem:[%s175 + $0x40] sm:$0xf] %vm977, %v943
      %995 = vst.msk [vmem:[%s175 + $0x44] sm:$0xf] %vm977, %v944
      %996 = vst.msk [vmem:[%s175 + $0x48] sm:$0xf] %vm977, %v945
      %997 = vst.msk [vmem:[%s175 + $0x4c] sm:$0xf] %vm977, %v946
      %998 = vst.msk [vmem:[%s175 + $0x50] sm:$0xf] %vm977, %v947
      %999 = vst.msk [vmem:[%s175 + $0x54] sm:$0xf] %vm977, %v948
      %1000 = vst.msk [vmem:[%s175 + $0x58] sm:$0xf] %vm977, %v949
      %1001 = vst.msk [vmem:[%s175 + $0x5c] sm:$0xf] %vm977, %v950
      %1002 = vst.msk [vmem:[%s175 + $0x60] sm:$0xf] %vm977, %v951
      %1003 = vst.msk [vmem:[%s175 + $0x64] sm:$0xf] %vm977, %v952
      %1004 = vst.msk [vmem:[%s175 + $0x68] sm:$0xf] %vm977, %v953
      %1005 = vst.msk [vmem:[%s175 + $0x6c] sm:$0xf] %vm977, %v954
      %1006 = vst.msk [vmem:[%s175 + $0x70] sm:$0xf] %vm977, %v955
      %1007 = vst.msk [vmem:[%s175 + $0x74] sm:$0xf] %vm977, %v956
      %1008 = vst.msk [vmem:[%s175 + $0x78] sm:$0xf] %vm977, %v957
      %1009 = vst.msk [vmem:[%s175 + $0x7c] sm:$0xf] %vm977, %v958
      %1010 = vst.msk [vmem:[%s175 + $0x80] sm:$0xf] %vm977, %v959
      %1011 = vst.msk [vmem:[%s175 + $0x84] sm:$0xf] %vm977, %v960
      %1012 = vst.msk [vmem:[%s175 + $0x88] sm:$0xf] %vm977, %v961
      %1013 = vst.msk [vmem:[%s175 + $0x8c] sm:$0xf] %vm977, %v962
      %1014 = vst.msk [vmem:[%s175 + $0x90] sm:$0xf] %vm977, %v963
      %1015 = vst.msk [vmem:[%s175 + $0x94] sm:$0xf] %vm977, %v964
      %1016 = vst.msk [vmem:[%s175 + $0x98] sm:$0xf] %vm977, %v965
      %1017 = vst.msk [vmem:[%s175 + $0x9c] sm:$0xf] %vm977, %v966
      %1018 = vst.msk [vmem:[%s175 + $0xa0] sm:$0xf] %vm977, %v967
      %1019 = vst.msk [vmem:[%s175 + $0xa4] sm:$0xf] %vm977, %v968
      %1020 = vst.msk [vmem:[%s175 + $0xa8] sm:$0xf] %vm977, %v969
      %1021 = vst.msk [vmem:[%s175 + $0xac] sm:$0xf] %vm977, %v970
      %1022 = vst.msk [vmem:[%s175 + $0xb0] sm:$0xf] %vm977, %v971
      %1023 = vst.msk [vmem:[%s175 + $0xb4] sm:$0xf] %vm977, %v972
      %1024 = vst.msk [vmem:[%s175 + $0xb8] sm:$0xf] %vm977, %v973
      %1025 = vst.msk [vmem:[%s175 + $0xbc] sm:$0xf] %vm977, %v974
      %1026 = vst.msk [vmem:[%s175 + $0xc0] sm:$0xf] %vm977, %v975
      %1027 = vst.msk [vmem:[%s175 + $0xc4] sm:$0xf] %vm977, %v976
      %s1028 = smul.u32 50, %s14
      %p1029 = scmp.lt.s32.totalorder %s1028, 99
      %s1030 = scalar_select %p1029, %s1028, 99
      %s1031 = smul.addr %s1030, 4
      %s1032 = scalar_lea.vmem %s3, %s1031
      // Predicated region
      $region33: #{net_forward.3} parent=31 // pred_check
        %p1033 = pneg %p100
      $region34: #{net_forward.3} parent=31 // pred_check_branch
        %1035 = sbr.rel (%p1033) target = $region36
      $region35: #{net_forward.3} parent=31 // pred_region
        %s1036 = smul.u32 50, %s14
      $region36: #{net_forward.3} parent=31 // pred_fallthru
        _
    $region32: #{net_forward.3} parent=5 // pred_fallthru
      _
    %p1037 = scmp.le.s32.totalorder 2, %s9
    // Predicated region
    $region37: #{net_forward.3} parent=5 // pred_check
      %p1038 = pneg %p1037
    $region38: #{net_forward.3} parent=5 // pred_check_branch
      %1040 = sbr.rel (%p1038) target = $region40
    $region39: #{net_forward.3} parent=5 // pred_region
      %s1041 = ssub.s32 %s9, 2
      // Predicated region
      $region41: #{net_forward.3} parent=39 // pred_check
        %p1042 = pneg %p106
      $region42: #{net_forward.3} parent=39 // pred_check_branch
        %1044 = sbr.rel (%p1042) target = $region44
      $region43: #{net_forward.3} parent=39 // pred_region
        %s1045 = smul.u32 50, %s15
        %p1046 = scmp.lt.s32.totalorder %s1045, 99
        %s1047 = scalar_select %p1046, %s1045, 99
        %s1048 = smul.addr %s1047, 4
        %s1049 = scalar_lea.vmem %s3, %s1048
      $region44: #{net_forward.3} parent=39 // pred_fallthru
        _
    $region40: #{net_forward.3} parent=5 // pred_fallthru
      _
  $region6: #{net_forward.3} parent=0 // loop_footer
    %s13 = sadd.s32 1, %s9
  $region7: #{net_forward.3} parent=0 // loop_footer_branch
    %8 = sbr.rel target = $region3
  $region8: #{net_forward.3} parent=0 // loop_exit
    _

// kernel: net_forward.4
$region0: #{net_forward.4}
  #allocation0 [shape = 'u32[]', space=smem, size = 0x4, offset = 0x4, fixed_abs, tag = 'smem constant byte address 0x4 - core index']
  #allocation1 [shape = 'u32[72,128]{1,0:T(1,128)}', space=vmem, size = 0x9000, scoped, tag = 'internal scratch']
  %s0 = inlined_call_operand.vmem [shape: bf16[176,512], index: 0, kind: input, shape index: {}]
  %s1 = inlined_call_operand.vmem [shape: bf16[512,64], index: 1, kind: input, shape index: {}]
  %s2 = inlined_call_operand.vmem [shape: f32[1,64], index: 2, kind: input, shape index: {}]
  %s3 = inlined_call_operand.vmem [shape: bf16[176,64], index: 3, kind: output, shape index: {}]
  %s4 = sld [smem:[#allocation0]]
  $region22: #{net_forward.4} parent=0
    _
  %s6 = ssub.s32 1, %s4
  %s7 = scalar_select 0, %s6, %s4
  // Predicated region
  $region2: #{net_forward.4} parent=0 // pred_check
    _
  $region3: #{net_forward.4} parent=0 // pred_check_branch
    %9 = sbr.rel (0) target = $region5
  $region4: #{net_forward.4} parent=0 // pred_region
    _
  $region5: #{net_forward.4} parent=0 // pred_fallthru
    _
  // Predicated region
  $region6: #{net_forward.4} parent=0 // pred_check
    _
  $region7: #{net_forward.4} parent=0 // pred_check_branch
    %11 = sbr.rel (0) target = $region9
  $region8: #{net_forward.4} parent=0 // pred_region
    _
  $region9: #{net_forward.4} parent=0 // pred_fallthru
    _
  // Predicated region
  $region10: #{net_forward.4} parent=0 // pred_check
    _
  $region11: #{net_forward.4} parent=0 // pred_check_branch
    %13 = sbr.rel (0) target = $region13
  $region12: #{net_forward.4} parent=0 // pred_region
    _
  $region13: #{net_forward.4} parent=0 // pred_fallthru
    _
  %v14 = vld [vmem:[%s0] sm:$0xff]
  %v15 = vld [vmem:[%s0 + $0x8] sm:$0xff]
  %v16 = vld [vmem:[%s0 + $0x10] sm:$0xff]
  %v17 = vld [vmem:[%s0 + $0x18] sm:$0xff]
  %v18 = vld [vmem:[%s0 + $0x20] sm:$0xff]
  %v19 = vld [vmem:[%s0 + $0x28] sm:$0xff]
  %v20 = vld [vmem:[%s0 + $0x30] sm:$0xff]
  %v21 = vld [vmem:[%s0 + $0x38] sm:$0xff]
  %v22 = vld [vmem:[%s0 + $0x40] sm:$0xff]
  %v23 = vld [vmem:[%s0 + $0x48] sm:$0xff]
  %v24 = vld [vmem:[%s0 + $0x50] sm:$0xff]
  %v25 = vld [vmem:[%s0 + $0x58] sm:$0xff]
  %v26 = vld [vmem:[%s0 + $0x60] sm:$0xff]
  %v27 = vld [vmem:[%s0 + $0x68] sm:$0xff]
  %v28 = vld [vmem:[%s0 + $0x70] sm:$0xff]
  %v29 = vld [vmem:[%s0 + $0x78] sm:$0xff]
  %v30 = vld [vmem:[%s0 + $0x80] sm:$0xff]
  %v31 = vld [vmem:[%s0 + $0x88] sm:$0xff]
  %v32 = vld [vmem:[%s0 + $0x90] sm:$0xff]
  %v33 = vld [vmem:[%s0 + $0x98] sm:$0xff]
  %v34 = vld [vmem:[%s0 + $0xa0] sm:$0xff]
  %v35 = vld [vmem:[%s0 + $0xa8] sm:$0xff]
  %v36 = vld [vmem:[%s0 + $0xb0] sm:$0xff]
  %v37 = vld [vmem:[%s0 + $0xb8] sm:$0xff]
  %v38 = vld [vmem:[%s0 + $0xc0] sm:$0xff]
  %v39 = vld [vmem:[%s0 + $0xc8] sm:$0xff]
  %v40 = vld [vmem:[%s0 + $0xd0] sm:$0xff]
  %v41 = vld [vmem:[%s0 + $0xd8] sm:$0xff]
  %v42 = vld [vmem:[%s0 + $0xe0] sm:$0xff]
  %v43 = vld [vmem:[%s0 + $0xe8] sm:$0xff]
  %v44 = vld [vmem:[%s0 + $0xf0] sm:$0xff]
  %v45 = vld [vmem:[%s0 + $0xf8] sm:$0xff]
  %v46 = vld [vmem:[%s0 + $0x100] sm:$0xff]
  %v47 = vld [vmem:[%s0 + $0x108] sm:$0xff]
  %v48 = vld [vmem:[%s0 + $0x110] sm:$0xff]
  %v49 = vld [vmem:[%s0 + $0x118] sm:$0xff]
  %v50 = vld [vmem:[%s0 + $0x120] sm:$0xff]
  %v51 = vld [vmem:[%s0 + $0x128] sm:$0xff]
  %v52 = vld [vmem:[%s0 + $0x130] sm:$0xff]
  %v53 = vld [vmem:[%s0 + $0x138] sm:$0xff]
  %v54 = vld [vmem:[%s0 + $0x140] sm:$0xff]
  %v55 = vld [vmem:[%s0 + $0x148] sm:$0xff]
  %v56 = vld [vmem:[%s0 + $0x150] sm:$0xff]
  %v57 = vld [vmem:[%s0 + $0x158] sm:$0xff]
  %v58 = vld [vmem:[%s1] sm:$0xf]
  %v59 = vld [vmem:[%s1 + $0x4] sm:$0xf]
  %v60 = vld [vmem:[%s1 + $0x8] sm:$0xf]
  %v61 = vld [vmem:[%s1 + $0xc] sm:$0xf]
  %v62 = vld [vmem:[%s1 + $0x10] sm:$0xf]
  %v63 = vld [vmem:[%s1 + $0x14] sm:$0xf]
  %v64 = vld [vmem:[%s1 + $0x18] sm:$0xf]
  %v65 = vld [vmem:[%s1 + $0x1c] sm:$0xf]
  %v66 = vld [vmem:[%s1 + $0x20] sm:$0xf]
  %v67 = vld [vmem:[%s1 + $0x24] sm:$0xf]
  %v68 = vld [vmem:[%s1 + $0x28] sm:$0xf]
  %v69 = vld [vmem:[%s1 + $0x2c] sm:$0xf]
  %v70 = vld [vmem:[%s1 + $0x30] sm:$0xf]
  %v71 = vld [vmem:[%s1 + $0x34] sm:$0xf]
  %v72 = vld [vmem:[%s1 + $0x38] sm:$0xf]
  %v73 = vld [vmem:[%s1 + $0x3c] sm:$0xf]
  %v74 = vld [vmem:[%s1 + $0x40] sm:$0xf]
  %v75 = vld [vmem:[%s1 + $0x44] sm:$0xf]
  %v76 = vld [vmem:[%s1 + $0x48] sm:$0xf]
  %v77 = vld [vmem:[%s1 + $0x4c] sm:$0xf]
  %v78 = vld [vmem:[%s1 + $0x50] sm:$0xf]
  %v79 = vld [vmem:[%s1 + $0x54] sm:$0xf]
  %v80 = vld [vmem:[%s1 + $0x58] sm:$0xf]
  %v81 = vld [vmem:[%s1 + $0x5c] sm:$0xf]
  %v82 = vld [vmem:[%s1 + $0x60] sm:$0xf]
  %v83 = vld [vmem:[%s1 + $0x64] sm:$0xf]
  %v84 = vld [vmem:[%s1 + $0x68] sm:$0xf]
  %v85 = vld [vmem:[%s1 + $0x6c] sm:$0xf]
  %v86 = vld [vmem:[%s1 + $0x70] sm:$0xf]
  %v87 = vld [vmem:[%s1 + $0x74] sm:$0xf]
  %v88 = vld [vmem:[%s1 + $0x78] sm:$0xf]
  %v89 = vld [vmem:[%s1 + $0x7c] sm:$0xf]
  %v90 = vld [vmem:[%s1 + $0x80] sm:$0xf]
  %v91 = vld [vmem:[%s1 + $0x84] sm:$0xf]
  %v92 = vld [vmem:[%s1 + $0x88] sm:$0xf]
  %v93 = vld [vmem:[%s1 + $0x8c] sm:$0xf]
  %v94 = vld [vmem:[%s1 + $0x90] sm:$0xf]
  %v95 = vld [vmem:[%s1 + $0x94] sm:$0xf]
  %v96 = vld [vmem:[%s1 + $0x98] sm:$0xf]
  %v97 = vld [vmem:[%s1 + $0x9c] sm:$0xf]
  %v98 = vld [vmem:[%s1 + $0xa0] sm:$0xf]
  %v99 = vld [vmem:[%s1 + $0xa4] sm:$0xf]
  %v100 = vld [vmem:[%s1 + $0xa8] sm:$0xf]
  %v101 = vld [vmem:[%s1 + $0xac] sm:$0xf]
  %v102 = vld [vmem:[%s1 + $0xb0] sm:$0xf]
  %v103 = vld [vmem:[%s1 + $0xb4] sm:$0xf]
  %v104 = vld [vmem:[%s1 + $0xb8] sm:$0xf]
  %v105 = vld [vmem:[%s1 + $0xbc] sm:$0xf]
  %v106 = vld [vmem:[%s1 + $0xc0] sm:$0xf]
  %v107 = vld [vmem:[%s1 + $0xc4] sm:$0xf]
  %v108 = vld [vmem:[%s1 + $0xc8] sm:$0xf]
  %v109 = vld [vmem:[%s1 + $0xcc] sm:$0xf]
  %v110 = vld [vmem:[%s1 + $0xd0] sm:$0xf]
  %v111 = vld [vmem:[%s1 + $0xd4] sm:$0xf]
  %v112 = vld [vmem:[%s1 + $0xd8] sm:$0xf]
  %v113 = vld [vmem:[%s1 + $0xdc] sm:$0xf]
  %v114 = vld [vmem:[%s1 + $0xe0] sm:$0xf]
  %v115 = vld [vmem:[%s1 + $0xe4] sm:$0xf]
  %v116 = vld [vmem:[%s1 + $0xe8] sm:$0xf]
  %v117 = vld [vmem:[%s1 + $0xec] sm:$0xf]
  %v118 = vld [vmem:[%s1 + $0xf0] sm:$0xf]
  %v119 = vld [vmem:[%s1 + $0xf4] sm:$0xf]
  %v120 = vld [vmem:[%s1 + $0xf8] sm:$0xf]
  %v121 = vld [vmem:[%s1 + $0xfc] sm:$0xf]
  %v122 = vld [vmem:[%s2] sm:$0x1]
  %v124 = vperm.slane %v122, 0
  %v170 = vunpack.c.l.b16 %v14
  %v171 = vunpack.c.h.b16 %v14
  %v172 = vunpack.c.l.b16 %v15
  %v173 = vunpack.c.h.b16 %v15
  %v174 = vunpack.c.l.b16 %v16
  %v175 = vunpack.c.h.b16 %v16
  %v176 = vunpack.c.l.b16 %v17
  %v177 = vunpack.c.h.b16 %v17
  %v178 = vunpack.c.l.b16 %v18
  %v179 = vunpack.c.h.b16 %v18
  %v180 = vunpack.c.l.b16 %v19
  %v181 = vunpack.c.h.b16 %v19
  %v182 = vunpack.c.l.b16 %v20
  %v183 = vunpack.c.h.b16 %v20
  %v184 = vunpack.c.l.b16 %v21
  %v185 = vunpack.c.h.b16 %v21
  %v186 = vunpack.c.l.b16 %v22
  %v187 = vunpack.c.h.b16 %v22
  %v188 = vunpack.c.l.b16 %v23
  %v189 = vunpack.c.h.b16 %v23
  %v190 = vunpack.c.l.b16 %v24
  %v191 = vunpack.c.h.b16 %v24
  %v192 = vunpack.c.l.b16 %v25
  %v193 = vunpack.c.h.b16 %v25
  %v194 = vunpack.c.l.b16 %v26
  %v195 = vunpack.c.h.b16 %v26
  %v196 = vunpack.c.l.b16 %v27
  %v197 = vunpack.c.h.b16 %v27
  %v198 = vunpack.c.l.b16 %v28
  %v199 = vunpack.c.h.b16 %v28
  %v200 = vunpack.c.l.b16 %v29
  %v201 = vunpack.c.h.b16 %v29
  %v202 = vunpack.c.l.b16 %v30
  %v203 = vunpack.c.h.b16 %v30
  %v204 = vunpack.c.l.b16 %v31
  %v205 = vunpack.c.h.b16 %v31
  %v206 = vunpack.c.l.b16 %v32
  %v207 = vunpack.c.h.b16 %v32
  %v208 = vunpack.c.l.b16 %v33
  %v209 = vunpack.c.h.b16 %v33
  %v210 = vunpack.c.l.b16 %v34
  %v211 = vunpack.c.h.b16 %v34
  %v212 = vunpack.c.l.b16 %v35
  %v213 = vunpack.c.h.b16 %v35
  %v214 = vunpack.c.l.b16 %v36
  %v215 = vunpack.c.h.b16 %v36
  %v216 = vunpack.c.l.b16 %v37
  %v217 = vunpack.c.h.b16 %v37
  %v218 = vunpack.c.l.b16 %v38
  %v219 = vunpack.c.h.b16 %v38
  %v220 = vunpack.c.l.b16 %v39
  %v221 = vunpack.c.h.b16 %v39
  %v222 = vunpack.c.l.b16 %v40
  %v223 = vunpack.c.h.b16 %v40
  %v224 = vunpack.c.l.b16 %v41
  %v225 = vunpack.c.h.b16 %v41
  %v226 = vunpack.c.l.b16 %v42
  %v227 = vunpack.c.h.b16 %v42
  %v228 = vunpack.c.l.b16 %v43
  %v229 = vunpack.c.h.b16 %v43
  %v230 = vunpack.c.l.b16 %v44
  %v231 = vunpack.c.h.b16 %v44
  %v232 = vunpack.c.l.b16 %v45
  %v233 = vunpack.c.h.b16 %v45
  %v234 = vunpack.c.l.b16 %v46
  %v235 = vunpack.c.h.b16 %v46
  %v236 = vunpack.c.l.b16 %v47
  %v237 = vunpack.c.h.b16 %v47
  %v238 = vunpack.c.l.b16 %v48
  %v239 = vunpack.c.h.b16 %v48
  %v240 = vunpack.c.l.b16 %v49
  %v241 = vunpack.c.h.b16 %v49
  %v242 = vunpack.c.l.b16 %v50
  %v243 = vunpack.c.h.b16 %v50
  %v244 = vunpack.c.l.b16 %v51
  %v245 = vunpack.c.h.b16 %v51
  %v246 = vunpack.c.l.b16 %v52
  %v247 = vunpack.c.h.b16 %v52
  %v248 = vunpack.c.l.b16 %v53
  %v249 = vunpack.c.h.b16 %v53
  %v250 = vunpack.c.l.b16 %v54
  %v251 = vunpack.c.h.b16 %v54
  %v252 = vunpack.c.l.b16 %v55
  %v253 = vunpack.c.h.b16 %v55
  %v254 = vunpack.c.l.b16 %v56
  %v255 = vunpack.c.h.b16 %v56
  %v256 = vunpack.c.l.b16 %v57
  %v257 = vunpack.c.h.b16 %v57
  %v258 = vpack.c.b16 %v174, %v170
  %v259 = vpack.c.b16 %v175, %v171
  %v260 = vpack.c.b16 %v176, %v172
  %v261 = vpack.c.b16 %v177, %v173
  %v262 = vpack.c.b16 %v182, %v178
  %v263 = vpack.c.b16 %v183, %v179
  %v264 = vpack.c.b16 %v184, %v180
  %v265 = vpack.c.b16 %v185, %v181
  %v266 = vpack.c.b16 %v190, %v186
  %v267 = vpack.c.b16 %v191, %v187
  %v268 = vpack.c.b16 %v192, %v188
  %v269 = vpack.c.b16 %v193, %v189
  %v270 = vpack.c.b16 %v198, %v194
  %v271 = vpack.c.b16 %v199, %v195
  %v272 = vpack.c.b16 %v200, %v196
  %v273 = vpack.c.b16 %v201, %v197
  %v274 = vpack.c.b16 %v206, %v202
  %v275 = vpack.c.b16 %v207, %v203
  %v276 = vpack.c.b16 %v208, %v204
  %v277 = vpack.c.b16 %v209, %v205
  %v278 = vpack.c.b16 %v214, %v210
  %v279 = vpack.c.b16 %v215, %v211
  %v280 = vpack.c.b16 %v216, %v212
  %v281 = vpack.c.b16 %v217, %v213
  %v282 = vpack.c.b16 %v222, %v218
  %v283 = vpack.c.b16 %v223, %v219
  %v284 = vpack.c.b16 %v224, %v220
  %v285 = vpack.c.b16 %v225, %v221
  %v286 = vpack.c.b16 %v230, %v226
  %v287 = vpack.c.b16 %v231, %v227
  %v288 = vpack.c.b16 %v232, %v228
  %v289 = vpack.c.b16 %v233, %v229
  %v290 = vpack.c.b16 %v238, %v234
  %v291 = vpack.c.b16 %v239, %v235
  %v292 = vpack.c.b16 %v240, %v236
  %v293 = vpack.c.b16 %v241, %v237
  %v294 = vpack.c.b16 %v246, %v242
  %v295 = vpack.c.b16 %v247, %v243
  %v296 = vpack.c.b16 %v248, %v244
  %v297 = vpack.c.b16 %v249, %v245
  %v298 = vpack.c.b16 %v254, %v250
  %v299 = vpack.c.b16 %v255, %v251
  %v300 = vpack.c.b16 %v256, %v252
  %v301 = vpack.c.b16 %v257, %v253
  %v410 = vunpack.c.l.b16 %v58
  %v411 = vunpack.c.l.b16 %v59
  %v412 = vunpack.c.l.b16 %v60
  %v413 = vunpack.c.l.b16 %v61
  %v414 = vunpack.c.l.b16 %v62
  %v415 = vunpack.c.l.b16 %v63
  %v416 = vunpack.c.l.b16 %v64
  %v417 = vunpack.c.l.b16 %v65
  %v418 = vunpack.c.l.b16 %v66
  %v419 = vunpack.c.l.b16 %v67
  %v420 = vunpack.c.l.b16 %v68
  %v421 = vunpack.c.l.b16 %v69
  %v422 = vunpack.c.l.b16 %v70
  %v423 = vunpack.c.l.b16 %v71
  %v424 = vunpack.c.l.b16 %v72
  %v425 = vunpack.c.l.b16 %v73
  %v426 = vunpack.c.l.b16 %v74
  %v427 = vunpack.c.l.b16 %v75
  %v428 = vunpack.c.l.b16 %v76
  %v429 = vunpack.c.l.b16 %v77
  %v430 = vunpack.c.l.b16 %v78
  %v431 = vunpack.c.l.b16 %v79
  %v432 = vunpack.c.l.b16 %v80
  %v433 = vunpack.c.l.b16 %v81
  %v434 = vunpack.c.l.b16 %v82
  %v435 = vunpack.c.l.b16 %v83
  %v436 = vunpack.c.l.b16 %v84
  %v437 = vunpack.c.l.b16 %v85
  %v438 = vunpack.c.l.b16 %v86
  %v439 = vunpack.c.l.b16 %v87
  %v440 = vunpack.c.l.b16 %v88
  %v441 = vunpack.c.l.b16 %v89
  %v442 = vunpack.c.l.b16 %v90
  %v443 = vunpack.c.l.b16 %v91
  %v444 = vunpack.c.l.b16 %v92
  %v445 = vunpack.c.l.b16 %v93
  %v446 = vunpack.c.l.b16 %v94
  %v447 = vunpack.c.l.b16 %v95
  %v448 = vunpack.c.l.b16 %v96
  %v449 = vunpack.c.l.b16 %v97
  %v450 = vunpack.c.l.b16 %v98
  %v451 = vunpack.c.l.b16 %v99
  %v452 = vunpack.c.l.b16 %v100
  %v453 = vunpack.c.l.b16 %v101
  %v454 = vunpack.c.l.b16 %v102
  %v455 = vunpack.c.l.b16 %v103
  %v456 = vunpack.c.l.b16 %v104
  %v457 = vunpack.c.l.b16 %v105
  %v458 = vunpack.c.l.b16 %v106
  %v459 = vunpack.c.l.b16 %v107
  %v460 = vunpack.c.l.b16 %v108
  %v461 = vunpack.c.l.b16 %v109
  %v462 = vunpack.c.l.b16 %v110
  %v463 = vunpack.c.l.b16 %v111
  %v464 = vunpack.c.l.b16 %v112
  %v465 = vunpack.c.l.b16 %v113
  %v466 = vunpack.c.l.b16 %v114
  %v467 = vunpack.c.l.b16 %v115
  %v468 = vunpack.c.l.b16 %v116
  %v469 = vunpack.c.l.b16 %v117
  %v470 = vunpack.c.l.b16 %v118
  %v471 = vunpack.c.l.b16 %v119
  %v472 = vunpack.c.l.b16 %v120
  %v473 = vunpack.c.l.b16 %v121
  %v474 = vpack.c.b16 %v411, %v410
  %v475 = vpack.c.b16 %v413, %v412
  %v476 = vpack.c.b16 %v415, %v414
  %v477 = vpack.c.b16 %v417, %v416
  %v478 = vpack.c.b16 %v419, %v418
  %v479 = vpack.c.b16 %v421, %v420
  %v480 = vpack.c.b16 %v423, %v422
  %v481 = vpack.c.b16 %v425, %v424
  %v482 = vpack.c.b16 %v427, %v426
  %v483 = vpack.c.b16 %v429, %v428
  %v484 = vpack.c.b16 %v431, %v430
  %v485 = vpack.c.b16 %v433, %v432
  %v486 = vpack.c.b16 %v435, %v434
  %v487 = vpack.c.b16 %v437, %v436
  %v488 = vpack.c.b16 %v439, %v438
  %v489 = vpack.c.b16 %v441, %v440
  %v490 = vpack.c.b16 %v443, %v442
  %v491 = vpack.c.b16 %v445, %v444
  %v492 = vpack.c.b16 %v447, %v446
  %v493 = vpack.c.b16 %v449, %v448
  %v494 = vpack.c.b16 %v451, %v450
  %v495 = vpack.c.b16 %v453, %v452
  %v496 = vpack.c.b16 %v455, %v454
  %v497 = vpack.c.b16 %v457, %v456
  %v498 = vpack.c.b16 %v459, %v458
  %v499 = vpack.c.b16 %v461, %v460
  %v500 = vpack.c.b16 %v463, %v462
  %v501 = vpack.c.b16 %v465, %v464
  %v502 = vpack.c.b16 %v467, %v466
  %v503 = vpack.c.b16 %v469, %v468
  %v504 = vpack.c.b16 %v471, %v470
  %v505 = vpack.c.b16 %v473, %v472
  %538 = vmatpush.bf16.msra.mxu0 %v481
  %539 = vmatpush.bf16.msra.mxu0 %v480
  %540 = vmatpush.bf16.msra.mxu0 %v479
  %541 = vmatpush.bf16.msra.mxu0 %v478
  %542 = vmatpush.bf16.msra.mxu0 %v477
  %543 = vmatpush.bf16.msra.mxu0 %v476
  %544 = vmatpush.bf16.msra.mxu0 %v475
  %545 = vmatpush.bf16.msra.mxu0 %v474
  %546 = vmatmul.bf16.gmra.mxu0 %v258
  %v547 = vpop.f32.mrf.mxu0
  %v548 = vadd.f32 %v124, %v547
  %v549 = vpop.f32.mrf.mxu0
  %v550 = vadd.f32 %v124, %v549
  %551 = vmatmul.bf16.gmra.mxu0 %v262
  %v552 = vpop.f32.mrf.mxu0
  %v553 = vadd.f32 %v124, %v552
  %v554 = vpop.f32.mrf.mxu0
  %v555 = vadd.f32 %v124, %v554
  %556 = vmatmul.bf16.gmra.mxu0 %v266
  %v557 = vpop.f32.mrf.mxu0
  %v558 = vadd.f32 %v124, %v557
  %v559 = vpop.f32.mrf.mxu0
  %v560 = vadd.f32 %v124, %v559
  %561 = vmatmul.bf16.gmra.mxu0 %v270
  %v562 = vpop.f32.mrf.mxu0
  %v563 = vadd.f32 %v124, %v562
  %v564 = vpop.f32.mrf.mxu0
  %v565 = vadd.f32 %v124, %v564
  %566 = vmatmul.bf16.gmra.mxu0 %v274
  %v567 = vpop.f32.mrf.mxu0
  %v568 = vadd.f32 %v124, %v567
  %v569 = vpop.f32.mrf.mxu0
  %v570 = vadd.f32 %v124, %v569
  %571 = vmatmul.bf16.gmra.mxu0 %v278
  %v572 = vpop.f32.mrf.mxu0
  %v573 = vadd.f32 %v124, %v572
  %v574 = vpop.f32.mrf.mxu0
  %v575 = vadd.f32 %v124, %v574
  %576 = vmatmul.bf16.gmra.mxu0 %v282
  %v577 = vpop.f32.mrf.mxu0
  %v578 = vadd.f32 %v124, %v577
  %v579 = vpop.f32.mrf.mxu0
  %v580 = vadd.f32 %v124, %v579
  %581 = vmatmul.bf16.gmra.mxu0 %v286
  %v582 = vpop.f32.mrf.mxu0
  %v583 = vadd.f32 %v124, %v582
  %v584 = vpop.f32.mrf.mxu0
  %v585 = vadd.f32 %v124, %v584
  %586 = vmatmul.bf16.gmra.mxu0 %v290
  %v587 = vpop.f32.mrf.mxu0
  %v588 = vadd.f32 %v124, %v587
  %v589 = vpop.f32.mrf.mxu0
  %v590 = vadd.f32 %v124, %v589
  %591 = vmatmul.bf16.gmra.mxu0 %v294
  %v592 = vpop.f32.mrf.mxu0
  %v593 = vadd.f32 %v124, %v592
  %v594 = vpop.f32.mrf.mxu0
  %v595 = vadd.f32 %v124, %v594
  %596 = vmatmul.bf16.gmra.mxu0 %v298
  %v597 = vpop.f32.mrf.mxu0
  %v598 = vadd.f32 %v124, %v597
  %v599 = vpop.f32.mrf.mxu0
  %v600 = vadd.f32 %v124, %v599
  %601 = vdwg.mxu0
  %602 = vmatpush.bf16.msra.mxu0 %v489
  %603 = vmatpush.bf16.msra.mxu0 %v488
  %604 = vmatpush.bf16.msra.mxu0 %v487
  %605 = vmatpush.bf16.msra.mxu0 %v486
  %606 = vmatpush.bf16.msra.mxu0 %v485
  %607 = vmatpush.bf16.msra.mxu0 %v484
  %608 = vmatpush.bf16.msra.mxu0 %v483
  %609 = vmatpush.bf16.msra.mxu0 %v482
  %610 = vmatmul.bf16.gmra.mxu0 %v259
  %v611 = vpop.f32.mrf.mxu0
  %v612 = vadd.f32 %v548, %v611
  %v613 = vpop.f32.mrf.mxu0
  %v614 = vadd.f32 %v550, %v613
  %615 = vmatmul.bf16.gmra.mxu0 %v263
  %v616 = vpop.f32.mrf.mxu0
  %v617 = vadd.f32 %v553, %v616
  %v618 = vpop.f32.mrf.mxu0
  %v619 = vadd.f32 %v555, %v618
  %620 = vmatmul.bf16.gmra.mxu0 %v267
  %v621 = vpop.f32.mrf.mxu0
  %v622 = vadd.f32 %v558, %v621
  %v623 = vpop.f32.mrf.mxu0
  %v624 = vadd.f32 %v560, %v623
  %625 = vmatmul.bf16.gmra.mxu0 %v271
  %v626 = vpop.f32.mrf.mxu0
  %v627 = vadd.f32 %v563, %v626
  %v628 = vpop.f32.mrf.mxu0
  %v629 = vadd.f32 %v565, %v628
  %630 = vmatmul.bf16.gmra.mxu0 %v275
  %v631 = vpop.f32.mrf.mxu0
  %v632 = vadd.f32 %v568, %v631
  %v633 = vpop.f32.mrf.mxu0
  %v634 = vadd.f32 %v570, %v633
  %635 = vmatmul.bf16.gmra.mxu0 %v279
  %v636 = vpop.f32.mrf.mxu0
  %v637 = vadd.f32 %v573, %v636
  %v638 = vpop.f32.mrf.mxu0
  %v639 = vadd.f32 %v575, %v638
  %640 = vmatmul.bf16.gmra.mxu0 %v283
  %v641 = vpop.f32.mrf.mxu0
  %v642 = vadd.f32 %v578, %v641
  %v643 = vpop.f32.mrf.mxu0
  %v644 = vadd.f32 %v580, %v643
  %645 = vmatmul.bf16.gmra.mxu0 %v287
  %v646 = vpop.f32.mrf.mxu0
  %v647 = vadd.f32 %v583, %v646
  %v648 = vpop.f32.mrf.mxu0
  %v649 = vadd.f32 %v585, %v648
  %650 = vmatmul.bf16.gmra.mxu0 %v291
  %v651 = vpop.f32.mrf.mxu0
  %v652 = vadd.f32 %v588, %v651
  %v653 = vpop.f32.mrf.mxu0
  %v654 = vadd.f32 %v590, %v653
  %655 = vmatmul.bf16.gmra.mxu0 %v295
  %v656 = vpop.f32.mrf.mxu0
  %v657 = vadd.f32 %v593, %v656
  %v658 = vpop.f32.mrf.mxu0
  %v659 = vadd.f32 %v595, %v658
  %660 = vmatmul.bf16.gmra.mxu0 %v299
  %v661 = vpop.f32.mrf.mxu0
  %v662 = vadd.f32 %v598, %v661
  %v663 = vpop.f32.mrf.mxu0
  %v664 = vadd.f32 %v600, %v663
  %665 = vdwg.mxu0
  %666 = vmatpush.bf16.msra.mxu0 %v497
  %667 = vmatpush.bf16.msra.mxu0 %v496
  %668 = vmatpush.bf16.msra.mxu0 %v495
  %669 = vmatpush.bf16.msra.mxu0 %v494
  %670 = vmatpush.bf16.msra.mxu0 %v493
  %671 = vmatpush.bf16.msra.mxu0 %v492
  %672 = vmatpush.bf16.msra.mxu0 %v491
  %673 = vmatpush.bf16.msra.mxu0 %v490
  %674 = vmatmul.bf16.gmra.mxu0 %v260
  %v675 = vpop.f32.mrf.mxu0
  %v676 = vadd.f32 %v612, %v675
  %v677 = vpop.f32.mrf.mxu0
  %v678 = vadd.f32 %v614, %v677
  %679 = vmatmul.bf16.gmra.mxu0 %v264
  %v680 = vpop.f32.mrf.mxu0
  %v681 = vadd.f32 %v617, %v680
  %v682 = vpop.f32.mrf.mxu0
  %v683 = vadd.f32 %v619, %v682
  %684 = vmatmul.bf16.gmra.mxu0 %v268
  %v685 = vpop.f32.mrf.mxu0
  %v686 = vadd.f32 %v622, %v685
  %v687 = vpop.f32.mrf.mxu0
  %v688 = vadd.f32 %v624, %v687
  %689 = vmatmul.bf16.gmra.mxu0 %v272
  %v690 = vpop.f32.mrf.mxu0
  %v691 = vadd.f32 %v627, %v690
  %v692 = vpop.f32.mrf.mxu0
  %v693 = vadd.f32 %v629, %v692
  %694 = vmatmul.bf16.gmra.mxu0 %v276
  %v695 = vpop.f32.mrf.mxu0
  %v696 = vadd.f32 %v632, %v695
  %v697 = vpop.f32.mrf.mxu0
  %v698 = vadd.f32 %v634, %v697
  %699 = vmatmul.bf16.gmra.mxu0 %v280
  %v700 = vpop.f32.mrf.mxu0
  %v701 = vadd.f32 %v637, %v700
  %v702 = vpop.f32.mrf.mxu0
  %v703 = vadd.f32 %v639, %v702
  %704 = vmatmul.bf16.gmra.mxu0 %v284
  %v705 = vpop.f32.mrf.mxu0
  %v706 = vadd.f32 %v642, %v705
  %v707 = vpop.f32.mrf.mxu0
  %v708 = vadd.f32 %v644, %v707
  %709 = vmatmul.bf16.gmra.mxu0 %v288
  %v710 = vpop.f32.mrf.mxu0
  %v711 = vadd.f32 %v647, %v710
  %v712 = vpop.f32.mrf.mxu0
  %v713 = vadd.f32 %v649, %v712
  %714 = vmatmul.bf16.gmra.mxu0 %v292
  %v715 = vpop.f32.mrf.mxu0
  %v716 = vadd.f32 %v652, %v715
  %v717 = vpop.f32.mrf.mxu0
  %v718 = vadd.f32 %v654, %v717
  %719 = vmatmul.bf16.gmra.mxu0 %v296
  %v720 = vpop.f32.mrf.mxu0
  %v721 = vadd.f32 %v657, %v720
  %v722 = vpop.f32.mrf.mxu0
  %v723 = vadd.f32 %v659, %v722
  %724 = vmatmul.bf16.gmra.mxu0 %v300
  %v725 = vpop.f32.mrf.mxu0
  %v726 = vadd.f32 %v662, %v725
  %v727 = vpop.f32.mrf.mxu0
  %v728 = vadd.f32 %v664, %v727
  %729 = vdwg.mxu0
  %730 = vmatpush.bf16.msra.mxu0 %v505
  %731 = vmatpush.bf16.msra.mxu0 %v504
  %732 = vmatpush.bf16.msra.mxu0 %v503
  %733 = vmatpush.bf16.msra.mxu0 %v502
  %734 = vmatpush.bf16.msra.mxu0 %v501
  %735 = vmatpush.bf16.msra.mxu0 %v500
  %736 = vmatpush.bf16.msra.mxu0 %v499
  %737 = vmatpush.bf16.msra.mxu0 %v498
  %738 = vmatmul.bf16.gmra.mxu0 %v261
  %v739 = vpop.f32.mrf.mxu0
  %v740 = vadd.f32 %v676, %v739
  %v741 = vpop.f32.mrf.mxu0
  %v742 = vadd.f32 %v678, %v741
  %743 = vmatmul.bf16.gmra.mxu0 %v265
  %v744 = vpop.f32.mrf.mxu0
  %v745 = vadd.f32 %v681, %v744
  %v746 = vpop.f32.mrf.mxu0
  %v747 = vadd.f32 %v683, %v746
  %748 = vmatmul.bf16.gmra.mxu0 %v269
  %v749 = vpop.f32.mrf.mxu0
  %v750 = vadd.f32 %v686, %v749
  %v751 = vpop.f32.mrf.mxu0
  %v752 = vadd.f32 %v688, %v751
  %753 = vmatmul.bf16.gmra.mxu0 %v273
  %v754 = vpop.f32.mrf.mxu0
  %v755 = vadd.f32 %v691, %v754
  %v756 = vpop.f32.mrf.mxu0
  %v757 = vadd.f32 %v693, %v756
  %758 = vmatmul.bf16.gmra.mxu0 %v277
  %v759 = vpop.f32.mrf.mxu0
  %v760 = vadd.f32 %v696, %v759
  %v761 = vpop.f32.mrf.mxu0
  %v762 = vadd.f32 %v698, %v761
  %763 = vmatmul.bf16.gmra.mxu0 %v281
  %v764 = vpop.f32.mrf.mxu0
  %v765 = vadd.f32 %v701, %v764
  %v766 = vpop.f32.mrf.mxu0
  %v767 = vadd.f32 %v703, %v766
  %768 = vmatmul.bf16.gmra.mxu0 %v285
  %v769 = vpop.f32.mrf.mxu0
  %v770 = vadd.f32 %v706, %v769
  %v771 = vpop.f32.mrf.mxu0
  %v772 = vadd.f32 %v708, %v771
  %773 = vmatmul.bf16.gmra.mxu0 %v289
  %v774 = vpop.f32.mrf.mxu0
  %v775 = vadd.f32 %v711, %v774
  %v776 = vpop.f32.mrf.mxu0
  %v777 = vadd.f32 %v713, %v776
  %778 = vmatmul.bf16.gmra.mxu0 %v293
  %v779 = vpop.f32.mrf.mxu0
  %v780 = vadd.f32 %v716, %v779
  %v781 = vpop.f32.mrf.mxu0
  %v782 = vadd.f32 %v718, %v781
  %783 = vmatmul.bf16.gmra.mxu0 %v297
  %v784 = vpop.f32.mrf.mxu0
  %v785 = vadd.f32 %v721, %v784
  %v786 = vpop.f32.mrf.mxu0
  %v787 = vadd.f32 %v723, %v786
  %788 = vmatmul.bf16.gmra.mxu0 %v301
  %v789 = vpop.f32.mrf.mxu0
  %v790 = vadd.f32 %v726, %v789
  %v791 = vpop.f32.mrf.mxu0
  %v792 = vadd.f32 %v728, %v791
  %793 = vdwg.mxu0
  %v794 = vmax.f32 %v740, 0.0
  %v795 = vmax.f32 %v742, 0.0
  %v796 = vmax.f32 %v745, 0.0
  %v797 = vmax.f32 %v747, 0.0
  %v798 = vmax.f32 %v750, 0.0
  %v799 = vmax.f32 %v752, 0.0
  %v800 = vmax.f32 %v755, 0.0
  %v801 = vmax.f32 %v757, 0.0
  %v802 = vmax.f32 %v760, 0.0
  %v803 = vmax.f32 %v762, 0.0
  %v804 = vmax.f32 %v765, 0.0
  %v805 = vmax.f32 %v767, 0.0
  %v806 = vmax.f32 %v770, 0.0
  %v807 = vmax.f32 %v772, 0.0
  %v808 = vmax.f32 %v775, 0.0
  %v809 = vmax.f32 %v777, 0.0
  %v810 = vmax.f32 %v780, 0.0
  %v811 = vmax.f32 %v782, 0.0
  %v812 = vmax.f32 %v785, 0.0
  %v813 = vmax.f32 %v787, 0.0
  %v814 = vmax.f32 %v790, 0.0
  %v815 = vmax.f32 %v792, 0.0
  %v816 = vpack.c.bf16 %v794, %v794
  %v817 = vpack.c.bf16 %v795, %v795
  %v818 = vpack.c.bf16 %v796, %v796
  %v819 = vpack.c.bf16 %v797, %v797
  %v820 = vpack.c.bf16 %v798, %v798
  %v821 = vpack.c.bf16 %v799, %v799
  %v822 = vpack.c.bf16 %v800, %v800
  %v823 = vpack.c.bf16 %v801, %v801
  %v824 = vpack.c.bf16 %v802, %v802
  %v825 = vpack.c.bf16 %v803, %v803
  %v826 = vpack.c.bf16 %v804, %v804
  %v827 = vpack.c.bf16 %v805, %v805
  %v828 = vpack.c.bf16 %v806, %v806
  %v829 = vpack.c.bf16 %v807, %v807
  %v830 = vpack.c.bf16 %v808, %v808
  %v831 = vpack.c.bf16 %v809, %v809
  %v832 = vpack.c.bf16 %v810, %v810
  %v833 = vpack.c.bf16 %v811, %v811
  %v834 = vpack.c.bf16 %v812, %v812
  %v835 = vpack.c.bf16 %v813, %v813
  %v836 = vpack.c.bf16 %v814, %v814
  %v837 = vpack.c.bf16 %v815, %v815
  %vm838 = vcmask 519168
  %839 = vst.msk [vmem:[%s3] sm:$0xf] %vm838, %v816
  %840 = vst.msk [vmem:[%s3 + $0x4] sm:$0xf] %vm838, %v817
  %841 = vst.msk [vmem:[%s3 + $0x8] sm:$0xf] %vm838, %v818
  %842 = vst.msk [vmem:[%s3 + $0xc] sm:$0xf] %vm838, %v819
  %843 = vst.msk [vmem:[%s3 + $0x10] sm:$0xf] %vm838, %v820
  %844 = vst.msk [vmem:[%s3 + $0x14] sm:$0xf] %vm838, %v821
  %845 = vst.msk [vmem:[%s3 + $0x18] sm:$0xf] %vm838, %v822
  %846 = vst.msk [vmem:[%s3 + $0x1c] sm:$0xf] %vm838, %v823
  %847 = vst.msk [vmem:[%s3 + $0x20] sm:$0xf] %vm838, %v824
  %848 = vst.msk [vmem:[%s3 + $0x24] sm:$0xf] %vm838, %v825
  %849 = vst.msk [vmem:[%s3 + $0x28] sm:$0xf] %vm838, %v826
  %850 = vst.msk [vmem:[%s3 + $0x2c] sm:$0xf] %vm838, %v827
  %851 = vst.msk [vmem:[%s3 + $0x30] sm:$0xf] %vm838, %v828
  %852 = vst.msk [vmem:[%s3 + $0x34] sm:$0xf] %vm838, %v829
  %853 = vst.msk [vmem:[%s3 + $0x38] sm:$0xf] %vm838, %v830
  %854 = vst.msk [vmem:[%s3 + $0x3c] sm:$0xf] %vm838, %v831
  %855 = vst.msk [vmem:[%s3 + $0x40] sm:$0xf] %vm838, %v832
  %856 = vst.msk [vmem:[%s3 + $0x44] sm:$0xf] %vm838, %v833
  %857 = vst.msk [vmem:[%s3 + $0x48] sm:$0xf] %vm838, %v834
  %858 = vst.msk [vmem:[%s3 + $0x4c] sm:$0xf] %vm838, %v835
  %859 = vst.msk [vmem:[%s3 + $0x50] sm:$0xf] %vm838, %v836
  %860 = vst.msk [vmem:[%s3 + $0x54] sm:$0xf] %vm838, %v837
  // Predicated region
  $region14: #{net_forward.4} parent=0 // pred_check
    _
  $region15: #{net_forward.4} parent=0 // pred_check_branch
    %862 = sbr.rel (0) target = $region17
  $region16: #{net_forward.4} parent=0 // pred_region
    _
  $region17: #{net_forward.4} parent=0 // pred_fallthru
    _
  // Predicated region
  $region18: #{net_forward.4} parent=0 // pred_check
    _
  $region19: #{net_forward.4} parent=0 // pred_check_branch
    %864 = sbr.rel (0) target = $region21
  $region20: #{net_forward.4} parent=0 // pred_region
    _
  $region21: #{net_forward.4} parent=0 // pred_fallthru
    _

// kernel: net_forward.5
$region0: #{net_forward.5}
  #allocation0 [shape = 'u32[]', space=smem, size = 0x4, offset = 0x4, fixed_abs, tag = 'smem constant byte address 0x4 - core index']
  #allocation1 [shape = 'u32[72,128]{1,0:T(1,128)}', space=vmem, size = 0x9000, scoped, tag = 'internal scratch']
  #allocation2 [shape = 'bf16[392,64]{1,0:T(8,128)(2,1)}', space=vmem, size = 0x18800, scoped, tag = 'scratch operand']
  #allocation3 [shape = 'f32[8,512]{1,0:T(8,128)}', space=vmem, size = 0x4000, scoped, tag = 'scratch operand']
  %s0 = inlined_call_operand.vmem [shape: bf16[392,576], index: 0, kind: input, shape index: {}]
  %s1 = inlined_call_operand.vmem [shape: bf16[576,64], index: 1, kind: input, shape index: {}]
  %s2 = inlined_call_operand.vmem [shape: f32[1,64], index: 2, kind: input, shape index: {}]
  %s3 = inlined_call_operand.vmem [shape: bf16[49,64,512], index: 3, kind: input, shape index: {}]
  %s4 = inlined_call_operand.vmem [shape: f32[1,512], index: 4, kind: input, shape index: {}]
  %s5 = inlined_call_operand.vmem [shape: bf16[512,128], index: 5, kind: input, shape index: {}]
  %s6 = inlined_call_operand.vmem [shape: f32[1,128], index: 6, kind: input, shape index: {}]
  %s7 = inlined_call_operand.vmem [shape: f32[8,128], index: 7, kind: output, shape index: {}]
  %s8 = sld [smem:[#allocation0]]
  $region69: #{net_forward.5} parent=0
    _
  %s10 = ssub.s32 1, %s8
  %s11 = scalar_select 0, %s10, %s8
  loop: start=0, step=1, limit=9
  $region2: #{net_forward.5} parent=0 // loop_pre_header
    _
  $region3: #{net_forward.5} parent=0 // loop_header
    %s13 = sphi 0, %s17
    %p14 = scmp.ge.s32.totalorder %s13, 9
    %s21 = sphi 0, %s21
    %s23 = sphi 0, %s21
    %s24 = sphi 0, %s23
    %s38 = sphi 0, %s24
    %s42 = sphi 0, %s42
    %s44 = sphi 0, %s42
    %s45 = sphi 0, %s44
    %s59 = sphi 0, %s45
    %s63 = sphi 0, %s63
    %s65 = sphi 0, %s63
    %s66 = sphi 0, %s65
    %s80 = sphi 0, %s66
    %s86 = sphi 0, %s88
    %s89 = sphi 0, %s86
    %s90 = sphi 0, %s89
    %s106 = sphi 0, %s90
    %s110 = sphi 0, %s110
    %s112 = sphi 0, %s110
    %s113 = sphi 0, %s112
    %s127 = sphi 0, %s113
    %s131 = sphi 0, %s131
    %s133 = sphi 0, %s131
    %s134 = sphi 0, %s133
    %s148 = sphi 0, %s134
    %s152 = sphi 0, %s152
    %s154 = sphi 0, %s152
    %s155 = sphi 0, %s154
    %s169 = sphi 0, %s155
    %s173 = sphi 0, %s173
    %s175 = sphi 0, %s173
    %s176 = sphi 0, %s175
    %s190 = sphi 0, %s176
  $region4: #{net_forward.5} parent=0 // loop_header_branch
    %16 = sbr.rel (%p14) target = $region8
  $region5: #{net_forward.5} parent=0 // loop_body
    %s18 = ssub.s32 %s13, 1
    %s19 = ssub.s32 %s13, 2
    %s20 = sadd.s32 %s13, 1
    %s22 = sadd.s32 %s21, 1
    %p25 = scmp.eq.s32.totalorder %s13, 6
    %p26 = scmp.ne.s32.totalorder %s21, %s23
    %p27 = scmp.eq.s32.totalorder %s13, 0
    %p28 = por %p26, %p27
    %p29 = scmp.ne.s32.totalorder %s21, %s23
    %p30 = scmp.eq.s32.totalorder %s18, 6
    %p31 = por %p29, %p30
    %p32 = scmp.ne.s32.totalorder %s23, %s24
    %p33 = scmp.eq.s32.totalorder %s18, 0
    %p34 = por %p32, %p33
    %p35 = scmp.ne.s32.totalorder %s23, %s24
    %p36 = scmp.eq.s32.totalorder %s19, 6
    %p37 = por %p35, %p36
    %p39 = scmp.ne.s32.totalorder %s24, %s38
    %p40 = scmp.eq.s32.totalorder %s19, 0
    %p41 = por %p39, %p40
    %s43 = sadd.s32 %s42, 1
    %p46 = scmp.eq.s32.totalorder %s13, 6
    %p47 = scmp.ne.s32.totalorder %s42, %s44
    %p48 = scmp.eq.s32.totalorder %s13, 0
    %p49 = por %p47, %p48
    %p50 = scmp.ne.s32.totalorder %s42, %s44
    %p51 = scmp.eq.s32.totalorder %s18, 6
    %p52 = por %p50, %p51
    %p53 = scmp.ne.s32.totalorder %s44, %s45
    %p54 = scmp.eq.s32.totalorder %s18, 0
    %p55 = por %p53, %p54
    %p56 = scmp.ne.s32.totalorder %s44, %s45
    %p57 = scmp.eq.s32.totalorder %s19, 6
    %p58 = por %p56, %p57
    %p60 = scmp.ne.s32.totalorder %s45, %s59
    %p61 = scmp.eq.s32.totalorder %s19, 0
    %p62 = por %p60, %p61
    %s64 = sadd.s32 %s63, 1
    %p67 = scmp.eq.s32.totalorder %s13, 6
    %p68 = scmp.ne.s32.totalorder %s63, %s65
    %p69 = scmp.eq.s32.totalorder %s13, 0
    %p70 = por %p68, %p69
    %p71 = scmp.ne.s32.totalorder %s63, %s65
    %p72 = scmp.eq.s32.totalorder %s18, 6
    %p73 = por %p71, %p72
    %p74 = scmp.ne.s32.totalorder %s65, %s66
    %p75 = scmp.eq.s32.totalorder %s18, 0
    %p76 = por %p74, %p75
    %p77 = scmp.ne.s32.totalorder %s65, %s66
    %p78 = scmp.eq.s32.totalorder %s19, 6
    %p79 = por %p77, %p78
    %p81 = scmp.ne.s32.totalorder %s66, %s80
    %p82 = scmp.eq.s32.totalorder %s19, 0
    %p83 = por %p81, %p82
    %s84 = ssub.s32 %s13, %s20
    %p85 = scmp.eq.s32.totalorder %s84, 0
    %s87 = sadd.s32 %s86, 1
    %s88 = scalar_select %p85, %s86, %s87
    %p91 = pneg %p85
    %p92 = scmp.eq.s32.totalorder %s13, 6
    %p93 = por %p91, %p92
    %p94 = scmp.ne.s32.totalorder %s86, %s89
    %p95 = scmp.eq.s32.totalorder %s13, 0
    %p96 = por %p94, %p95
    %p97 = scmp.ne.s32.totalorder %s86, %s89
    %p98 = scmp.eq.s32.totalorder %s18, 6
    %p99 = por %p97, %p98
    %p100 = scmp.ne.s32.totalorder %s89, %s90
    %p101 = scmp.eq.s32.totalorder %s18, 0
    %p102 = por %p100, %p101
    %p103 = scmp.ne.s32.totalorder %s89, %s90
    %p104 = scmp.eq.s32.totalorder %s19, 6
    %p105 = por %p103, %p104
    %p107 = scmp.ne.s32.totalorder %s90, %s106
    %p108 = scmp.eq.s32.totalorder %s19, 0
    %p109 = por %p107, %p108
    %s111 = sadd.s32 %s110, 1
    %p114 = scmp.eq.s32.totalorder %s13, 6
    %p115 = scmp.ne.s32.totalorder %s110, %s112
    %p116 = scmp.eq.s32.totalorder %s13, 0
    %p117 = por %p115, %p116
    %p118 = scmp.ne.s32.totalorder %s110, %s112
    %p119 = scmp.eq.s32.totalorder %s18, 6
    %p120 = por %p118, %p119
    %p121 = scmp.ne.s32.totalorder %s112, %s113
    %p122 = scmp.eq.s32.totalorder %s18, 0
    %p123 = por %p121, %p122
    %p124 = scmp.ne.s32.totalorder %s112, %s113
    %p125 = scmp.eq.s32.totalorder %s19, 6
    %p126 = por %p124, %p125
    %p128 = scmp.ne.s32.totalorder %s113, %s127
    %p129 = scmp.eq.s32.totalorder %s19, 0
    %p130 = por %p128, %p129
    %s132 = sadd.s32 %s131, 1
    %p135 = scmp.eq.s32.totalorder %s13, 6
    %p136 = scmp.ne.s32.totalorder %s131, %s133
    %p137 = scmp.eq.s32.totalorder %s13, 0
    %p138 = por %p136, %p137
    %p139 = scmp.ne.s32.totalorder %s131, %s133
    %p140 = scmp.eq.s32.totalorder %s18, 6
    %p141 = por %p139, %p140
    %p142 = scmp.ne.s32.totalorder %s133, %s134
    %p143 = scmp.eq.s32.totalorder %s18, 0
    %p144 = por %p142, %p143
    %p145 = scmp.ne.s32.totalorder %s133, %s134
    %p146 = scmp.eq.s32.totalorder %s19, 6
    %p147 = por %p145, %p146
    %p149 = scmp.ne.s32.totalorder %s134, %s148
    %p150 = scmp.eq.s32.totalorder %s19, 0
    %p151 = por %p149, %p150
    %s153 = sadd.s32 %s152, 1
    %p156 = scmp.eq.s32.totalorder %s13, 6
    %p157 = scmp.ne.s32.totalorder %s152, %s154
    %p158 = scmp.eq.s32.totalorder %s13, 0
    %p159 = por %p157, %p158
    %p160 = scmp.ne.s32.totalorder %s152, %s154
    %p161 = scmp.eq.s32.totalorder %s18, 6
    %p162 = por %p160, %p161
    %p163 = scmp.ne.s32.totalorder %s154, %s155
    %p164 = scmp.eq.s32.totalorder %s18, 0
    %p165 = por %p163, %p164
    %p166 = scmp.ne.s32.totalorder %s154, %s155
    %p167 = scmp.eq.s32.totalorder %s19, 6
    %p168 = por %p166, %p167
    %p170 = scmp.ne.s32.totalorder %s155, %s169
    %p171 = scmp.eq.s32.totalorder %s19, 0
    %p172 = por %p170, %p171
    %s174 = sadd.s32 %s173, 1
    %p177 = scmp.eq.s32.totalorder %s13, 6
    %p178 = scmp.ne.s32.totalorder %s173, %s175
    %p179 = scmp.eq.s32.totalorder %s13, 0
    %p180 = por %p178, %p179
    %p181 = scmp.ne.s32.totalorder %s173, %s175
    %p182 = scmp.eq.s32.totalorder %s18, 6
    %p183 = por %p181, %p182
    %p184 = scmp.ne.s32.totalorder %s175, %s176
    %p185 = scmp.eq.s32.totalorder %s18, 0
    %p186 = por %p184, %p185
    %p187 = scmp.ne.s32.totalorder %s175, %s176
    %p188 = scmp.eq.s32.totalorder %s19, 6
    %p189 = por %p187, %p188
    %p191 = scmp.ne.s32.totalorder %s176, %s190
    %p192 = scmp.eq.s32.totalorder %s19, 0
    %p193 = por %p191, %p192
    %p194 = scmp.le.s32.totalorder 1, %s13
    %p195 = scmp.lt.s32.totalorder %s13, 8
    %p196 = pnand %p194, %p195
    %p197 = pneg %p196
    // Predicated region
    $region9: #{net_forward.5} parent=5 // pred_check
      _
    $region10: #{net_forward.5} parent=5 // pred_check_branch
      %199 = sbr.rel (%p196) target = $region12
    $region11: #{net_forward.5} parent=5 // pred_region
      %s200 = ssub.s32 %s13, 1
      // Predicated region
      $region13: #{net_forward.5} parent=11 // pred_check
        %p201 = pneg %p34
      $region14: #{net_forward.5} parent=11 // pred_check_branch
        %203 = sbr.rel (%p201) target = $region16
      $region15: #{net_forward.5} parent=11 // pred_region
        _
      $region16: #{net_forward.5} parent=11 // pred_fallthru
        _
      // Predicated region
      $region17: #{net_forward.5} parent=11 // pred_check
        %p204 = pneg %p55
      $region18: #{net_forward.5} parent=11 // pred_check_branch
        %206 = sbr.rel (%p204) target = $region20
      $region19: #{net_forward.5} parent=11 // pred_region
        _
      $region20: #{net_forward.5} parent=11 // pred_fallthru
        _
      // Predicated region
      $region21: #{net_forward.5} parent=11 // pred_check
        %p207 = pneg %p76
      $region22: #{net_forward.5} parent=11 // pred_check_branch
        %209 = sbr.rel (%p207) target = $region24
      $region23: #{net_forward.5} parent=11 // pred_region
        _
      $region24: #{net_forward.5} parent=11 // pred_fallthru
        _
      // Predicated region
      $region25: #{net_forward.5} parent=11 // pred_check
        %p210 = pneg %p123
      $region26: #{net_forward.5} parent=11 // pred_check_branch
        %212 = sbr.rel (%p210) target = $region28
      $region27: #{net_forward.5} parent=11 // pred_region
        _
      $region28: #{net_forward.5} parent=11 // pred_fallthru
        _
      // Predicated region
      $region29: #{net_forward.5} parent=11 // pred_check
        %p213 = pneg %p144
      $region30: #{net_forward.5} parent=11 // pred_check_branch
        %215 = sbr.rel (%p213) target = $region32
      $region31: #{net_forward.5} parent=11 // pred_region
        _
      $region32: #{net_forward.5} parent=11 // pred_fallthru
        _
      // Predicated region
      $region33: #{net_forward.5} parent=11 // pred_check
        %p216 = pneg %p165
      $region34: #{net_forward.5} parent=11 // pred_check_branch
        %218 = sbr.rel (%p216) target = $region36
      $region35: #{net_forward.5} parent=11 // pred_region
        _
      $region36: #{net_forward.5} parent=11 // pred_fallthru
        _
    $region12: #{net_forward.5} parent=5 // pred_fallthru
      _
    %p219 = scmp.lt.s32.totalorder %s13, 7
    // Predicated region
    $region37: #{net_forward.5} parent=5 // pred_check
      %p220 = pneg %p219
    $region38: #{net_forward.5} parent=5 // pred_check_branch
      %222 = sbr.rel (%p220) target = $region40
    $region39: #{net_forward.5} parent=5 // pred_region
      // Predicated region
      $region41: #{net_forward.5} parent=39 // pred_check
        %p223 = pneg %p96
      $region42: #{net_forward.5} parent=39 // pred_check_branch
        %225 = sbr.rel (%p223) target = $region44
      $region43: #{net_forward.5} parent=39 // pred_region
        %s226 = smul.u32 7, %s13
        %p227 = scmp.lt.s32.totalorder %s226, 48
        %s228 = scalar_select %p227, %s226, 48
        %s229 = smul.addr %s228, 32
        %s230 = smul.addr %s229, 4
        %s231 = scalar_lea.vmem %s3, %s230
        %s232 = smul.u32 7, %s13
      $region44: #{net_forward.5} parent=39 // pred_fallthru
        _
    $region40: #{net_forward.5} parent=5 // pred_fallthru
      _
    %p233 = scmp.le.s32.totalorder 1, %s13
    %p234 = scmp.lt.s32.totalorder %s13, 8
    %p235 = pnand %p233, %p234
    %p236 = pneg %p235
    // Predicated region
    $region45: #{net_forward.5} parent=5 // pred_check
      _
    $region46: #{net_forward.5} parent=5 // pred_check_branch
      %238 = sbr.rel (%p235) target = $region48
    $region47: #{net_forward.5} parent=5 // pred_region
      %s239 = ssub.s32 %s13, 1
      %p240 = pneg %p34
      %p241 = pneg %p31
      %p242 = pneg %p55
      %p243 = pneg %p52
      %p244 = pneg %p76
      %p245 = pneg %p73
      %s246 = smul.u32 7, %s18
      %p247 = scmp.lt.s32.totalorder %s246, 48
      %s248 = scalar_select %p247, %s246, 48
      %s249 = smul.addr %s248, 32
      %s250 = smul.addr %s249, 4
      %s251 = scalar_lea.vmem %s3, %s250
      %p252 = pneg %p102
      %p253 = pneg %p99
      %p254 = pneg %p123
      %p255 = pneg %p120
      %p256 = pneg %p144
      %p257 = pneg %p141
      %p258 = pneg %p165
      %p259 = pneg %p162
      %p260 = pneg %p186
      %p261 = pneg %p183
      %s262 = smul.u32 7, %s18
      %p263 = scmp.lt.s32.totalorder %s262, 48
      %s264 = scalar_select %p263, %s262, 48
      %s265 = smul.addr %s264, 32
      %s266 = smul.addr %s265, 4
      %s267 = scalar_lea.vmem %s3, %s266
      %s268 = smul.u32 7, %s18
      %p270 = scmp.eq.s32.totalorder %s18, 0
      // Predicated region
      $region49: #{net_forward.5} parent=47 // pred_check
        %p271 = pneg %p270
      $region50: #{net_forward.5} parent=47 // pred_check_branch
        %273 = sbr.rel (%p271) target = $region52
      $region51: #{net_forward.5} parent=47 // pred_region
        %v274 = vld [vmem:[%s0] sm:$0xff]
        %v275 = vld [vmem:[%s0 + $0x8] sm:$0xff]
        %v276 = vld [vmem:[%s0 + $0x10] sm:$0xf]
        %v277 = vld [vmem:[%s0 + $0x14] sm:$0xff]
        %v278 = vld [vmem:[%s0 + $0x1c] sm:$0xff]
        %v279 = vld [vmem:[%s0 + $0x24] sm:$0xf]
        %v280 = vld [vmem:[%s0 + $0x28] sm:$0xff]
        %v281 = vld [vmem:[%s0 + $0x30] sm:$0xff]
        %v282 = vld [vmem:[%s0 + $0x38] sm:$0xf]
        %v283 = vld [vmem:[%s0 + $0x3c] sm:$0xff]
        %v284 = vld [vmem:[%s0 + $0x44] sm:$0xff]
        %v285 = vld [vmem:[%s0 + $0x4c] sm:$0xf]
        %v286 = vld [vmem:[%s0 + $0x50] sm:$0xff]
        %v287 = vld [vmem:[%s0 + $0x58] sm:$0xff]
        %v288 = vld [vmem:[%s0 + $0x60] sm:$0xf]
        %v289 = vld [vmem:[%s0 + $0x64] sm:$0xff]
        %v290 = vld [vmem:[%s0 + $0x6c] sm:$0xff]
        %v291 = vld [vmem:[%s0 + $0x74] sm:$0xf]
        %v292 = vld [vmem:[%s0 + $0x78] sm:$0xff]
        %v293 = vld [vmem:[%s0 + $0x80] sm:$0xff]
        %v294 = vld [vmem:[%s0 + $0x88] sm:$0xf]
        %v295 = vld [vmem:[%s0 + $0x8c] sm:$0xff]
        %v296 = vld [vmem:[%s0 + $0x94] sm:$0xff]
        %v297 = vld [vmem:[%s0 + $0x9c] sm:$0xf]
        %v298 = vld [vmem:[%s0 + $0xa0] sm:$0xff]
        %v299 = vld [vmem:[%s0 + $0xa8] sm:$0xff]
        %v300 = vld [vmem:[%s0 + $0xb0] sm:$0xf]
        %v301 = vld [vmem:[%s0 + $0xb4] sm:$0xff]
        %v302 = vld [vmem:[%s0 + $0xbc] sm:$0xff]
        %v303 = vld [vmem:[%s0 + $0xc4] sm:$0xf]
        %v304 = vld [vmem:[%s0 + $0xc8] sm:$0xff]
        %v305 = vld [vmem:[%s0 + $0xd0] sm:$0xff]
        %v306 = vld [vmem:[%s0 + $0xd8] sm:$0xf]
        %v307 = vld [vmem:[%s0 + $0xdc] sm:$0xff]
        %v308 = vld [vmem:[%s0 + $0xe4] sm:$0xff]
        %v309 = vld [vmem:[%s0 + $0xec] sm:$0xf]
        %v310 = vld [vmem:[%s0 + $0xf0] sm:$0xff]
        %v311 = vld [vmem:[%s0 + $0xf8] sm:$0xff]
        %v312 = vld [vmem:[%s0 + $0x100] sm:$0xf]
        %v313 = vld [vmem:[%s0 + $0x104] sm:$0xff]
        %v314 = vld [vmem:[%s0 + $0x10c] sm:$0xff]
        %v315 = vld [vmem:[%s0 + $0x114] sm:$0xf]
        %v316 = vld [vmem:[%s0 + $0x118] sm:$0xff]
        %v317 = vld [vmem:[%s0 + $0x120] sm:$0xff]
        %v318 = vld [vmem:[%s0 + $0x128] sm:$0xf]
        %v319 = vld [vmem:[%s0 + $0x12c] sm:$0xff]
        %v320 = vld [vmem:[%s0 + $0x134] sm:$0xff]
        %v321 = vld [vmem:[%s0 + $0x13c] sm:$0xf]
        %v322 = vld [vmem:[%s0 + $0x140] sm:$0xff]
        %v323 = vld [vmem:[%s0 + $0x148] sm:$0xff]
        %v324 = vld [vmem:[%s0 + $0x150] sm:$0xf]
        %v325 = vld [vmem:[%s0 + $0x154] sm:$0xff]
        %v326 = vld [vmem:[%s0 + $0x15c] sm:$0xff]
        %v327 = vld [vmem:[%s0 + $0x164] sm:$0xf]
        %v328 = vld [vmem:[%s0 + $0x168] sm:$0xff]
        %v329 = vld [vmem:[%s0 + $0x170] sm:$0xff]
        %v330 = vld [vmem:[%s0 + $0x178] sm:$0xf]
        %v331 = vld [vmem:[%s0 + $0x17c] sm:$0xff]
        %v332 = vld [vmem:[%s0 + $0x184] sm:$0xff]
        %v333 = vld [vmem:[%s0 + $0x18c] sm:$0xf]
        %v334 = vld [vmem:[%s0 + $0x190] sm:$0xff]
        %v335 = vld [vmem:[%s0 + $0x198] sm:$0xff]
        %v336 = vld [vmem:[%s0 + $0x1a0] sm:$0xf]
        %v337 = vld [vmem:[%s0 + $0x1a4] sm:$0xff]
        %v338 = vld [vmem:[%s0 + $0x1ac] sm:$0xff]
        %v339 = vld [vmem:[%s0 + $0x1b4] sm:$0xf]
        %v340 = vld [vmem:[%s0 + $0x1b8] sm:$0xff]
        %v341 = vld [vmem:[%s0 + $0x1c0] sm:$0xff]
        %v342 = vld [vmem:[%s0 + $0x1c8] sm:$0xf]
        %v343 = vld [vmem:[%s0 + $0x1cc] sm:$0xff]
        %v344 = vld [vmem:[%s0 + $0x1d4] sm:$0xff]
        %v345 = vld [vmem:[%s0 + $0x1dc] sm:$0xf]
        %v346 = vld [vmem:[%s0 + $0x1e0] sm:$0xff]
        %v347 = vld [vmem:[%s0 + $0x1e8] sm:$0xff]
        %v348 = vld [vmem:[%s0 + $0x1f0] sm:$0xf]
        %v349 = vld [vmem:[%s0 + $0x1f4] sm:$0xff]
        %v350 = vld [vmem:[%s0 + $0x1fc] sm:$0xff]
        %v351 = vld [vmem:[%s0 + $0x204] sm:$0xf]
        %v352 = vld [vmem:[%s0 + $0x208] sm:$0xff]
        %v353 = vld [vmem:[%s0 + $0x210] sm:$0xff]
        %v354 = vld [vmem:[%s0 + $0x218] sm:$0xf]
        %v355 = vld [vmem:[%s0 + $0x21c] sm:$0xff]
        %v356 = vld [vmem:[%s0 + $0x224] sm:$0xff]
        %v357 = vld [vmem:[%s0 + $0x22c] sm:$0xf]
        %v358 = vld [vmem:[%s0 + $0x230] sm:$0xff]
        %v359 = vld [vmem:[%s0 + $0x238] sm:$0xff]
        %v360 = vld [vmem:[%s0 + $0x240] sm:$0xf]
        %v361 = vld [vmem:[%s0 + $0x244] sm:$0xff]
        %v362 = vld [vmem:[%s0 + $0x24c] sm:$0xff]
        %v363 = vld [vmem:[%s0 + $0x254] sm:$0xf]
        %v364 = vld [vmem:[%s0 + $0x258] sm:$0xff]
        %v365 = vld [vmem:[%s0 + $0x260] sm:$0xff]
        %v366 = vld [vmem:[%s0 + $0x268] sm:$0xf]
        %v367 = vld [vmem:[%s0 + $0x26c] sm:$0xff]
        %v368 = vld [vmem:[%s0 + $0x274] sm:$0xff]
        %v369 = vld [vmem:[%s0 + $0x27c] sm:$0xf]
        %v370 = vld [vmem:[%s0 + $0x280] sm:$0xff]
        %v371 = vld [vmem:[%s0 + $0x288] sm:$0xff]
        %v372 = vld [vmem:[%s0 + $0x290] sm:$0xf]
        %v373 = vld [vmem:[%s0 + $0x294] sm:$0xff]
        %v374 = vld [vmem:[%s0 + $0x29c] sm:$0xff]
        %v375 = vld [vmem:[%s0 + $0x2a4] sm:$0xf]
        %v376 = vld [vmem:[%s0 + $0x2a8] sm:$0xff]
        %v377 = vld [vmem:[%s0 + $0x2b0] sm:$0xff]
        %v378 = vld [vmem:[%s0 + $0x2b8] sm:$0xf]
        %v379 = vld [vmem:[%s0 + $0x2bc] sm:$0xff]
        %v380 = vld [vmem:[%s0 + $0x2c4] sm:$0xff]
        %v381 = vld [vmem:[%s0 + $0x2cc] sm:$0xf]
        %v382 = vld [vmem:[%s0 + $0x2d0] sm:$0xff]
        %v383 = vld [vmem:[%s0 + $0x2d8] sm:$0xff]
        %v384 = vld [vmem:[%s0 + $0x2e0] sm:$0xf]
        %v385 = vld [vmem:[%s0 + $0x2e4] sm:$0xff]
        %v386 = vld [vmem:[%s0 + $0x2ec] sm:$0xff]
        %v387 = vld [vmem:[%s0 + $0x2f4] sm:$0xf]
        %v388 = vld [vmem:[%s0 + $0x2f8] sm:$0xff]
        %v389 = vld [vmem:[%s0 + $0x300] sm:$0xff]
        %v390 = vld [vmem:[%s0 + $0x308] sm:$0xf]
        %v391 = vld [vmem:[%s0 + $0x30c] sm:$0xff]
        %v392 = vld [vmem:[%s0 + $0x314] sm:$0xff]
        %v393 = vld [vmem:[%s0 + $0x31c] sm:$0xf]
        %v394 = vld [vmem:[%s0 + $0x320] sm:$0xff]
        %v395 = vld [vmem:[%s0 + $0x328] sm:$0xff]
        %v396 = vld [vmem:[%s0 + $0x330] sm:$0xf]
        %v397 = vld [vmem:[%s0 + $0x334] sm:$0xff]
        %v398 = vld [vmem:[%s0 + $0x33c] sm:$0xff]
        %v399 = vld [vmem:[%s0 + $0x344] sm:$0xf]
        %v400 = vld [vmem:[%s0 + $0x348] sm:$0xff]
        %v401 = vld [vmem:[%s0 + $0x350] sm:$0xff]
        %v402 = vld [vmem:[%s0 + $0x358] sm:$0xf]
        %v403 = vld [vmem:[%s0 + $0x35c] sm:$0xff]
        %v404 = vld [vmem:[%s0 + $0x364] sm:$0xff]
        %v405 = vld [vmem:[%s0 + $0x36c] sm:$0xf]
        %v406 = vld [vmem:[%s0 + $0x370] sm:$0xff]
        %v407 = vld [vmem:[%s0 + $0x378] sm:$0xff]
        %v408 = vld [vmem:[%s0 + $0x380] sm:$0xf]
        %v409 = vld [vmem:[%s0 + $0x384] sm:$0xff]
        %v410 = vld [vmem:[%s0 + $0x38c] sm:$0xff]
        %v411 = vld [vmem:[%s0 + $0x394] sm:$0xf]
        %v412 = vld [vmem:[%s0 + $0x398] sm:$0xff]
        %v413 = vld [vmem:[%s0 + $0x3a0] sm:$0xff]
        %v414 = vld [vmem:[%s0 + $0x3a8] sm:$0xf]
        %v415 = vld [vmem:[%s0 + $0x3ac] sm:$0xff]
        %v416 = vld [vmem:[%s0 + $0x3b4] sm:$0xff]
        %v417 = vld [vmem:[%s0 + $0x3bc] sm:$0xf]
        %v418 = vld [vmem:[%s0 + $0x3c0] sm:$0xff]
        %v419 = vld [vmem:[%s0 + $0x3c8] sm:$0xff]
        %v420 = vld [vmem:[%s0 + $0x3d0] sm:$0xf]
        %v421 = vld [vmem:[%s1] sm:$0xf]
        %v422 = vld [vmem:[%s1 + $0x4] sm:$0xf]
        %v423 = vld [vmem:[%s1 + $0x8] sm:$0xf]
        %v424 = vld [vmem:[%s1 + $0xc] sm:$0xf]
        %v425 = vld [vmem:[%s1 + $0x10] sm:$0xf]
        %v426 = vld [vmem:[%s1 + $0x14] sm:$0xf]
        %v427 = vld [vmem:[%s1 + $0x18] sm:$0xf]
        %v428 = vld [vmem:[%s1 + $0x1c] sm:$0xf]
        %v429 = vld [vmem:[%s1 + $0x20] sm:$0xf]
        %v430 = vld [vmem:[%s1 + $0x24] sm:$0xf]
        %v431 = vld [vmem:[%s1 + $0x28] sm:$0xf]
        %v432 = vld [vmem:[%s1 + $0x2c] sm:$0xf]
        %v433 = vld [vmem:[%s1 + $0x30] sm:$0xf]
        %v434 = vld [vmem:[%s1 + $0x34] sm:$0xf]
        %v435 = vld [vmem:[%s1 + $0x38] sm:$0xf]
        %v436 = vld [vmem:[%s1 + $0x3c] sm:$0xf]
        %v437 = vld [vmem:[%s1 + $0x40] sm:$0xf]
        %v438 = vld [vmem:[%s1 + $0x44] sm:$0xf]
        %v439 = vld [vmem:[%s1 + $0x48] sm:$0xf]
        %v440 = vld [vmem:[%s1 + $0x4c] sm:$0xf]
        %v441 = vld [vmem:[%s1 + $0x50] sm:$0xf]
        %v442 = vld [vmem:[%s1 + $0x54] sm:$0xf]
        %v443 = vld [vmem:[%s1 + $0x58] sm:$0xf]
        %v444 = vld [vmem:[%s1 + $0x5c] sm:$0xf]
        %v445 = vld [vmem:[%s1 + $0x60] sm:$0xf]
        %v446 = vld [vmem:[%s1 + $0x64] sm:$0xf]
        %v447 = vld [vmem:[%s1 + $0x68] sm:$0xf]
        %v448 = vld [vmem:[%s1 + $0x6c] sm:$0xf]
        %v449 = vld [vmem:[%s1 + $0x70] sm:$0xf]
        %v450 = vld [vmem:[%s1 + $0x74] sm:$0xf]
        %v451 = vld [vmem:[%s1 + $0x78] sm:$0xf]
        %v452 = vld [vmem:[%s1 + $0x7c] sm:$0xf]
        %v453 = vld [vmem:[%s1 + $0x80] sm:$0xf]
        %v454 = vld [vmem:[%s1 + $0x84] sm:$0xf]
        %v455 = vld [vmem:[%s1 + $0x88] sm:$0xf]
        %v456 = vld [vmem:[%s1 + $0x8c] sm:$0xf]
        %v457 = vld [vmem:[%s1 + $0x90] sm:$0xf]
        %v458 = vld [vmem:[%s1 + $0x94] sm:$0xf]
        %v459 = vld [vmem:[%s1 + $0x98] sm:$0xf]
        %v460 = vld [vmem:[%s1 + $0x9c] sm:$0xf]
        %v461 = vld [vmem:[%s1 + $0xa0] sm:$0xf]
        %v462 = vld [vmem:[%s1 + $0xa4] sm:$0xf]
        %v463 = vld [vmem:[%s1 + $0xa8] sm:$0xf]
        %v464 = vld [vmem:[%s1 + $0xac] sm:$0xf]
        %v465 = vld [vmem:[%s1 + $0xb0] sm:$0xf]
        %v466 = vld [vmem:[%s1 + $0xb4] sm:$0xf]
        %v467 = vld [vmem:[%s1 + $0xb8] sm:$0xf]
        %v468 = vld [vmem:[%s1 + $0xbc] sm:$0xf]
        %v469 = vld [vmem:[%s1 + $0xc0] sm:$0xf]
        %v470 = vld [vmem:[%s1 + $0xc4] sm:$0xf]
        %v471 = vld [vmem:[%s1 + $0xc8] sm:$0xf]
        %v472 = vld [vmem:[%s1 + $0xcc] sm:$0xf]
        %v473 = vld [vmem:[%s1 + $0xd0] sm:$0xf]
        %v474 = vld [vmem:[%s1 + $0xd4] sm:$0xf]
        %v475 = vld [vmem:[%s1 + $0xd8] sm:$0xf]
        %v476 = vld [vmem:[%s1 + $0xdc] sm:$0xf]
        %v477 = vld [vmem:[%s1 + $0xe0] sm:$0xf]
        %v478 = vld [vmem:[%s1 + $0xe4] sm:$0xf]
        %v479 = vld [vmem:[%s1 + $0xe8] sm:$0xf]
        %v480 = vld [vmem:[%s1 + $0xec] sm:$0xf]
        %v481 = vld [vmem:[%s1 + $0xf0] sm:$0xf]
        %v482 = vld [vmem:[%s1 + $0xf4] sm:$0xf]
        %v483 = vld [vmem:[%s1 + $0xf8] sm:$0xf]
        %v484 = vld [vmem:[%s1 + $0xfc] sm:$0xf]
        %v485 = vld [vmem:[%s1 + $0x100] sm:$0xf]
        %v486 = vld [vmem:[%s1 + $0x104] sm:$0xf]
        %v487 = vld [vmem:[%s1 + $0x108] sm:$0xf]
        %v488 = vld [vmem:[%s1 + $0x10c] sm:$0xf]
        %v489 = vld [vmem:[%s1 + $0x110] sm:$0xf]
        %v490 = vld [vmem:[%s1 + $0x114] sm:$0xf]
        %v491 = vld [vmem:[%s1 + $0x118] sm:$0xf]
        %v492 = vld [vmem:[%s1 + $0x11c] sm:$0xf]
        %v493 = vld [vmem:[%s2] sm:$0x1]
        %v495 = vperm.slane %v493, 0
        %v644 = vunpack.c.l.b16 %v274
        %v645 = vunpack.c.h.b16 %v274
        %v646 = vunpack.c.l.b16 %v275
        %v647 = vunpack.c.h.b16 %v275
        %v648 = vunpack.c.l.b16 %v276
        %v649 = vunpack.c.l.b16 %v277
        %v650 = vunpack.c.h.b16 %v277
        %v651 = vunpack.c.l.b16 %v278
        %v652 = vunpack.c.h.b16 %v278
        %v653 = vunpack.c.l.b16 %v279
        %v654 = vunpack.c.l.b16 %v280
        %v655 = vunpack.c.h.b16 %v280
        %v656 = vunpack.c.l.b16 %v281
        %v657 = vunpack.c.h.b16 %v281
        %v658 = vunpack.c.l.b16 %v282
        %v659 = vunpack.c.l.b16 %v283
        %v660 = vunpack.c.h.b16 %v283
        %v661 = vunpack.c.l.b16 %v284
        %v662 = vunpack.c.h.b16 %v284
        %v663 = vunpack.c.l.b16 %v285
        %v664 = vunpack.c.l.b16 %v286
        %v665 = vunpack.c.h.b16 %v286
        %v666 = vunpack.c.l.b16 %v287
        %v667 = vunpack.c.h.b16 %v287
        %v668 = vunpack.c.l.b16 %v288
        %v669 = vunpack.c.l.b16 %v289
        %v670 = vunpack.c.h.b16 %v289
        %v671 = vunpack.c.l.b16 %v290
        %v672 = vunpack.c.h.b16 %v290
        %v673 = vunpack.c.l.b16 %v291
        %v674 = vunpack.c.l.b16 %v292
        %v675 = vunpack.c.h.b16 %v292
        %v676 = vunpack.c.l.b16 %v293
        %v677 = vunpack.c.h.b16 %v293
        %v678 = vunpack.c.l.b16 %v294
        %v679 = vunpack.c.l.b16 %v295
        %v680 = vunpack.c.h.b16 %v295
        %v681 = vunpack.c.l.b16 %v296
        %v682 = vunpack.c.h.b16 %v296
        %v683 = vunpack.c.l.b16 %v297
        %v684 = vunpack.c.l.b16 %v298
        %v685 = vunpack.c.h.b16 %v298
        %v686 = vunpack.c.l.b16 %v299
        %v687 = vunpack.c.h.b16 %v299
        %v688 = vunpack.c.l.b16 %v300
        %v689 = vunpack.c.l.b16 %v301
        %v690 = vunpack.c.h.b16 %v301
        %v691 = vunpack.c.l.b16 %v302
        %v692 = vunpack.c.h.b16 %v302
        %v693 = vunpack.c.l.b16 %v303
        %v694 = vunpack.c.l.b16 %v304
        %v695 = vunpack.c.h.b16 %v304
        %v696 = vunpack.c.l.b16 %v305
        %v697 = vunpack.c.h.b16 %v305
        %v698 = vunpack.c.l.b16 %v306
        %v699 = vunpack.c.l.b16 %v307
        %v700 = vunpack.c.h.b16 %v307
        %v701 = vunpack.c.l.b16 %v308
        %v702 = vunpack.c.h.b16 %v308
        %v703 = vunpack.c.l.b16 %v309
        %v704 = vunpack.c.l.b16 %v310
        %v705 = vunpack.c.h.b16 %v310
        %v706 = vunpack.c.l.b16 %v311
        %v707 = vunpack.c.h.b16 %v311
        %v708 = vunpack.c.l.b16 %v312
        %v709 = vunpack.c.l.b16 %v313
        %v710 = vunpack.c.h.b16 %v313
        %v711 = vunpack.c.l.b16 %v314
        %v712 = vunpack.c.h.b16 %v314
        %v713 = vunpack.c.l.b16 %v315
        %v714 = vunpack.c.l.b16 %v316
        %v715 = vunpack.c.h.b16 %v316
        %v716 = vunpack.c.l.b16 %v317
        %v717 = vunpack.c.h.b16 %v317
        %v718 = vunpack.c.l.b16 %v318
        %v719 = vunpack.c.l.b16 %v319
        %v720 = vunpack.c.h.b16 %v319
        %v721 = vunpack.c.l.b16 %v320
        %v722 = vunpack.c.h.b16 %v320
        %v723 = vunpack.c.l.b16 %v321
        %v724 = vunpack.c.l.b16 %v322
        %v725 = vunpack.c.h.b16 %v322
        %v726 = vunpack.c.l.b16 %v323
        %v727 = vunpack.c.h.b16 %v323
        %v728 = vunpack.c.l.b16 %v324
        %v729 = vunpack.c.l.b16 %v325
        %v730 = vunpack.c.h.b16 %v325
        %v731 = vunpack.c.l.b16 %v326
        %v732 = vunpack.c.h.b16 %v326
        %v733 = vunpack.c.l.b16 %v327
        %v734 = vunpack.c.l.b16 %v328
        %v735 = vunpack.c.h.b16 %v328
        %v736 = vunpack.c.l.b16 %v329
        %v737 = vunpack.c.h.b16 %v329
        %v738 = vunpack.c.l.b16 %v330
        %v739 = vunpack.c.l.b16 %v331
        %v740 = vunpack.c.h.b16 %v331
        %v741 = vunpack.c.l.b16 %v332
        %v742 = vunpack.c.h.b16 %v332
        %v743 = vunpack.c.l.b16 %v333
        %v744 = vunpack.c.l.b16 %v334
        %v745 = vunpack.c.h.b16 %v334
        %v746 = vunpack.c.l.b16 %v335
        %v747 = vunpack.c.h.b16 %v335
        %v748 = vunpack.c.l.b16 %v336
        %v749 = vunpack.c.l.b16 %v337
        %v750 = vunpack.c.h.b16 %v337
        %v751 = vunpack.c.l.b16 %v338
        %v752 = vunpack.c.h.b16 %v338
        %v753 = vunpack.c.l.b16 %v339
        %v754 = vunpack.c.l.b16 %v340
        %v755 = vunpack.c.h.b16 %v340
        %v756 = vunpack.c.l.b16 %v341
        %v757 = vunpack.c.h.b16 %v341
        %v758 = vunpack.c.l.b16 %v342
        %v759 = vunpack.c.l.b16 %v343
        %v760 = vunpack.c.h.b16 %v343
        %v761 = vunpack.c.l.b16 %v344
        %v762 = vunpack.c.h.b16 %v344
        %v763 = vunpack.c.l.b16 %v345
        %v764 = vunpack.c.l.b16 %v346
        %v765 = vunpack.c.h.b16 %v346
        %v766 = vunpack.c.l.b16 %v347
        %v767 = vunpack.c.h.b16 %v347
        %v768 = vunpack.c.l.b16 %v348
        %v769 = vunpack.c.l.b16 %v349
        %v770 = vunpack.c.h.b16 %v349
        %v771 = vunpack.c.l.b16 %v350
        %v772 = vunpack.c.h.b16 %v350
        %v773 = vunpack.c.l.b16 %v351
        %v774 = vunpack.c.l.b16 %v352
        %v775 = vunpack.c.h.b16 %v352
        %v776 = vunpack.c.l.b16 %v353
        %v777 = vunpack.c.h.b16 %v353
        %v778 = vunpack.c.l.b16 %v354
        %v779 = vunpack.c.l.b16 %v355
        %v780 = vunpack.c.h.b16 %v355
        %v781 = vunpack.c.l.b16 %v356
        %v782 = vunpack.c.h.b16 %v356
        %v783 = vunpack.c.l.b16 %v357
        %v784 = vunpack.c.l.b16 %v358
        %v785 = vunpack.c.h.b16 %v358
        %v786 = vunpack.c.l.b16 %v359
        %v787 = vunpack.c.h.b16 %v359
        %v788 = vunpack.c.l.b16 %v360
        %v789 = vunpack.c.l.b16 %v361
        %v790 = vunpack.c.h.b16 %v361
        %v791 = vunpack.c.l.b16 %v362
        %v792 = vunpack.c.h.b16 %v362
        %v793 = vunpack.c.l.b16 %v363
        %v794 = vunpack.c.l.b16 %v364
        %v795 = vunpack.c.h.b16 %v364
        %v796 = vunpack.c.l.b16 %v365
        %v797 = vunpack.c.h.b16 %v365
        %v798 = vunpack.c.l.b16 %v366
        %v799 = vunpack.c.l.b16 %v367
        %v800 = vunpack.c.h.b16 %v367
        %v801 = vunpack.c.l.b16 %v368
        %v802 = vunpack.c.h.b16 %v368
        %v803 = vunpack.c.l.b16 %v369
        %v804 = vunpack.c.l.b16 %v370
        %v805 = vunpack.c.h.b16 %v370
        %v806 = vunpack.c.l.b16 %v371
        %v807 = vunpack.c.h.b16 %v371
        %v808 = vunpack.c.l.b16 %v372
        %v809 = vunpack.c.l.b16 %v373
        %v810 = vunpack.c.h.b16 %v373
        %v811 = vunpack.c.l.b16 %v374
        %v812 = vunpack.c.h.b16 %v374
        %v813 = vunpack.c.l.b16 %v375
        %v814 = vunpack.c.l.b16 %v376
        %v815 = vunpack.c.h.b16 %v376
        %v816 = vunpack.c.l.b16 %v377
        %v817 = vunpack.c.h.b16 %v377
        %v818 = vunpack.c.l.b16 %v378
        %v819 = vunpack.c.l.b16 %v379
        %v820 = vunpack.c.h.b16 %v379
        %v821 = vunpack.c.l.b16 %v380
        %v822 = vunpack.c.h.b16 %v380
        %v823 = vunpack.c.l.b16 %v381
        %v824 = vunpack.c.l.b16 %v382
        %v825 = vunpack.c.h.b16 %v382
        %v826 = vunpack.c.l.b16 %v383
        %v827 = vunpack.c.h.b16 %v383
        %v828 = vunpack.c.l.b16 %v384
        %v829 = vunpack.c.l.b16 %v385
        %v830 = vunpack.c.h.b16 %v385
        %v831 = vunpack.c.l.b16 %v386
        %v832 = vunpack.c.h.b16 %v386
        %v833 = vunpack.c.l.b16 %v387
        %v834 = vunpack.c.l.b16 %v388
        %v835 = vunpack.c.h.b16 %v388
        %v836 = vunpack.c.l.b16 %v389
        %v837 = vunpack.c.h.b16 %v389
        %v838 = vunpack.c.l.b16 %v390
        %v839 = vunpack.c.l.b16 %v391
        %v840 = vunpack.c.h.b16 %v391
        %v841 = vunpack.c.l.b16 %v392
        %v842 = vunpack.c.h.b16 %v392
        %v843 = vunpack.c.l.b16 %v393
        %v844 = vunpack.c.l.b16 %v394
        %v845 = vunpack.c.h.b16 %v394
        %v846 = vunpack.c.l.b16 %v395
        %v847 = vunpack.c.h.b16 %v395
        %v848 = vunpack.c.l.b16 %v396
        %v849 = vunpack.c.l.b16 %v397
        %v850 = vunpack.c.h.b16 %v397
        %v851 = vunpack.c.l.b16 %v398
        %v852 = vunpack.c.h.b16 %v398
        %v853 = vunpack.c.l.b16 %v399
        %v854 = vunpack.c.l.b16 %v400
        %v855 = vunpack.c.h.b16 %v400
        %v856 = vunpack.c.l.b16 %v401
        %v857 = vunpack.c.h.b16 %v401
        %v858 = vunpack.c.l.b16 %v402
        %v859 = vunpack.c.l.b16 %v403
        %v860 = vunpack.c.h.b16 %v403
        %v861 = vunpack.c.l.b16 %v404
        %v862 = vunpack.c.h.b16 %v404
        %v863 = vunpack.c.l.b16 %v405
        %v864 = vunpack.c.l.b16 %v406
        %v865 = vunpack.c.h.b16 %v406
        %v866 = vunpack.c.l.b16 %v407
        %v867 = vunpack.c.h.b16 %v407
        %v868 = vunpack.c.l.b16 %v408
        %v869 = vunpack.c.l.b16 %v409
        %v870 = vunpack.c.h.b16 %v409
        %v871 = vunpack.c.l.b16 %v410
        %v872 = vunpack.c.h.b16 %v410
        %v873 = vunpack.c.l.b16 %v411
        %v874 = vunpack.c.l.b16 %v412
        %v875 = vunpack.c.h.b16 %v412
        %v876 = vunpack.c.l.b16 %v413
        %v877 = vunpack.c.h.b16 %v413
        %v878 = vunpack.c.l.b16 %v414
        %v879 = vunpack.c.l.b16 %v415
        %v880 = vunpack.c.h.b16 %v415
        %v881 = vunpack.c.l.b16 %v416
        %v882 = vunpack.c.h.b16 %v416
        %v883 = vunpack.c.l.b16 %v417
        %v884 = vunpack.c.l.b16 %v418
        %v885 = vunpack.c.h.b16 %v418
        %v886 = vunpack.c.l.b16 %v419
        %v887 = vunpack.c.h.b16 %v419
        %v888 = vunpack.c.l.b16 %v420
        %v889 = vpack.c.b16 %v649, %v644
        %v890 = vpack.c.b16 %v650, %v645
        %v891 = vpack.c.b16 %v651, %v646
        %v892 = vpack.c.b16 %v652, %v647
        %v893 = vpack.c.b16 %v653, %v648
        %v894 = vpack.c.b16 %v659, %v654
        %v895 = vpack.c.b16 %v660, %v655
        %v896 = vpack.c.b16 %v661, %v656
        %v897 = vpack.c.b16 %v662, %v657
        %v898 = vpack.c.b16 %v663, %v658
        %v899 = vpack.c.b16 %v669, %v664
        %v900 = vpack.c.b16 %v670, %v665
        %v901 = vpack.c.b16 %v671, %v666
        %v902 = vpack.c.b16 %v672, %v667
        %v903 = vpack.c.b16 %v673, %v668
        %v904 = vpack.c.b16 %v679, %v674
        %v905 = vpack.c.b16 %v680, %v675
        %v906 = vpack.c.b16 %v681, %v676
        %v907 = vpack.c.b16 %v682, %v677
        %v908 = vpack.c.b16 %v683, %v678
        %v909 = vpack.c.b16 %v689, %v684
        %v910 = vpack.c.b16 %v690, %v685
        %v911 = vpack.c.b16 %v691, %v686
        %v912 = vpack.c.b16 %v692, %v687
        %v913 = vpack.c.b16 %v693, %v688
        %v914 = vpack.c.b16 %v699, %v694
        %v915 = vpack.c.b16 %v700, %v695
        %v916 = vpack.c.b16 %v701, %v696
        %v917 = vpack.c.b16 %v702, %v697
        %v918 = vpack.c.b16 %v703, %v698
        %v919 = vpack.c.b16 %v709, %v704
        %v920 = vpack.c.b16 %v710, %v705
        %v921 = vpack.c.b16 %v711, %v706
        %v922 = vpack.c.b16 %v712, %v707
        %v923 = vpack.c.b16 %v713, %v708
        %v924 = vpack.c.b16 %v719, %v714
        %v925 = vpack.c.b16 %v720, %v715
        %v926 = vpack.c.b16 %v721, %v716
        %v927 = vpack.c.b16 %v722, %v717
        %v928 = vpack.c.b16 %v723, %v718
        %v929 = vpack.c.b16 %v729, %v724
        %v930 = vpack.c.b16 %v730, %v725
        %v931 = vpack.c.b16 %v731, %v726
        %v932 = vpack.c.b16 %v732, %v727
        %v933 = vpack.c.b16 %v733, %v728
        %v934 = vpack.c.b16 %v739, %v734
        %v935 = vpack.c.b16 %v740, %v735
        %v936 = vpack.c.b16 %v741, %v736
        %v937 = vpack.c.b16 %v742, %v737
        %v938 = vpack.c.b16 %v743, %v738
        %v939 = vpack.c.b16 %v749, %v744
        %v940 = vpack.c.b16 %v750, %v745
        %v941 = vpack.c.b16 %v751, %v746
        %v942 = vpack.c.b16 %v752, %v747
        %v943 = vpack.c.b16 %v753, %v748
        %v944 = vpack.c.b16 %v759, %v754
        %v945 = vpack.c.b16 %v760, %v755
        %v946 = vpack.c.b16 %v761, %v756
        %v947 = vpack.c.b16 %v762, %v757
        %v948 = vpack.c.b16 %v763, %v758
        %v949 = vpack.c.b16 %v769, %v764
        %v950 = vpack.c.b16 %v770, %v765
        %v951 = vpack.c.b16 %v771, %v766
        %v952 = vpack.c.b16 %v772, %v767
        %v953 = vpack.c.b16 %v773, %v768
        %v954 = vpack.c.b16 %v779, %v774
        %v955 = vpack.c.b16 %v780, %v775
        %v956 = vpack.c.b16 %v781, %v776
        %v957 = vpack.c.b16 %v782, %v777
        %v958 = vpack.c.b16 %v783, %v778
        %v959 = vpack.c.b16 %v789, %v784
        %v960 = vpack.c.b16 %v790, %v785
        %v961 = vpack.c.b16 %v791, %v786
        %v962 = vpack.c.b16 %v792, %v787
        %v963 = vpack.c.b16 %v793, %v788
        %v964 = vpack.c.b16 %v799, %v794
        %v965 = vpack.c.b16 %v800, %v795
        %v966 = vpack.c.b16 %v801, %v796
        %v967 = vpack.c.b16 %v802, %v797
        %v968 = vpack.c.b16 %v803, %v798
        %v969 = vpack.c.b16 %v809, %v804
        %v970 = vpack.c.b16 %v810, %v805
        %v971 = vpack.c.b16 %v811, %v806
        %v972 = vpack.c.b16 %v812, %v807
        %v973 = vpack.c.b16 %v813, %v808
        %v974 = vpack.c.b16 %v819, %v814
        %v975 = vpack.c.b16 %v820, %v815
        %v976 = vpack.c.b16 %v821, %v816
        %v977 = vpack.c.b16 %v822, %v817
        %v978 = vpack.c.b16 %v823, %v818
        %v979 = vpack.c.b16 %v829, %v824
        %v980 = vpack.c.b16 %v830, %v825
        %v981 = vpack.c.b16 %v831, %v826
        %v982 = vpack.c.b16 %v832, %v827
        %v983 = vpack.c.b16 %v833, %v828
        %v984 = vpack.c.b16 %v839, %v834
        %v985 = vpack.c.b16 %v840, %v835
        %v986 = vpack.c.b16 %v841, %v836
        %v987 = vpack.c.b16 %v842, %v837
        %v988 = vpack.c.b16 %v843, %v838
        %v989 = vpack.c.b16 %v849, %v844
        %v990 = vpack.c.b16 %v850, %v845
        %v991 = vpack.c.b16 %v851, %v846
        %v992 = vpack.c.b16 %v852, %v847
        %v993 = vpack.c.b16 %v853, %v848
        %v994 = vpack.c.b16 %v859, %v854
        %v995 = vpack.c.b16 %v860, %v855
        %v996 = vpack.c.b16 %v861, %v856
        %v997 = vpack.c.b16 %v862, %v857
        %v998 = vpack.c.b16 %v863, %v858
        %v999 = vpack.c.b16 %v869, %v864
        %v1000 = vpack.c.b16 %v870, %v865
        %v1001 = vpack.c.b16 %v871, %v866
        %v1002 = vpack.c.b16 %v872, %v867
        %v1003 = vpack.c.b16 %v873, %v868
        %v1004 = vpack.c.b16 %v879, %v874
        %v1005 = vpack.c.b16 %v880, %v875
        %v1006 = vpack.c.b16 %v881, %v876
        %v1007 = vpack.c.b16 %v882, %v877
        %v1008 = vpack.c.b16 %v883, %v878
        %v1009 = vpack.c.b16 %v884, %v884
        %v1010 = vpack.c.b16 %v885, %v885
        %v1011 = vpack.c.b16 %v886, %v886
        %v1012 = vpack.c.b16 %v887, %v887
        %v1013 = vpack.c.b16 %v888, %v888
        %v1186 = vunpack.c.l.b16 %v421
        %v1187 = vunpack.c.l.b16 %v422
        %v1188 = vunpack.c.l.b16 %v423
        %v1189 = vunpack.c.l.b16 %v424
        %v1190 = vunpack.c.l.b16 %v425
        %v1191 = vunpack.c.l.b16 %v426
        %v1192 = vunpack.c.l.b16 %v427
        %v1193 = vunpack.c.l.b16 %v428
        %v1194 = vunpack.c.l.b16 %v429
        %v1195 = vunpack.c.l.b16 %v430
        %v1196 = vunpack.c.l.b16 %v431
        %v1197 = vunpack.c.l.b16 %v432
        %v1198 = vunpack.c.l.b16 %v433
        %v1199 = vunpack.c.l.b16 %v434
        %v1200 = vunpack.c.l.b16 %v435
        %v1201 = vunpack.c.l.b16 %v436
        %v1202 = vunpack.c.l.b16 %v437
        %v1203 = vunpack.c.l.b16 %v438
        %v1204 = vunpack.c.l.b16 %v439
        %v1205 = vunpack.c.l.b16 %v440
        %v1206 = vunpack.c.l.b16 %v441
        %v1207 = vunpack.c.l.b16 %v442
        %v1208 = vunpack.c.l.b16 %v443
        %v1209 = vunpack.c.l.b16 %v444
        %v1210 = vunpack.c.l.b16 %v445
        %v1211 = vunpack.c.l.b16 %v446
        %v1212 = vunpack.c.l.b16 %v447
        %v1213 = vunpack.c.l.b16 %v448
        %v1214 = vunpack.c.l.b16 %v449
        %v1215 = vunpack.c.l.b16 %v450
        %v1216 = vunpack.c.l.b16 %v451
        %v1217 = vunpack.c.l.b16 %v452
        %v1218 = vunpack.c.l.b16 %v453
        %v1219 = vunpack.c.l.b16 %v454
        %v1220 = vunpack.c.l.b16 %v455
        %v1221 = vunpack.c.l.b16 %v456
        %v1222 = vunpack.c.l.b16 %v457
        %v1223 = vunpack.c.l.b16 %v458
        %v1224 = vunpack.c.l.b16 %v459
        %v1225 = vunpack.c.l.b16 %v460
        %v1226 = vunpack.c.l.b16 %v461
        %v1227 = vunpack.c.l.b16 %v462
        %v1228 = vunpack.c.l.b16 %v463
        %v1229 = vunpack.c.l.b16 %v464
        %v1230 = vunpack.c.l.b16 %v465
        %v1231 = vunpack.c.l.b16 %v466
        %v1232 = vunpack.c.l.b16 %v467
        %v1233 = vunpack.c.l.b16 %v468
        %v1234 = vunpack.c.l.b16 %v469
        %v1235 = vunpack.c.l.b16 %v470
        %v1236 = vunpack.c.l.b16 %v471
        %v1237 = vunpack.c.l.b16 %v472
        %v1238 = vunpack.c.l.b16 %v473
        %v1239 = vunpack.c.l.b16 %v474
        %v1240 = vunpack.c.l.b16 %v475
        %v1241 = vunpack.c.l.b16 %v476
        %v1242 = vunpack.c.l.b16 %v477
        %v1243 = vunpack.c.l.b16 %v478
        %v1244 = vunpack.c.l.b16 %v479
        %v1245 = vunpack.c.l.b16 %v480
        %v1246 = vunpack.c.l.b16 %v481
        %v1247 = vunpack.c.l.b16 %v482
        %v1248 = vunpack.c.l.b16 %v483
        %v1249 = vunpack.c.l.b16 %v484
        %v1250 = vunpack.c.l.b16 %v485
        %v1251 = vunpack.c.l.b16 %v486
        %v1252 = vunpack.c.l.b16 %v487
        %v1253 = vunpack.c.l.b16 %v488
        %v1254 = vunpack.c.l.b16 %v489
        %v1255 = vunpack.c.l.b16 %v490
        %v1256 = vunpack.c.l.b16 %v491
        %v1257 = vunpack.c.l.b16 %v492
        %v1258 = vpack.c.b16 %v1187, %v1186
        %v1259 = vpack.c.b16 %v1189, %v1188
        %v1260 = vpack.c.b16 %v1191, %v1190
        %v1261 = vpack.c.b16 %v1193, %v1192
        %v1262 = vpack.c.b16 %v1195, %v1194
        %v1263 = vpack.c.b16 %v1197, %v1196
        %v1264 = vpack.c.b16 %v1199, %v1198
        %v1265 = vpack.c.b16 %v1201, %v1200
        %v1266 = vpack.c.b16 %v1203, %v1202
        %v1267 = vpack.c.b16 %v1205, %v1204
        %v1268 = vpack.c.b16 %v1207, %v1206
        %v1269 = vpack.c.b16 %v1209, %v1208
        %v1270 = vpack.c.b16 %v1211, %v1210
        %v1271 = vpack.c.b16 %v1213, %v1212
        %v1272 = vpack.c.b16 %v1215, %v1214
        %v1273 = vpack.c.b16 %v1217, %v1216
        %v1274 = vpack.c.b16 %v1219, %v1218
        %v1275 = vpack.c.b16 %v1221, %v1220
        %v1276 = vpack.c.b16 %v1223, %v1222
        %v1277 = vpack.c.b16 %v1225, %v1224
        %v1278 = vpack.c.b16 %v1227, %v1226
        %v1279 = vpack.c.b16 %v1229, %v1228
        %v1280 = vpack.c.b16 %v1231, %v1230
        %v1281 = vpack.c.b16 %v1233, %v1232
        %v1282 = vpack.c.b16 %v1235, %v1234
        %v1283 = vpack.c.b16 %v1237, %v1236
        %v1284 = vpack.c.b16 %v1239, %v1238
        %v1285 = vpack.c.b16 %v1241, %v1240
        %v1286 = vpack.c.b16 %v1243, %v1242
        %v1287 = vpack.c.b16 %v1245, %v1244
        %v1288 = vpack.c.b16 %v1247, %v1246
        %v1289 = vpack.c.b16 %v1249, %v1248
        %v1290 = vpack.c.b16 %v1251, %v1250
        %v1291 = vpack.c.b16 %v1253, %v1252
        %v1292 = vpack.c.b16 %v1255, %v1254
        %v1293 = vpack.c.b16 %v1257, %v1256
        %vm1330 = vcmask 523264
        %v1332 = vsel %vm1330, %v893, 0
        %v1335 = vsel %vm1330, %v898, 0
        %v1338 = vsel %vm1330, %v903, 0
        %v1341 = vsel %vm1330, %v908, 0
        %v1344 = vsel %vm1330, %v913, 0
        %v1347 = vsel %vm1330, %v918, 0
        %v1350 = vsel %vm1330, %v923, 0
        %v1353 = vsel %vm1330, %v928, 0
        %v1356 = vsel %vm1330, %v933, 0
        %v1359 = vsel %vm1330, %v938, 0
        %v1362 = vsel %vm1330, %v943, 0
        %v1365 = vsel %vm1330, %v948, 0
        %v1368 = vsel %vm1330, %v953, 0
        %v1371 = vsel %vm1330, %v958, 0
        %v1374 = vsel %vm1330, %v963, 0
        %v1377 = vsel %vm1330, %v968, 0
        %v1380 = vsel %vm1330, %v973, 0
        %v1383 = vsel %vm1330, %v978, 0
        %v1386 = vsel %vm1330, %v983, 0
        %v1389 = vsel %vm1330, %v988, 0
        %v1392 = vsel %vm1330, %v993, 0
        %v1395 = vsel %vm1330, %v998, 0
        %v1398 = vsel %vm1330, %v1003, 0
        %v1401 = vsel %vm1330, %v1008, 0
        %v1404 = vsel %vm1330, %v1013, 0
        %1406 = vmatpush.bf16.msra.mxu0 %v1265
        %1407 = vmatpush.bf16.msra.mxu0 %v1264
        %1408 = vmatpush.bf16.msra.mxu0 %v1263
        %1409 = vmatpush.bf16.msra.mxu0 %v1262
        %1410 = vmatpush.bf16.msra.mxu0 %v1261
        %1411 = vmatpush.bf16.msra.mxu0 %v1260
        %1412 = vmatpush.bf16.msra.mxu0 %v1259
        %1413 = vmatpush.bf16.msra.mxu0 %v1258
        %1414 = vmatmul.bf16.gmra.mxu0 %v889
        %v1415 = vpop.f32.mrf.mxu0
        %v1416 = vadd.f32 %v495, %v1415
        %v1417 = vpop.f32.mrf.mxu0
        %v1418 = vadd.f32 %v495, %v1417
        %1419 = vmatmul.bf16.gmra.mxu0 %v894
        %v1420 = vpop.f32.mrf.mxu0
        %v1421 = vadd.f32 %v495, %v1420
        %v1422 = vpop.f32.mrf.mxu0
        %v1423 = vadd.f32 %v495, %v1422
        %1424 = vmatmul.bf16.gmra.mxu0 %v899
        %v1425 = vpop.f32.mrf.mxu0
        %v1426 = vadd.f32 %v495, %v1425
        %v1427 = vpop.f32.mrf.mxu0
        %v1428 = vadd.f32 %v495, %v1427
        %1429 = vmatmul.bf16.gmra.mxu0 %v904
        %v1430 = vpop.f32.mrf.mxu0
        %v1431 = vadd.f32 %v495, %v1430
        %v1432 = vpop.f32.mrf.mxu0
        %v1433 = vadd.f32 %v495, %v1432
        %1434 = vmatmul.bf16.gmra.mxu0 %v909
        %v1435 = vpop.f32.mrf.mxu0
        %v1436 = vadd.f32 %v495, %v1435
        %v1437 = vpop.f32.mrf.mxu0
        %v1438 = vadd.f32 %v495, %v1437
        %1439 = vmatmul.bf16.gmra.mxu0 %v914
        %v1440 = vpop.f32.mrf.mxu0
        %v1441 = vadd.f32 %v495, %v1440
        %v1442 = vpop.f32.mrf.mxu0
        %v1443 = vadd.f32 %v495, %v1442
        %1444 = vmatmul.bf16.gmra.mxu0 %v919
        %v1445 = vpop.f32.mrf.mxu0
        %v1446 = vadd.f32 %v495, %v1445
        %v1447 = vpop.f32.mrf.mxu0
        %v1448 = vadd.f32 %v495, %v1447
        %1449 = vmatmul.bf16.gmra.mxu0 %v924
        %v1450 = vpop.f32.mrf.mxu0
        %v1451 = vadd.f32 %v495, %v1450
        %v1452 = vpop.f32.mrf.mxu0
        %v1453 = vadd.f32 %v495, %v1452
        %1454 = vmatmul.bf16.gmra.mxu0 %v929
        %v1455 = vpop.f32.mrf.mxu0
        %v1456 = vadd.f32 %v495, %v1455
        %v1457 = vpop.f32.mrf.mxu0
        %v1458 = vadd.f32 %v495, %v1457
        %1459 = vmatmul.bf16.gmra.mxu0 %v934
        %v1460 = vpop.f32.mrf.mxu0
        %v1461 = vadd.f32 %v495, %v1460
        %v1462 = vpop.f32.mrf.mxu0
        %v1463 = vadd.f32 %v495, %v1462
        %1464 = vmatmul.bf16.gmra.mxu0 %v939
        %v1465 = vpop.f32.mrf.mxu0
        %v1466 = vadd.f32 %v495, %v1465
        %v1467 = vpop.f32.mrf.mxu0
        %v1468 = vadd.f32 %v495, %v1467
        %1469 = vmatmul.bf16.gmra.mxu0 %v944
        %v1470 = vpop.f32.mrf.mxu0
        %v1471 = vadd.f32 %v495, %v1470
        %v1472 = vpop.f32.mrf.mxu0
        %v1473 = vadd.f32 %v495, %v1472
        %1474 = vmatmul.bf16.gmra.mxu0 %v949
        %v1475 = vpop.f32.mrf.mxu0
        %v1476 = vadd.f32 %v495, %v1475
        %v1477 = vpop.f32.mrf.mxu0
        %v1478 = vadd.f32 %v495, %v1477
        %1479 = vmatmul.bf16.gmra.mxu0 %v954
        %v1480 = vpop.f32.mrf.mxu0
        %v1481 = vadd.f32 %v495, %v1480
        %v1482 = vpop.f32.mrf.mxu0
        %v1483 = vadd.f32 %v495, %v1482
        %1484 = vmatmul.bf16.gmra.mxu0 %v959
        %v1485 = vpop.f32.mrf.mxu0
        %v1486 = vadd.f32 %v495, %v1485
        %v1487 = vpop.f32.mrf.mxu0
        %v1488 = vadd.f32 %v495, %v1487
        %1489 = vmatmul.bf16.gmra.mxu0 %v964
        %v1490 = vpop.f32.mrf.mxu0
        %v1491 = vadd.f32 %v495, %v1490
        %v1492 = vpop.f32.mrf.mxu0
        %v1493 = vadd.f32 %v495, %v1492
        %1494 = vmatmul.bf16.gmra.mxu0 %v969
        %v1495 = vpop.f32.mrf.mxu0
        %v1496 = vadd.f32 %v495, %v1495
        %v1497 = vpop.f32.mrf.mxu0
        %v1498 = vadd.f32 %v495, %v1497
        %1499 = vmatmul.bf16.gmra.mxu0 %v974
        %v1500 = vpop.f32.mrf.mxu0
        %v1501 = vadd.f32 %v495, %v1500
        %v1502 = vpop.f32.mrf.mxu0
        %v1503 = vadd.f32 %v495, %v1502
        %1504 = vmatmul.bf16.gmra.mxu0 %v979
        %v1505 = vpop.f32.mrf.mxu0
        %v1506 = vadd.f32 %v495, %v1505
        %v1507 = vpop.f32.mrf.mxu0
        %v1508 = vadd.f32 %v495, %v1507
        %1509 = vmatmul.bf16.gmra.mxu0 %v984
        %v1510 = vpop.f32.mrf.mxu0
        %v1511 = vadd.f32 %v495, %v1510
        %v1512 = vpop.f32.mrf.mxu0
        %v1513 = vadd.f32 %v495, %v1512
        %1514 = vmatmul.bf16.gmra.mxu0 %v989
        %v1515 = vpop.f32.mrf.mxu0
        %v1516 = vadd.f32 %v495, %v1515
        %v1517 = vpop.f32.mrf.mxu0
        %v1518 = vadd.f32 %v495, %v1517
        %1519 = vmatmul.bf16.gmra.mxu0 %v994
        %v1520 = vpop.f32.mrf.mxu0
        %v1521 = vadd.f32 %v495, %v1520
        %v1522 = vpop.f32.mrf.mxu0
        %v1523 = vadd.f32 %v495, %v1522
        %1524 = vmatmul.bf16.gmra.mxu0 %v999
        %v1525 = vpop.f32.mrf.mxu0
        %v1526 = vadd.f32 %v495, %v1525
        %v1527 = vpop.f32.mrf.mxu0
        %v1528 = vadd.f32 %v495, %v1527
        %1529 = vmatmul.bf16.gmra.mxu0 %v1004
        %v1530 = vpop.f32.mrf.mxu0
        %v1531 = vadd.f32 %v495, %v1530
        %v1532 = vpop.f32.mrf.mxu0
        %v1533 = vadd.f32 %v495, %v1532
        %1534 = vmatmul.bf16.gmra.mxu0 %v1009
        %v1535 = vpop.f32.mrf.mxu0
        %v1536 = vadd.f32 %v495, %v1535
        %v1537 = vpop.f32.mrf.mxu0
        %1538 = vdwg.mxu0
        %1539 = vmatpush.bf16.msra.mxu0 %v1273
        %1540 = vmatpush.bf16.msra.mxu0 %v1272
        %1541 = vmatpush.bf16.msra.mxu0 %v1271
        %1542 = vmatpush.bf16.msra.mxu0 %v1270
        %1543 = vmatpush.bf16.msra.mxu0 %v1269
        %1544 = vmatpush.bf16.msra.mxu0 %v1268
        %1545 = vmatpush.bf16.msra.mxu0 %v1267
        %1546 = vmatpush.bf16.msra.mxu0 %v1266
        %1547 = vmatmul.bf16.gmra.mxu0 %v890
        %v1548 = vpop.f32.mrf.mxu0
        %v1549 = vadd.f32 %v1416, %v1548
        %v1550 = vpop.f32.mrf.mxu0
        %v1551 = vadd.f32 %v1418, %v1550
        %1552 = vmatmul.bf16.gmra.mxu0 %v895
        %v1553 = vpop.f32.mrf.mxu0
        %v1554 = vadd.f32 %v1421, %v1553
        %v1555 = vpop.f32.mrf.mxu0
        %v1556 = vadd.f32 %v1423, %v1555
        %1557 = vmatmul.bf16.gmra.mxu0 %v900
        %v1558 = vpop.f32.mrf.mxu0
        %v1559 = vadd.f32 %v1426, %v1558
        %v1560 = vpop.f32.mrf.mxu0
        %v1561 = vadd.f32 %v1428, %v1560
        %1562 = vmatmul.bf16.gmra.mxu0 %v905
        %v1563 = vpop.f32.mrf.mxu0
        %v1564 = vadd.f32 %v1431, %v1563
        %v1565 = vpop.f32.mrf.mxu0
        %v1566 = vadd.f32 %v1433, %v1565
        %1567 = vmatmul.bf16.gmra.mxu0 %v910
        %v1568 = vpop.f32.mrf.mxu0
        %v1569 = vadd.f32 %v1436, %v1568
        %v1570 = vpop.f32.mrf.mxu0
        %v1571 = vadd.f32 %v1438, %v1570
        %1572 = vmatmul.bf16.gmra.mxu0 %v915
        %v1573 = vpop.f32.mrf.mxu0
        %v1574 = vadd.f32 %v1441, %v1573
        %v1575 = vpop.f32.mrf.mxu0
        %v1576 = vadd.f32 %v1443, %v1575
        %1577 = vmatmul.bf16.gmra.mxu0 %v920
        %v1578 = vpop.f32.mrf.mxu0
        %v1579 = vadd.f32 %v1446, %v1578
        %v1580 = vpop.f32.mrf.mxu0
        %v1581 = vadd.f32 %v1448, %v1580
        %1582 = vmatmul.bf16.gmra.mxu0 %v925
        %v1583 = vpop.f32.mrf.mxu0
        %v1584 = vadd.f32 %v1451, %v1583
        %v1585 = vpop.f32.mrf.mxu0
        %v1586 = vadd.f32 %v1453, %v1585
        %1587 = vmatmul.bf16.gmra.mxu0 %v930
        %v1588 = vpop.f32.mrf.mxu0
        %v1589 = vadd.f32 %v1456, %v1588
        %v1590 = vpop.f32.mrf.mxu0
        %v1591 = vadd.f32 %v1458, %v1590
        %1592 = vmatmul.bf16.gmra.mxu0 %v935
        %v1593 = vpop.f32.mrf.mxu0
        %v1594 = vadd.f32 %v1461, %v1593
        %v1595 = vpop.f32.mrf.mxu0
        %v1596 = vadd.f32 %v1463, %v1595
        %1597 = vmatmul.bf16.gmra.mxu0 %v940
        %v1598 = vpop.f32.mrf.mxu0
        %v1599 = vadd.f32 %v1466, %v1598
        %v1600 = vpop.f32.mrf.mxu0
        %v1601 = vadd.f32 %v1468, %v1600
        %1602 = vmatmul.bf16.gmra.mxu0 %v945
        %v1603 = vpop.f32.mrf.mxu0
        %v1604 = vadd.f32 %v1471, %v1603
        %v1605 = vpop.f32.mrf.mxu0
        %v1606 = vadd.f32 %v1473, %v1605
        %1607 = vmatmul.bf16.gmra.mxu0 %v950
        %v1608 = vpop.f32.mrf.mxu0
        %v1609 = vadd.f32 %v1476, %v1608
        %v1610 = vpop.f32.mrf.mxu0
        %v1611 = vadd.f32 %v1478, %v1610
        %1612 = vmatmul.bf16.gmra.mxu0 %v955
        %v1613 = vpop.f32.mrf.mxu0
        %v1614 = vadd.f32 %v1481, %v1613
        %v1615 = vpop.f32.mrf.mxu0
        %v1616 = vadd.f32 %v1483, %v1615
        %1617 = vmatmul.bf16.gmra.mxu0 %v960
        %v1618 = vpop.f32.mrf.mxu0
        %v1619 = vadd.f32 %v1486, %v1618
        %v1620 = vpop.f32.mrf.mxu0
        %v1621 = vadd.f32 %v1488, %v1620
        %1622 = vmatmul.bf16.gmra.mxu0 %v965
        %v1623 = vpop.f32.mrf.mxu0
        %v1624 = vadd.f32 %v1491, %v1623
        %v1625 = vpop.f32.mrf.mxu0
        %v1626 = vadd.f32 %v1493, %v1625
        %1627 = vmatmul.bf16.gmra.mxu0 %v970
        %v1628 = vpop.f32.mrf.mxu0
        %v1629 = vadd.f32 %v1496, %v1628
        %v1630 = vpop.f32.mrf.mxu0
        %v1631 = vadd.f32 %v1498, %v1630
        %1632 = vmatmul.bf16.gmra.mxu0 %v975
        %v1633 = vpop.f32.mrf.mxu0
        %v1634 = vadd.f32 %v1501, %v1633
        %v1635 = vpop.f32.mrf.mxu0
        %v1636 = vadd.f32 %v1503, %v1635
        %1637 = vmatmul.bf16.gmra.mxu0 %v980
        %v1638 = vpop.f32.mrf.mxu0
        %v1639 = vadd.f32 %v1506, %v1638
        %v1640 = vpop.f32.mrf.mxu0
        %v1641 = vadd.f32 %v1508, %v1640
        %1642 = vmatmul.bf16.gmra.mxu0 %v985
        %v1643 = vpop.f32.mrf.mxu0
        %v1644 = vadd.f32 %v1511, %v1643
        %v1645 = vpop.f32.mrf.mxu0
        %v1646 = vadd.f32 %v1513, %v1645
        %1647 = vmatmul.bf16.gmra.mxu0 %v990
        %v1648 = vpop.f32.mrf.mxu0
        %v1649 = vadd.f32 %v1516, %v1648
        %v1650 = vpop.f32.mrf.mxu0
        %v1651 = vadd.f32 %v1518, %v1650
        %1652 = vmatmul.bf16.gmra.mxu0 %v995
        %v1653 = vpop.f32.mrf.mxu0
        %v1654 = vadd.f32 %v1521, %v1653
        %v1655 = vpop.f32.mrf.mxu0
        %v1656 = vadd.f32 %v1523, %v1655
        %1657 = vmatmul.bf16.gmra.mxu0 %v1000
        %v1658 = vpop.f32.mrf.mxu0
        %v1659 = vadd.f32 %v1526, %v1658
        %v1660 = vpop.f32.mrf.mxu0
        %v1661 = vadd.f32 %v1528, %v1660
        %1662 = vmatmul.bf16.gmra.mxu0 %v1005
        %v1663 = vpop.f32.mrf.mxu0
        %v1664 = vadd.f32 %v1531, %v1663
        %v1665 = vpop.f32.mrf.mxu0
        %v1666 = vadd.f32 %v1533, %v1665
        %1667 = vmatmul.bf16.gmra.mxu0 %v1010
        %v1668 = vpop.f32.mrf.mxu0
        %v1669 = vadd.f32 %v1536, %v1668
        %v1670 = vpop.f32.mrf.mxu0
        %1671 = vdwg.mxu0
        %1672 = vmatpush.bf16.msra.mxu0 %v1281
        %1673 = vmatpush.bf16.msra.mxu0 %v1280
        %1674 = vmatpush.bf16.msra.mxu0 %v1279
        %1675 = vmatpush.bf16.msra.mxu0 %v1278
        %1676 = vmatpush.bf16.msra.mxu0 %v1277
        %1677 = vmatpush.bf16.msra.mxu0 %v1276
        %1678 = vmatpush.bf16.msra.mxu0 %v1275
        %1679 = vmatpush.bf16.msra.mxu0 %v1274
        %1680 = vmatmul.bf16.gmra.mxu0 %v891
        %v1681 = vpop.f32.mrf.mxu0
        %v1682 = vadd.f32 %v1549, %v1681
        %v1683 = vpop.f32.mrf.mxu0
        %v1684 = vadd.f32 %v1551, %v1683
        %1685 = vmatmul.bf16.gmra.mxu0 %v896
        %v1686 = vpop.f32.mrf.mxu0
        %v1687 = vadd.f32 %v1554, %v1686
        %v1688 = vpop.f32.mrf.mxu0
        %v1689 = vadd.f32 %v1556, %v1688
        %1690 = vmatmul.bf16.gmra.mxu0 %v901
        %v1691 = vpop.f32.mrf.mxu0
        %v1692 = vadd.f32 %v1559, %v1691
        %v1693 = vpop.f32.mrf.mxu0
        %v1694 = vadd.f32 %v1561, %v1693
        %1695 = vmatmul.bf16.gmra.mxu0 %v906
        %v1696 = vpop.f32.mrf.mxu0
        %v1697 = vadd.f32 %v1564, %v1696
        %v1698 = vpop.f32.mrf.mxu0
        %v1699 = vadd.f32 %v1566, %v1698
        %1700 = vmatmul.bf16.gmra.mxu0 %v911
        %v1701 = vpop.f32.mrf.mxu0
        %v1702 = vadd.f32 %v1569, %v1701
        %v1703 = vpop.f32.mrf.mxu0
        %v1704 = vadd.f32 %v1571, %v1703
        %1705 = vmatmul.bf16.gmra.mxu0 %v916
        %v1706 = vpop.f32.mrf.mxu0
        %v1707 = vadd.f32 %v1574, %v1706
        %v1708 = vpop.f32.mrf.mxu0
        %v1709 = vadd.f32 %v1576, %v1708
        %1710 = vmatmul.bf16.gmra.mxu0 %v921
        %v1711 = vpop.f32.mrf.mxu0
        %v1712 = vadd.f32 %v1579, %v1711
        %v1713 = vpop.f32.mrf.mxu0
        %v1714 = vadd.f32 %v1581, %v1713
        %1715 = vmatmul.bf16.gmra.mxu0 %v926
        %v1716 = vpop.f32.mrf.mxu0
        %v1717 = vadd.f32 %v1584, %v1716
        %v1718 = vpop.f32.mrf.mxu0
        %v1719 = vadd.f32 %v1586, %v1718
        %1720 = vmatmul.bf16.gmra.mxu0 %v931
        %v1721 = vpop.f32.mrf.mxu0
        %v1722 = vadd.f32 %v1589, %v1721
        %v1723 = vpop.f32.mrf.mxu0
        %v1724 = vadd.f32 %v1591, %v1723
        %1725 = vmatmul.bf16.gmra.mxu0 %v936
        %v1726 = vpop.f32.mrf.mxu0
        %v1727 = vadd.f32 %v1594, %v1726
        %v1728 = vpop.f32.mrf.mxu0
        %v1729 = vadd.f32 %v1596, %v1728
        %1730 = vmatmul.bf16.gmra.mxu0 %v941
        %v1731 = vpop.f32.mrf.mxu0
        %v1732 = vadd.f32 %v1599, %v1731
        %v1733 = vpop.f32.mrf.mxu0
        %v1734 = vadd.f32 %v1601, %v1733
        %1735 = vmatmul.bf16.gmra.mxu0 %v946
        %v1736 = vpop.f32.mrf.mxu0
        %v1737 = vadd.f32 %v1604, %v1736
        %v1738 = vpop.f32.mrf.mxu0
        %v1739 = vadd.f32 %v1606, %v1738
        %1740 = vmatmul.bf16.gmra.mxu0 %v951
        %v1741 = vpop.f32.mrf.mxu0
        %v1742 = vadd.f32 %v1609, %v1741
        %v1743 = vpop.f32.mrf.mxu0
        %v1744 = vadd.f32 %v1611, %v1743
        %1745 = vmatmul.bf16.gmra.mxu0 %v956
        %v1746 = vpop.f32.mrf.mxu0
        %v1747 = vadd.f32 %v1614, %v1746
        %v1748 = vpop.f32.mrf.mxu0
        %v1749 = vadd.f32 %v1616, %v1748
        %1750 = vmatmul.bf16.gmra.mxu0 %v961
        %v1751 = vpop.f32.mrf.mxu0
        %v1752 = vadd.f32 %v1619, %v1751
        %v1753 = vpop.f32.mrf.mxu0
        %v1754 = vadd.f32 %v1621, %v1753
        %1755 = vmatmul.bf16.gmra.mxu0 %v966
        %v1756 = vpop.f32.mrf.mxu0
        %v1757 = vadd.f32 %v1624, %v1756
        %v1758 = vpop.f32.mrf.mxu0
        %v1759 = vadd.f32 %v1626, %v1758
        %1760 = vmatmul.bf16.gmra.mxu0 %v971
        %v1761 = vpop.f32.mrf.mxu0
        %v1762 = vadd.f32 %v1629, %v1761
        %v1763 = vpop.f32.mrf.mxu0
        %v1764 = vadd.f32 %v1631, %v1763
        %1765 = vmatmul.bf16.gmra.mxu0 %v976
        %v1766 = vpop.f32.mrf.mxu0
        %v1767 = vadd.f32 %v1634, %v1766
        %v1768 = vpop.f32.mrf.mxu0
        %v1769 = vadd.f32 %v1636, %v1768
        %1770 = vmatmul.bf16.gmra.mxu0 %v981
        %v1771 = vpop.f32.mrf.mxu0
        %v1772 = vadd.f32 %v1639, %v1771
        %v1773 = vpop.f32.mrf.mxu0
        %v1774 = vadd.f32 %v1641, %v1773
        %1775 = vmatmul.bf16.gmra.mxu0 %v986
        %v1776 = vpop.f32.mrf.mxu0
        %v1777 = vadd.f32 %v1644, %v1776
        %v1778 = vpop.f32.mrf.mxu0
        %v1779 = vadd.f32 %v1646, %v1778
        %1780 = vmatmul.bf16.gmra.mxu0 %v991
        %v1781 = vpop.f32.mrf.mxu0
        %v1782 = vadd.f32 %v1649, %v1781
        %v1783 = vpop.f32.mrf.mxu0
        %v1784 = vadd.f32 %v1651, %v1783
        %1785 = vmatmul.bf16.gmra.mxu0 %v996
        %v1786 = vpop.f32.mrf.mxu0
        %v1787 = vadd.f32 %v1654, %v1786
        %v1788 = vpop.f32.mrf.mxu0
        %v1789 = vadd.f32 %v1656, %v1788
        %1790 = vmatmul.bf16.gmra.mxu0 %v1001
        %v1791 = vpop.f32.mrf.mxu0
        %v1792 = vadd.f32 %v1659, %v1791
        %v1793 = vpop.f32.mrf.mxu0
        %v1794 = vadd.f32 %v1661, %v1793
        %1795 = vmatmul.bf16.gmra.mxu0 %v1006
        %v1796 = vpop.f32.mrf.mxu0
        %v1797 = vadd.f32 %v1664, %v1796
        %v1798 = vpop.f32.mrf.mxu0
        %v1799 = vadd.f32 %v1666, %v1798
        %1800 = vmatmul.bf16.gmra.mxu0 %v1011
        %v1801 = vpop.f32.mrf.mxu0
        %v1802 = vadd.f32 %v1669, %v1801
        %v1803 = vpop.f32.mrf.mxu0
        %1804 = vdwg.mxu0
        %1805 = vmatpush.bf16.msra.mxu0 %v1289
        %1806 = vmatpush.bf16.msra.mxu0 %v1288
        %1807 = vmatpush.bf16.msra.mxu0 %v1287
        %1808 = vmatpush.bf16.msra.mxu0 %v1286
        %1809 = vmatpush.bf16.msra.mxu0 %v1285
        %1810 = vmatpush.bf16.msra.mxu0 %v1284
        %1811 = vmatpush.bf16.msra.mxu0 %v1283
        %1812 = vmatpush.bf16.msra.mxu0 %v1282
        %1813 = vmatmul.bf16.gmra.mxu0 %v892
        %v1814 = vpop.f32.mrf.mxu0
        %v1815 = vadd.f32 %v1682, %v1814
        %v1816 = vpop.f32.mrf.mxu0
        %v1817 = vadd.f32 %v1684, %v1816
        %1818 = vmatmul.bf16.gmra.mxu0 %v897
        %v1819 = vpop.f32.mrf.mxu0
        %v1820 = vadd.f32 %v1687, %v1819
        %v1821 = vpop.f32.mrf.mxu0
        %v1822 = vadd.f32 %v1689, %v1821
        %1823 = vmatmul.bf16.gmra.mxu0 %v902
        %v1824 = vpop.f32.mrf.mxu0
        %v1825 = vadd.f32 %v1692, %v1824
        %v1826 = vpop.f32.mrf.mxu0
        %v1827 = vadd.f32 %v1694, %v1826
        %1828 = vmatmul.bf16.gmra.mxu0 %v907
        %v1829 = vpop.f32.mrf.mxu0
        %v1830 = vadd.f32 %v1697, %v1829
        %v1831 = vpop.f32.mrf.mxu0
        %v1832 = vadd.f32 %v1699, %v1831
        %1833 = vmatmul.bf16.gmra.mxu0 %v912
        %v1834 = vpop.f32.mrf.mxu0
        %v1835 = vadd.f32 %v1702, %v1834
        %v1836 = vpop.f32.mrf.mxu0
        %v1837 = vadd.f32 %v1704, %v1836
        %1838 = vmatmul.bf16.gmra.mxu0 %v917
        %v1839 = vpop.f32.mrf.mxu0
        %v1840 = vadd.f32 %v1707, %v1839
        %v1841 = vpop.f32.mrf.mxu0
        %v1842 = vadd.f32 %v1709, %v1841
        %1843 = vmatmul.bf16.gmra.mxu0 %v922
        %v1844 = vpop.f32.mrf.mxu0
        %v1845 = vadd.f32 %v1712, %v1844
        %v1846 = vpop.f32.mrf.mxu0
        %v1847 = vadd.f32 %v1714, %v1846
        %1848 = vmatmul.bf16.gmra.mxu0 %v927
        %v1849 = vpop.f32.mrf.mxu0
        %v1850 = vadd.f32 %v1717, %v1849
        %v1851 = vpop.f32.mrf.mxu0
        %v1852 = vadd.f32 %v1719, %v1851
        %1853 = vmatmul.bf16.gmra.mxu0 %v932
        %v1854 = vpop.f32.mrf.mxu0
        %v1855 = vadd.f32 %v1722, %v1854
        %v1856 = vpop.f32.mrf.mxu0
        %v1857 = vadd.f32 %v1724, %v1856
        %1858 = vmatmul.bf16.gmra.mxu0 %v937
        %v1859 = vpop.f32.mrf.mxu0
        %v1860 = vadd.f32 %v1727, %v1859
        %v1861 = vpop.f32.mrf.mxu0
        %v1862 = vadd.f32 %v1729, %v1861
        %1863 = vmatmul.bf16.gmra.mxu0 %v942
        %v1864 = vpop.f32.mrf.mxu0
        %v1865 = vadd.f32 %v1732, %v1864
        %v1866 = vpop.f32.mrf.mxu0
        %v1867 = vadd.f32 %v1734, %v1866
        %1868 = vmatmul.bf16.gmra.mxu0 %v947
        %v1869 = vpop.f32.mrf.mxu0
        %v1870 = vadd.f32 %v1737, %v1869
        %v1871 = vpop.f32.mrf.mxu0
        %v1872 = vadd.f32 %v1739, %v1871
        %1873 = vmatmul.bf16.gmra.mxu0 %v952
        %v1874 = vpop.f32.mrf.mxu0
        %v1875 = vadd.f32 %v1742, %v1874
        %v1876 = vpop.f32.mrf.mxu0
        %v1877 = vadd.f32 %v1744, %v1876
        %1878 = vmatmul.bf16.gmra.mxu0 %v957
        %v1879 = vpop.f32.mrf.mxu0
        %v1880 = vadd.f32 %v1747, %v1879
        %v1881 = vpop.f32.mrf.mxu0
        %v1882 = vadd.f32 %v1749, %v1881
        %1883 = vmatmul.bf16.gmra.mxu0 %v962
        %v1884 = vpop.f32.mrf.mxu0
        %v1885 = vadd.f32 %v1752, %v1884
        %v1886 = vpop.f32.mrf.mxu0
        %v1887 = vadd.f32 %v1754, %v1886
        %1888 = vmatmul.bf16.gmra.mxu0 %v967
        %v1889 = vpop.f32.mrf.mxu0
        %v1890 = vadd.f32 %v1757, %v1889
        %v1891 = vpop.f32.mrf.mxu0
        %v1892 = vadd.f32 %v1759, %v1891
        %1893 = vmatmul.bf16.gmra.mxu0 %v972
        %v1894 = vpop.f32.mrf.mxu0
        %v1895 = vadd.f32 %v1762, %v1894
        %v1896 = vpop.f32.mrf.mxu0
        %v1897 = vadd.f32 %v1764, %v1896
        %1898 = vmatmul.bf16.gmra.mxu0 %v977
        %v1899 = vpop.f32.mrf.mxu0
        %v1900 = vadd.f32 %v1767, %v1899
        %v1901 = vpop.f32.mrf.mxu0
        %v1902 = vadd.f32 %v1769, %v1901
        %1903 = vmatmul.bf16.gmra.mxu0 %v982
        %v1904 = vpop.f32.mrf.mxu0
        %v1905 = vadd.f32 %v1772, %v1904
        %v1906 = vpop.f32.mrf.mxu0
        %v1907 = vadd.f32 %v1774, %v1906
        %1908 = vmatmul.bf16.gmra.mxu0 %v987
        %v1909 = vpop.f32.mrf.mxu0
        %v1910 = vadd.f32 %v1777, %v1909
        %v1911 = vpop.f32.mrf.mxu0
        %v1912 = vadd.f32 %v1779, %v1911
        %1913 = vmatmul.bf16.gmra.mxu0 %v992
        %v1914 = vpop.f32.mrf.mxu0
        %v1915 = vadd.f32 %v1782, %v1914
        %v1916 = vpop.f32.mrf.mxu0
        %v1917 = vadd.f32 %v1784, %v1916
        %1918 = vmatmul.bf16.gmra.mxu0 %v997
        %v1919 = vpop.f32.mrf.mxu0
        %v1920 = vadd.f32 %v1787, %v1919
        %v1921 = vpop.f32.mrf.mxu0
        %v1922 = vadd.f32 %v1789, %v1921
        %1923 = vmatmul.bf16.gmra.mxu0 %v1002
        %v1924 = vpop.f32.mrf.mxu0
        %v1925 = vadd.f32 %v1792, %v1924
        %v1926 = vpop.f32.mrf.mxu0
        %v1927 = vadd.f32 %v1794, %v1926
        %1928 = vmatmul.bf16.gmra.mxu0 %v1007
        %v1929 = vpop.f32.mrf.mxu0
        %v1930 = vadd.f32 %v1797, %v1929
        %v1931 = vpop.f32.mrf.mxu0
        %v1932 = vadd.f32 %v1799, %v1931
        %1933 = vmatmul.bf16.gmra.mxu0 %v1012
        %v1934 = vpop.f32.mrf.mxu0
        %v1935 = vadd.f32 %v1802, %v1934
        %v1936 = vpop.f32.mrf.mxu0
        %1937 = vdwg.mxu0
        %1938 = vmatpush.bf16.msra.mxu0 0
        %1939 = vmatpush.bf16.msra.mxu0 0
        %1940 = vmatpush.bf16.msra.mxu0 0
        %1941 = vmatpush.bf16.msra.mxu0 0
        %1942 = vmatpush.bf16.msra.mxu0 %v1293
        %1943 = vmatpush.bf16.msra.mxu0 %v1292
        %1944 = vmatpush.bf16.msra.mxu0 %v1291
        %1945 = vmatpush.bf16.msra.mxu0 %v1290
        %1946 = vmatmul.bf16.gmra.mxu0 %v1332
        %v1947 = vpop.f32.mrf.mxu0
        %v1948 = vadd.f32 %v1815, %v1947
        %v1949 = vpop.f32.mrf.mxu0
        %v1950 = vadd.f32 %v1817, %v1949
        %1951 = vmatmul.bf16.gmra.mxu0 %v1335
        %v1952 = vpop.f32.mrf.mxu0
        %v1953 = vadd.f32 %v1820, %v1952
        %v1954 = vpop.f32.mrf.mxu0
        %v1955 = vadd.f32 %v1822, %v1954
        %1956 = vmatmul.bf16.gmra.mxu0 %v1338
        %v1957 = vpop.f32.mrf.mxu0
        %v1958 = vadd.f32 %v1825, %v1957
        %v1959 = vpop.f32.mrf.mxu0
        %v1960 = vadd.f32 %v1827, %v1959
        %1961 = vmatmul.bf16.gmra.mxu0 %v1341
        %v1962 = vpop.f32.mrf.mxu0
        %v1963 = vadd.f32 %v1830, %v1962
        %v1964 = vpop.f32.mrf.mxu0
        %v1965 = vadd.f32 %v1832, %v1964
        %1966 = vmatmul.bf16.gmra.mxu0 %v1344
        %v1967 = vpop.f32.mrf.mxu0
        %v1968 = vadd.f32 %v1835, %v1967
        %v1969 = vpop.f32.mrf.mxu0
        %v1970 = vadd.f32 %v1837, %v1969
        %1971 = vmatmul.bf16.gmra.mxu0 %v1347
        %v1972 = vpop.f32.mrf.mxu0
        %v1973 = vadd.f32 %v1840, %v1972
        %v1974 = vpop.f32.mrf.mxu0
        %v1975 = vadd.f32 %v1842, %v1974
        %1976 = vmatmul.bf16.gmra.mxu0 %v1350
        %v1977 = vpop.f32.mrf.mxu0
        %v1978 = vadd.f32 %v1845, %v1977
        %v1979 = vpop.f32.mrf.mxu0
        %v1980 = vadd.f32 %v1847, %v1979
        %1981 = vmatmul.bf16.gmra.mxu0 %v1353
        %v1982 = vpop.f32.mrf.mxu0
        %v1983 = vadd.f32 %v1850, %v1982
        %v1984 = vpop.f32.mrf.mxu0
        %v1985 = vadd.f32 %v1852, %v1984
        %1986 = vmatmul.bf16.gmra.mxu0 %v1356
        %v1987 = vpop.f32.mrf.mxu0
        %v1988 = vadd.f32 %v1855, %v1987
        %v1989 = vpop.f32.mrf.mxu0
        %v1990 = vadd.f32 %v1857, %v1989
        %1991 = vmatmul.bf16.gmra.mxu0 %v1359
        %v1992 = vpop.f32.mrf.mxu0
        %v1993 = vadd.f32 %v1860, %v1992
        %v1994 = vpop.f32.mrf.mxu0
        %v1995 = vadd.f32 %v1862, %v1994
        %1996 = vmatmul.bf16.gmra.mxu0 %v1362
        %v1997 = vpop.f32.mrf.mxu0
        %v1998 = vadd.f32 %v1865, %v1997
        %v1999 = vpop.f32.mrf.mxu0
        %v2000 = vadd.f32 %v1867, %v1999
        %2001 = vmatmul.bf16.gmra.mxu0 %v1365
        %v2002 = vpop.f32.mrf.mxu0
        %v2003 = vadd.f32 %v1870, %v2002
        %v2004 = vpop.f32.mrf.mxu0
        %v2005 = vadd.f32 %v1872, %v2004
        %2006 = vmatmul.bf16.gmra.mxu0 %v1368
        %v2007 = vpop.f32.mrf.mxu0
        %v2008 = vadd.f32 %v1875, %v2007
        %v2009 = vpop.f32.mrf.mxu0
        %v2010 = vadd.f32 %v1877, %v2009
        %2011 = vmatmul.bf16.gmra.mxu0 %v1371
        %v2012 = vpop.f32.mrf.mxu0
        %v2013 = vadd.f32 %v1880, %v2012
        %v2014 = vpop.f32.mrf.mxu0
        %v2015 = vadd.f32 %v1882, %v2014
        %2016 = vmatmul.bf16.gmra.mxu0 %v1374
        %v2017 = vpop.f32.mrf.mxu0
        %v2018 = vadd.f32 %v1885, %v2017
        %v2019 = vpop.f32.mrf.mxu0
        %v2020 = vadd.f32 %v1887, %v2019
        %2021 = vmatmul.bf16.gmra.mxu0 %v1377
        %v2022 = vpop.f32.mrf.mxu0
        %v2023 = vadd.f32 %v1890, %v2022
        %v2024 = vpop.f32.mrf.mxu0
        %v2025 = vadd.f32 %v1892, %v2024
        %2026 = vmatmul.bf16.gmra.mxu0 %v1380
        %v2027 = vpop.f32.mrf.mxu0
        %v2028 = vadd.f32 %v1895, %v2027
        %v2029 = vpop.f32.mrf.mxu0
        %v2030 = vadd.f32 %v1897, %v2029
        %2031 = vmatmul.bf16.gmra.mxu0 %v1383
        %v2032 = vpop.f32.mrf.mxu0
        %v2033 = vadd.f32 %v1900, %v2032
        %v2034 = vpop.f32.mrf.mxu0
        %v2035 = vadd.f32 %v1902, %v2034
        %2036 = vmatmul.bf16.gmra.mxu0 %v1386
        %v2037 = vpop.f32.mrf.mxu0
        %v2038 = vadd.f32 %v1905, %v2037
        %v2039 = vpop.f32.mrf.mxu0
        %v2040 = vadd.f32 %v1907, %v2039
        %2041 = vmatmul.bf16.gmra.mxu0 %v1389
        %v2042 = vpop.f32.mrf.mxu0
        %v2043 = vadd.f32 %v1910, %v2042
        %v2044 = vpop.f32.mrf.mxu0
        %v2045 = vadd.f32 %v1912, %v2044
        %2046 = vmatmul.bf16.gmra.mxu0 %v1392
        %v2047 = vpop.f32.mrf.mxu0
        %v2048 = vadd.f32 %v1915, %v2047
        %v2049 = vpop.f32.mrf.mxu0
        %v2050 = vadd.f32 %v1917, %v2049
        %2051 = vmatmul.bf16.gmra.mxu0 %v1395
        %v2052 = vpop.f32.mrf.mxu0
        %v2053 = vadd.f32 %v1920, %v2052
        %v2054 = vpop.f32.mrf.mxu0
        %v2055 = vadd.f32 %v1922, %v2054
        %2056 = vmatmul.bf16.gmra.mxu0 %v1398
        %v2057 = vpop.f32.mrf.mxu0
        %v2058 = vadd.f32 %v1925, %v2057
        %v2059 = vpop.f32.mrf.mxu0
        %v2060 = vadd.f32 %v1927, %v2059
        %2061 = vmatmul.bf16.gmra.mxu0 %v1401
        %v2062 = vpop.f32.mrf.mxu0
        %v2063 = vadd.f32 %v1930, %v2062
        %v2064 = vpop.f32.mrf.mxu0
        %v2065 = vadd.f32 %v1932, %v2064
        %2066 = vmatmul.bf16.gmra.mxu0 %v1404
        %v2067 = vpop.f32.mrf.mxu0
        %v2068 = vadd.f32 %v1935, %v2067
        %v2069 = vpop.f32.mrf.mxu0
        %2070 = vdwg.mxu0
        %v2071 = vmax.f32 %v1948, 0.0
        %v2072 = vmax.f32 %v1950, 0.0
        %v2073 = vmax.f32 %v1953, 0.0
        %v2074 = vmax.f32 %v1955, 0.0
        %v2075 = vmax.f32 %v1958, 0.0
        %v2076 = vmax.f32 %v1960, 0.0
        %v2077 = vmax.f32 %v1963, 0.0
        %v2078 = vmax.f32 %v1965, 0.0
        %v2079 = vmax.f32 %v1968, 0.0
        %v2080 = vmax.f32 %v1970, 0.0
        %v2081 = vmax.f32 %v1973, 0.0
        %v2082 = vmax.f32 %v1975, 0.0
        %v2083 = vmax.f32 %v1978, 0.0
        %v2084 = vmax.f32 %v1980, 0.0
        %v2085 = vmax.f32 %v1983, 0.0
        %v2086 = vmax.f32 %v1985, 0.0
        %v2087 = vmax.f32 %v1988, 0.0
        %v2088 = vmax.f32 %v1990, 0.0
        %v2089 = vmax.f32 %v1993, 0.0
        %v2090 = vmax.f32 %v1995, 0.0
        %v2091 = vmax.f32 %v1998, 0.0
        %v2092 = vmax.f32 %v2000, 0.0
        %v2093 = vmax.f32 %v2003, 0.0
        %v2094 = vmax.f32 %v2005, 0.0
        %v2095 = vmax.f32 %v2008, 0.0
        %v2096 = vmax.f32 %v2010, 0.0
        %v2097 = vmax.f32 %v2013, 0.0
        %v2098 = vmax.f32 %v2015, 0.0
        %v2099 = vmax.f32 %v2018, 0.0
        %v2100 = vmax.f32 %v2020, 0.0
        %v2101 = vmax.f32 %v2023, 0.0
        %v2102 = vmax.f32 %v2025, 0.0
        %v2103 = vmax.f32 %v2028, 0.0
        %v2104 = vmax.f32 %v2030, 0.0
        %v2105 = vmax.f32 %v2033, 0.0
        %v2106 = vmax.f32 %v2035, 0.0
        %v2107 = vmax.f32 %v2038, 0.0
        %v2108 = vmax.f32 %v2040, 0.0
        %v2109 = vmax.f32 %v2043, 0.0
        %v2110 = vmax.f32 %v2045, 0.0
        %v2111 = vmax.f32 %v2048, 0.0
        %v2112 = vmax.f32 %v2050, 0.0
        %v2113 = vmax.f32 %v2053, 0.0
        %v2114 = vmax.f32 %v2055, 0.0
        %v2115 = vmax.f32 %v2058, 0.0
        %v2116 = vmax.f32 %v2060, 0.0
        %v2117 = vmax.f32 %v2063, 0.0
        %v2118 = vmax.f32 %v2065, 0.0
        %v2119 = vmax.f32 %v2068, 0.0
        %v2120 = vpack.c.bf16 %v2071, %v2071
        %v2121 = vpack.c.bf16 %v2072, %v2072
        %v2122 = vpack.c.bf16 %v2073, %v2073
        %v2123 = vpack.c.bf16 %v2074, %v2074
        %v2124 = vpack.c.bf16 %v2075, %v2075
        %v2125 = vpack.c.bf16 %v2076, %v2076
        %v2126 = vpack.c.bf16 %v2077, %v2077
        %v2127 = vpack.c.bf16 %v2078, %v2078
        %v2128 = vpack.c.bf16 %v2079, %v2079
        %v2129 = vpack.c.bf16 %v2080, %v2080
        %v2130 = vpack.c.bf16 %v2081, %v2081
        %v2131 = vpack.c.bf16 %v2082, %v2082
        %v2132 = vpack.c.bf16 %v2083, %v2083
        %v2133 = vpack.c.bf16 %v2084, %v2084
        %v2134 = vpack.c.bf16 %v2085, %v2085
        %v2135 = vpack.c.bf16 %v2086, %v2086
        %v2136 = vpack.c.bf16 %v2087, %v2087
        %v2137 = vpack.c.bf16 %v2088, %v2088
        %v2138 = vpack.c.bf16 %v2089, %v2089
        %v2139 = vpack.c.bf16 %v2090, %v2090
        %v2140 = vpack.c.bf16 %v2091, %v2091
        %v2141 = vpack.c.bf16 %v2092, %v2092
        %v2142 = vpack.c.bf16 %v2093, %v2093
        %v2143 = vpack.c.bf16 %v2094, %v2094
        %v2144 = vpack.c.bf16 %v2095, %v2095
        %v2145 = vpack.c.bf16 %v2096, %v2096
        %v2146 = vpack.c.bf16 %v2097, %v2097
        %v2147 = vpack.c.bf16 %v2098, %v2098
        %v2148 = vpack.c.bf16 %v2099, %v2099
        %v2149 = vpack.c.bf16 %v2100, %v2100
        %v2150 = vpack.c.bf16 %v2101, %v2101
        %v2151 = vpack.c.bf16 %v2102, %v2102
        %v2152 = vpack.c.bf16 %v2103, %v2103
        %v2153 = vpack.c.bf16 %v2104, %v2104
        %v2154 = vpack.c.bf16 %v2105, %v2105
        %v2155 = vpack.c.bf16 %v2106, %v2106
        %v2156 = vpack.c.bf16 %v2107, %v2107
        %v2157 = vpack.c.bf16 %v2108, %v2108
        %v2158 = vpack.c.bf16 %v2109, %v2109
        %v2159 = vpack.c.bf16 %v2110, %v2110
        %v2160 = vpack.c.bf16 %v2111, %v2111
        %v2161 = vpack.c.bf16 %v2112, %v2112
        %v2162 = vpack.c.bf16 %v2113, %v2113
        %v2163 = vpack.c.bf16 %v2114, %v2114
        %v2164 = vpack.c.bf16 %v2115, %v2115
        %v2165 = vpack.c.bf16 %v2116, %v2116
        %v2166 = vpack.c.bf16 %v2117, %v2117
        %v2167 = vpack.c.bf16 %v2118, %v2118
        %v2168 = vpack.c.bf16 %v2119, %v2119
        %vm2169 = vcmask 519168
        %2170 = vst.msk [vmem:[#allocation2] sm:$0xf] %vm2169, %v2120
        %2171 = vst.msk [vmem:[#allocation2 + $0x4] sm:$0xf] %vm2169, %v2121
        %2172 = vst.msk [vmem:[#allocation2 + $0x8] sm:$0xf] %vm2169, %v2122
        %2173 = vst.msk [vmem:[#allocation2 + $0xc] sm:$0xf] %vm2169, %v2123
        %2174 = vst.msk [vmem:[#allocation2 + $0x10] sm:$0xf] %vm2169, %v2124
        %2175 = vst.msk [vmem:[#allocation2 + $0x14] sm:$0xf] %vm2169, %v2125
        %2176 = vst.msk [vmem:[#allocation2 + $0x18] sm:$0xf] %vm2169, %v2126
        %2177 = vst.msk [vmem:[#allocation2 + $0x1c] sm:$0xf] %vm2169, %v2127
        %2178 = vst.msk [vmem:[#allocation2 + $0x20] sm:$0xf] %vm2169, %v2128
        %2179 = vst.msk [vmem:[#allocation2 + $0x24] sm:$0xf] %vm2169, %v2129
        %2180 = vst.msk [vmem:[#allocation2 + $0x28] sm:$0xf] %vm2169, %v2130
        %2181 = vst.msk [vmem:[#allocation2 + $0x2c] sm:$0xf] %vm2169, %v2131
        %2182 = vst.msk [vmem:[#allocation2 + $0x30] sm:$0xf] %vm2169, %v2132
        %2183 = vst.msk [vmem:[#allocation2 + $0x34] sm:$0xf] %vm2169, %v2133
        %2184 = vst.msk [vmem:[#allocation2 + $0x38] sm:$0xf] %vm2169, %v2134
        %2185 = vst.msk [vmem:[#allocation2 + $0x3c] sm:$0xf] %vm2169, %v2135
        %2186 = vst.msk [vmem:[#allocation2 + $0x40] sm:$0xf] %vm2169, %v2136
        %2187 = vst.msk [vmem:[#allocation2 + $0x44] sm:$0xf] %vm2169, %v2137
        %2188 = vst.msk [vmem:[#allocation2 + $0x48] sm:$0xf] %vm2169, %v2138
        %2189 = vst.msk [vmem:[#allocation2 + $0x4c] sm:$0xf] %vm2169, %v2139
        %2190 = vst.msk [vmem:[#allocation2 + $0x50] sm:$0xf] %vm2169, %v2140
        %2191 = vst.msk [vmem:[#allocation2 + $0x54] sm:$0xf] %vm2169, %v2141
        %2192 = vst.msk [vmem:[#allocation2 + $0x58] sm:$0xf] %vm2169, %v2142
        %2193 = vst.msk [vmem:[#allocation2 + $0x5c] sm:$0xf] %vm2169, %v2143
        %2194 = vst.msk [vmem:[#allocation2 + $0x60] sm:$0xf] %vm2169, %v2144
        %2195 = vst.msk [vmem:[#allocation2 + $0x64] sm:$0xf] %vm2169, %v2145
        %2196 = vst.msk [vmem:[#allocation2 + $0x68] sm:$0xf] %vm2169, %v2146
        %2197 = vst.msk [vmem:[#allocation2 + $0x6c] sm:$0xf] %vm2169, %v2147
        %2198 = vst.msk [vmem:[#allocation2 + $0x70] sm:$0xf] %vm2169, %v2148
        %2199 = vst.msk [vmem:[#allocation2 + $0x74] sm:$0xf] %vm2169, %v2149
        %2200 = vst.msk [vmem:[#allocation2 + $0x78] sm:$0xf] %vm2169, %v2150
        %2201 = vst.msk [vmem:[#allocation2 + $0x7c] sm:$0xf] %vm2169, %v2151
        %2202 = vst.msk [vmem:[#allocation2 + $0x80] sm:$0xf] %vm2169, %v2152
        %2203 = vst.msk [vmem:[#allocation2 + $0x84] sm:$0xf] %vm2169, %v2153
        %2204 = vst.msk [vmem:[#allocation2 + $0x88] sm:$0xf] %vm2169, %v2154
        %2205 = vst.msk [vmem:[#allocation2 + $0x8c] sm:$0xf] %vm2169, %v2155
        %2206 = vst.msk [vmem:[#allocation2 + $0x90] sm:$0xf] %vm2169, %v2156
        %2207 = vst.msk [vmem:[#allocation2 + $0x94] sm:$0xf] %vm2169, %v2157
        %2208 = vst.msk [vmem:[#allocation2 + $0x98] sm:$0xf] %vm2169, %v2158
        %2209 = vst.msk [vmem:[#allocation2 + $0x9c] sm:$0xf] %vm2169, %v2159
        %2210 = vst.msk [vmem:[#allocation2 + $0xa0] sm:$0xf] %vm2169, %v2160
        %2211 = vst.msk [vmem:[#allocation2 + $0xa4] sm:$0xf] %vm2169, %v2161
        %2212 = vst.msk [vmem:[#allocation2 + $0xa8] sm:$0xf] %vm2169, %v2162
        %2213 = vst.msk [vmem:[#allocation2 + $0xac] sm:$0xf] %vm2169, %v2163
        %2214 = vst.msk [vmem:[#allocation2 + $0xb0] sm:$0xf] %vm2169, %v2164
        %2215 = vst.msk [vmem:[#allocation2 + $0xb4] sm:$0xf] %vm2169, %v2165
        %2216 = vst.msk [vmem:[#allocation2 + $0xb8] sm:$0xf] %vm2169, %v2166
        %2217 = vst.msk [vmem:[#allocation2 + $0xbc] sm:$0xf] %vm2169, %v2167
        %2218 = vst.msk [vmem:[#allocation2 + $0xc0] sm:$0xf] %vm2169, %v2168
        %2219 = vst [vmem:[#allocation3] sm:$0xff] 0.0
        %2220 = vst [vmem:[#allocation3 + $0x8] sm:$0xff] 0.0
        %2221 = vst [vmem:[#allocation3 + $0x10] sm:$0xff] 0.0
        %2222 = vst [vmem:[#allocation3 + $0x18] sm:$0xff] 0.0
      $region52: #{net_forward.5} parent=47 // pred_fallthru
        _
      %v2223 = vld [vmem:[#allocation3] sm:$0xff]
      %v2224 = vld [vmem:[#allocation3 + $0x8] sm:$0xff]
      %v2225 = vld [vmem:[#allocation3 + $0x10] sm:$0xff]
      %v2226 = vld [vmem:[#allocation3 + $0x18] sm:$0xff]
      %s2227 = smul.u32 %s18, 56
      %s2228 = sshra.s32 %s2227, 3
      %s2229 = sand.u32 %s2227, 7
      %s2230 = smul.addr %s2228, 4
      %s2231 = scalar_lea.vmem [#allocation2], %s2230
      %v2232 = vld [vmem:[%s2231] sm:$0xf]
      %v2233 = vld [vmem:[%s267] sm:$0xff]
      %v2234 = vld [vmem:[%s267 + $0x8] sm:$0xff]
      %v2235 = vld [vmem:[%s267 + $0x10] sm:$0xff]
      %v2236 = vld [vmem:[%s267 + $0x18] sm:$0xff]
      %v2237 = vld [vmem:[%s267 + $0x20] sm:$0xff]
      %v2238 = vld [vmem:[%s267 + $0x28] sm:$0xff]
      %v2239 = vld [vmem:[%s267 + $0x30] sm:$0xff]
      %v2240 = vld [vmem:[%s267 + $0x38] sm:$0xff]
      %v2241 = vld [vmem:[%s267 + $0x40] sm:$0xff]
      %v2242 = vld [vmem:[%s267 + $0x48] sm:$0xff]
      %v2243 = vld [vmem:[%s267 + $0x50] sm:$0xff]
      %v2244 = vld [vmem:[%s267 + $0x58] sm:$0xff]
      %v2245 = vld [vmem:[%s267 + $0x60] sm:$0xff]
      %v2246 = vld [vmem:[%s267 + $0x68] sm:$0xff]
      %v2247 = vld [vmem:[%s267 + $0x70] sm:$0xff]
      %v2248 = vld [vmem:[%s267 + $0x78] sm:$0xff]
      %v2265 = vunpack.c.l.b16 %v2233
      %v2266 = vunpack.c.h.b16 %v2233
      %v2267 = vunpack.c.l.b16 %v2234
      %v2268 = vunpack.c.h.b16 %v2234
      %v2269 = vunpack.c.l.b16 %v2235
      %v2270 = vunpack.c.h.b16 %v2235
      %v2271 = vunpack.c.l.b16 %v2236
      %v2272 = vunpack.c.h.b16 %v2236
      %v2273 = vunpack.c.l.b16 %v2237
      %v2274 = vunpack.c.h.b16 %v2237
      %v2275 = vunpack.c.l.b16 %v2238
      %v2276 = vunpack.c.h.b16 %v2238
      %v2277 = vunpack.c.l.b16 %v2239
      %v2278 = vunpack.c.h.b16 %v2239
      %v2279 = vunpack.c.l.b16 %v2240
      %v2280 = vunpack.c.h.b16 %v2240
      %v2281 = vunpack.c.l.b16 %v2241
      %v2282 = vunpack.c.h.b16 %v2241
      %v2283 = vunpack.c.l.b16 %v2242
      %v2284 = vunpack.c.h.b16 %v2242
      %v2285 = vunpack.c.l.b16 %v2243
      %v2286 = vunpack.c.h.b16 %v2243
      %v2287 = vunpack.c.l.b16 %v2244
      %v2288 = vunpack.c.h.b16 %v2244
      %v2289 = vunpack.c.l.b16 %v2245
      %v2290 = vunpack.c.h.b16 %v2245
      %v2291 = vunpack.c.l.b16 %v2246
      %v2292 = vunpack.c.h.b16 %v2246
      %v2293 = vunpack.c.l.b16 %v2247
      %v2294 = vunpack.c.h.b16 %v2247
      %v2295 = vunpack.c.l.b16 %v2248
      %v2296 = vunpack.c.h.b16 %v2248
      %v2297 = vpack.c.b16 %v2269, %v2265
      %v2298 = vpack.c.b16 %v2270, %v2266
      %v2299 = vpack.c.b16 %v2271, %v2267
      %v2300 = vpack.c.b16 %v2272, %v2268
      %v2301 = vpack.c.b16 %v2277, %v2273
      %v2302 = vpack.c.b16 %v2278, %v2274
      %v2303 = vpack.c.b16 %v2279, %v2275
      %v2304 = vpack.c.b16 %v2280, %v2276
      %v2305 = vpack.c.b16 %v2285, %v2281
      %v2306 = vpack.c.b16 %v2286, %v2282
      %v2307 = vpack.c.b16 %v2287, %v2283
      %v2308 = vpack.c.b16 %v2288, %v2284
      %v2309 = vpack.c.b16 %v2293, %v2289
      %v2310 = vpack.c.b16 %v2294, %v2290
      %v2311 = vpack.c.b16 %v2295, %v2291
      %v2312 = vpack.c.b16 %v2296, %v2292
      %vm2329 = vcmask 523264
      %v2331 = vsel %vm2329, %v2232, 0
      %2333 = vmatpush.bf16.msra.mxu0 0
      %2334 = vmatpush.bf16.msra.mxu0 0
      %2335 = vmatpush.bf16.msra.mxu0 0
      %2336 = vmatpush.bf16.msra.mxu0 0
      %2337 = vmatpush.bf16.msra.mxu0 %v2309
      %2338 = vmatpush.bf16.msra.mxu0 %v2305
      %2339 = vmatpush.bf16.msra.mxu0 %v2301
      %2340 = vmatpush.bf16.msra.mxu0 %v2297
      %2341 = vmatmul.bf16.gmra.mxu0 %v2331
      %v2342 = vpop.f32.mrf.mxu0
      %v2343 = vadd.f32 0.0, %v2342
      %v2344 = vpop.f32.mrf.mxu0
      %2345 = vdwg.mxu0
      %2346 = vmatpush.bf16.msra.mxu0 0
      %2347 = vmatpush.bf16.msra.mxu0 0
      %2348 = vmatpush.bf16.msra.mxu0 0
      %2349 = vmatpush.bf16.msra.mxu0 0
      %2350 = vmatpush.bf16.msra.mxu0 %v2310
      %2351 = vmatpush.bf16.msra.mxu0 %v2306
      %2352 = vmatpush.bf16.msra.mxu0 %v2302
      %2353 = vmatpush.bf16.msra.mxu0 %v2298
      %2354 = vmatmul.bf16.gmra.mxu0 %v2331
      %v2355 = vpop.f32.mrf.mxu0
      %v2356 = vadd.f32 0.0, %v2355
      %v2357 = vpop.f32.mrf.mxu0
      %2358 = vdwg.mxu0
      %2359 = vmatpush.bf16.msra.mxu0 0
      %2360 = vmatpush.bf16.msra.mxu0 0
      %2361 = vmatpush.bf16.msra.mxu0 0
      %2362 = vmatpush.bf16.msra.mxu0 0
      %2363 = vmatpush.bf16.msra.mxu0 %v2311
      %2364 = vmatpush.bf16.msra.mxu0 %v2307
      %2365 = vmatpush.bf16.msra.mxu0 %v2303
      %2366 = vmatpush.bf16.msra.mxu0 %v2299
      %2367 = vmatmul.bf16.gmra.mxu0 %v2331
      %v2368 = vpop.f32.mrf.mxu0
      %v2369 = vadd.f32 0.0, %v2368
      %v2370 = vpop.f32.mrf.mxu0
      %2371 = vdwg.mxu0
      %2372 = vmatpush.bf16.msra.mxu0 0
      %2373 = vmatpush.bf16.msra.mxu0 0
      %2374 = vmatpush.bf16.msra.mxu0 0
      %2375 = vmatpush.bf16.msra.mxu0 0
      %2376 = vmatpush.bf16.msra.mxu0 %v2312
      %2377 = vmatpush.bf16.msra.mxu0 %v2308
      %2378 = vmatpush.bf16.msra.mxu0 %v2304
      %2379 = vmatpush.bf16.msra.mxu0 %v2300
      %2380 = vmatmul.bf16.gmra.mxu0 %v2331
      %v2381 = vpop.f32.mrf.mxu0
      %v2382 = vadd.f32 0.0, %v2381
      %v2383 = vpop.f32.mrf.mxu0
      %2384 = vdwg.mxu0
      %v2385 = vadd.f32 %v2223, %v2343
      %v2386 = vadd.f32 %v2224, %v2356
      %v2387 = vadd.f32 %v2225, %v2369
      %v2388 = vadd.f32 %v2226, %v2382
      %s2389 = smul.u32 %s18, 7
      %s2390 = sadd.s32 %s2389, 1
      %s2391 = smul.u32 %s2390, 8
      %s2392 = sshra.s32 %s2391, 3
      %s2393 = sand.u32 %s2391, 7
      %s2394 = smul.addr %s2392, 4
      %s2395 = scalar_lea.vmem [#allocation2], %s2394
      %v2396 = vld [vmem:[%s2395] sm:$0xf]
      %s2397 = scalar_lea.vmem %s267, 128
      %v2398 = vld [vmem:[%s2397] sm:$0xff]
      %v2399 = vld [vmem:[%s2397 + $0x8] sm:$0xff]
      %v2400 = vld [vmem:[%s2397 + $0x10] sm:$0xff]
      %v2401 = vld [vmem:[%s2397 + $0x18] sm:$0xff]
      %v2402 = vld [vmem:[%s2397 + $0x20] sm:$0xff]
      %v2403 = vld [vmem:[%s2397 + $0x28] sm:$0xff]
      %v2404 = vld [vmem:[%s2397 + $0x30] sm:$0xff]
      %v2405 = vld [vmem:[%s2397 + $0x38] sm:$0xff]
      %v2406 = vld [vmem:[%s2397 + $0x40] sm:$0xff]
      %v2407 = vld [vmem:[%s2397 + $0x48] sm:$0xff]
      %v2408 = vld [vmem:[%s2397 + $0x50] sm:$0xff]
      %v2409 = vld [vmem:[%s2397 + $0x58] sm:$0xff]
      %v2410 = vld [vmem:[%s2397 + $0x60] sm:$0xff]
      %v2411 = vld [vmem:[%s2397 + $0x68] sm:$0xff]
      %v2412 = vld [vmem:[%s2397 + $0x70] sm:$0xff]
      %v2413 = vld [vmem:[%s2397 + $0x78] sm:$0xff]
      %v2430 = vunpack.c.l.b16 %v2398
      %v2431 = vunpack.c.h.b16 %v2398
      %v2432 = vunpack.c.l.b16 %v2399
      %v2433 = vunpack.c.h.b16 %v2399
      %v2434 = vunpack.c.l.b16 %v2400
      %v2435 = vunpack.c.h.b16 %v2400
      %v2436 = vunpack.c.l.b16 %v2401
      %v2437 = vunpack.c.h.b16 %v2401
      %v2438 = vunpack.c.l.b16 %v2402
      %v2439 = vunpack.c.h.b16 %v2402
      %v2440 = vunpack.c.l.b16 %v2403
      %v2441 = vunpack.c.h.b16 %v2403
      %v2442 = vunpack.c.l.b16 %v2404
      %v2443 = vunpack.c.h.b16 %v2404
      %v2444 = vunpack.c.l.b16 %v2405
      %v2445 = vunpack.c.h.b16 %v2405
      %v2446 = vunpack.c.l.b16 %v2406
      %v2447 = vunpack.c.h.b16 %v2406
      %v2448 = vunpack.c.l.b16 %v2407
      %v2449 = vunpack.c.h.b16 %v2407
      %v2450 = vunpack.c.l.b16 %v2408
      %v2451 = vunpack.c.h.b16 %v2408
      %v2452 = vunpack.c.l.b16 %v2409
      %v2453 = vunpack.c.h.b16 %v2409
      %v2454 = vunpack.c.l.b16 %v2410
      %v2455 = vunpack.c.h.b16 %v2410
      %v2456 = vunpack.c.l.b16 %v2411
      %v2457 = vunpack.c.h.b16 %v2411
      %v2458 = vunpack.c.l.b16 %v2412
      %v2459 = vunpack.c.h.b16 %v2412
      %v2460 = vunpack.c.l.b16 %v2413
      %v2461 = vunpack.c.h.b16 %v2413
      %v2462 = vpack.c.b16 %v2434, %v2430
      %v2463 = vpack.c.b16 %v2435, %v2431
      %v2464 = vpack.c.b16 %v2436, %v2432
      %v2465 = vpack.c.b16 %v2437, %v2433
      %v2466 = vpack.c.b16 %v2442, %v2438
      %v2467 = vpack.c.b16 %v2443, %v2439
      %v2468 = vpack.c.b16 %v2444, %v2440
      %v2469 = vpack.c.b16 %v2445, %v2441
      %v2470 = vpack.c.b16 %v2450, %v2446
      %v2471 = vpack.c.b16 %v2451, %v2447
      %v2472 = vpack.c.b16 %v2452, %v2448
      %v2473 = vpack.c.b16 %v2453, %v2449
      %v2474 = vpack.c.b16 %v2458, %v2454
      %v2475 = vpack.c.b16 %v2459, %v2455
      %v2476 = vpack.c.b16 %v2460, %v2456
      %v2477 = vpack.c.b16 %v2461, %v2457
      %v2495 = vsel %vm2329, %v2396, 0
      %2497 = vmatpush.bf16.msra.mxu0 0
      %2498 = vmatpush.bf16.msra.mxu0 0
      %2499 = vmatpush.bf16.msra.mxu0 0
      %2500 = vmatpush.bf16.msra.mxu0 0
      %2501 = vmatpush.bf16.msra.mxu0 %v2474
      %2502 = vmatpush.bf16.msra.mxu0 %v2470
      %2503 = vmatpush.bf16.msra.mxu0 %v2466
      %2504 = vmatpush.bf16.msra.mxu0 %v2462
      %2505 = vmatmul.bf16.gmra.mxu0 %v2495
      %v2506 = vpop.f32.mrf.mxu0
      %v2507 = vadd.f32 0.0, %v2506
      %v2508 = vpop.f32.mrf.mxu0
      %2509 = vdwg.mxu0
      %2510 = vmatpush.bf16.msra.mxu0 0
      %2511 = vmatpush.bf16.msra.mxu0 0
      %2512 = vmatpush.bf16.msra.mxu0 0
      %2513 = vmatpush.bf16.msra.mxu0 0
      %2514 = vmatpush.bf16.msra.mxu0 %v2475
      %2515 = vmatpush.bf16.msra.mxu0 %v2471
      %2516 = vmatpush.bf16.msra.mxu0 %v2467
      %2517 = vmatpush.bf16.msra.mxu0 %v2463
      %2518 = vmatmul.bf16.gmra.mxu0 %v2495
      %v2519 = vpop.f32.mrf.mxu0
      %v2520 = vadd.f32 0.0, %v2519
      %v2521 = vpop.f32.mrf.mxu0
      %2522 = vdwg.mxu0
      %2523 = vmatpush.bf16.msra.mxu0 0
      %2524 = vmatpush.bf16.msra.mxu0 0
      %2525 = vmatpush.bf16.msra.mxu0 0
      %2526 = vmatpush.bf16.msra.mxu0 0
      %2527 = vmatpush.bf16.msra.mxu0 %v2476
      %2528 = vmatpush.bf16.msra.mxu0 %v2472
      %2529 = vmatpush.bf16.msra.mxu0 %v2468
      %2530 = vmatpush.bf16.msra.mxu0 %v2464
      %2531 = vmatmul.bf16.gmra.mxu0 %v2495
      %v2532 = vpop.f32.mrf.mxu0
      %v2533 = vadd.f32 0.0, %v2532
      %v2534 = vpop.f32.mrf.mxu0
      %2535 = vdwg.mxu0
      %2536 = vmatpush.bf16.msra.mxu0 0
      %2537 = vmatpush.bf16.msra.mxu0 0
      %2538 = vmatpush.bf16.msra.mxu0 0
      %2539 = vmatpush.bf16.msra.mxu0 0
      %2540 = vmatpush.bf16.msra.mxu0 %v2477
      %2541 = vmatpush.bf16.msra.mxu0 %v2473
      %2542 = vmatpush.bf16.msra.mxu0 %v2469
      %2543 = vmatpush.bf16.msra.mxu0 %v2465
      %2544 = vmatmul.bf16.gmra.mxu0 %v2495
      %v2545 = vpop.f32.mrf.mxu0
      %v2546 = vadd.f32 0.0, %v2545
      %v2547 = vpop.f32.mrf.mxu0
      %2548 = vdwg.mxu0
      %v2549 = vadd.f32 %v2385, %v2507
      %v2550 = vadd.f32 %v2386, %v2520
      %v2551 = vadd.f32 %v2387, %v2533
      %v2552 = vadd.f32 %v2388, %v2546
      %s2553 = sadd.s32 %s2389, 2
      %s2554 = smul.u32 %s2553, 8
      %s2555 = sshra.s32 %s2554, 3
      %s2556 = sand.u32 %s2554, 7
      %s2557 = smul.addr %s2555, 4
      %s2558 = scalar_lea.vmem [#allocation2], %s2557
      %v2559 = vld [vmem:[%s2558] sm:$0xf]
      %s2560 = scalar_lea.vmem %s267, 256
      %v2561 = vld [vmem:[%s2560] sm:$0xff]
      %v2562 = vld [vmem:[%s2560 + $0x8] sm:$0xff]
      %v2563 = vld [vmem:[%s2560 + $0x10] sm:$0xff]
      %v2564 = vld [vmem:[%s2560 + $0x18] sm:$0xff]
      %v2565 = vld [vmem:[%s2560 + $0x20] sm:$0xff]
      %v2566 = vld [vmem:[%s2560 + $0x28] sm:$0xff]
      %v2567 = vld [vmem:[%s2560 + $0x30] sm:$0xff]
      %v2568 = vld [vmem:[%s2560 + $0x38] sm:$0xff]
      %v2569 = vld [vmem:[%s2560 + $0x40] sm:$0xff]
      %v2570 = vld [vmem:[%s2560 + $0x48] sm:$0xff]
      %v2571 = vld [vmem:[%s2560 + $0x50] sm:$0xff]
      %v2572 = vld [vmem:[%s2560 + $0x58] sm:$0xff]
      %v2573 = vld [vmem:[%s2560 + $0x60] sm:$0xff]
      %v2574 = vld [vmem:[%s2560 + $0x68] sm:$0xff]
      %v2575 = vld [vmem:[%s2560 + $0x70] sm:$0xff]
      %v2576 = vld [vmem:[%s2560 + $0x78] sm:$0xff]
      %v2593 = vunpack.c.l.b16 %v2561
      %v2594 = vunpack.c.h.b16 %v2561
      %v2595 = vunpack.c.l.b16 %v2562
      %v2596 = vunpack.c.h.b16 %v2562
      %v2597 = vunpack.c.l.b16 %v2563
      %v2598 = vunpack.c.h.b16 %v2563
      %v2599 = vunpack.c.l.b16 %v2564
      %v2600 = vunpack.c.h.b16 %v2564
      %v2601 = vunpack.c.l.b16 %v2565
      %v2602 = vunpack.c.h.b16 %v2565
      %v2603 = vunpack.c.l.b16 %v2566
      %v2604 = vunpack.c.h.b16 %v2566
      %v2605 = vunpack.c.l.b16 %v2567
      %v2606 = vunpack.c.h.b16 %v2567
      %v2607 = vunpack.c.l.b16 %v2568
      %v2608 = vunpack.c.h.b16 %v2568
      %v2609 = vunpack.c.l.b16 %v2569
      %v2610 = vunpack.c.h.b16 %v2569
      %v2611 = vunpack.c.l.b16 %v2570
      %v2612 = vunpack.c.h.b16 %v2570
      %v2613 = vunpack.c.l.b16 %v2571
      %v2614 = vunpack.c.h.b16 %v2571
      %v2615 = vunpack.c.l.b16 %v2572
      %v2616 = vunpack.c.h.b16 %v2572
      %v2617 = vunpack.c.l.b16 %v2573
      %v2618 = vunpack.c.h.b16 %v2573
      %v2619 = vunpack.c.l.b16 %v2574
      %v2620 = vunpack.c.h.b16 %v2574
      %v2621 = vunpack.c.l.b16 %v2575
      %v2622 = vunpack.c.h.b16 %v2575
      %v2623 = vunpack.c.l.b16 %v2576
      %v2624 = vunpack.c.h.b16 %v2576
      %v2625 = vpack.c.b16 %v2597, %v2593
      %v2626 = vpack.c.b16 %v2598, %v2594
      %v2627 = vpack.c.b16 %v2599, %v2595
      %v2628 = vpack.c.b16 %v2600, %v2596
      %v2629 = vpack.c.b16 %v2605, %v2601
      %v2630 = vpack.c.b16 %v2606, %v2602
      %v2631 = vpack.c.b16 %v2607, %v2603
      %v2632 = vpack.c.b16 %v2608, %v2604
      %v2633 = vpack.c.b16 %v2613, %v2609
      %v2634 = vpack.c.b16 %v2614, %v2610
      %v2635 = vpack.c.b16 %v2615, %v2611
      %v2636 = vpack.c.b16 %v2616, %v2612
      %v2637 = vpack.c.b16 %v2621, %v2617
      %v2638 = vpack.c.b16 %v2622, %v2618
      %v2639 = vpack.c.b16 %v2623, %v2619
      %v2640 = vpack.c.b16 %v2624, %v2620
      %v2658 = vsel %vm2329, %v2559, 0
      %2660 = vmatpush.bf16.msra.mxu0 0
      %2661 = vmatpush.bf16.msra.mxu0 0
      %2662 = vmatpush.bf16.msra.mxu0 0
      %2663 = vmatpush.bf16.msra.mxu0 0
      %2664 = vmatpush.bf16.msra.mxu0 %v2637
      %2665 = vmatpush.bf16.msra.mxu0 %v2633
      %2666 = vmatpush.bf16.msra.mxu0 %v2629
      %2667 = vmatpush.bf16.msra.mxu0 %v2625
      %2668 = vmatmul.bf16.gmra.mxu0 %v2658
      %v2669 = vpop.f32.mrf.mxu0
      %v2670 = vadd.f32 0.0, %v2669
      %v2671 = vpop.f32.mrf.mxu0
      %2672 = vdwg.mxu0
      %2673 = vmatpush.bf16.msra.mxu0 0
      %2674 = vmatpush.bf16.msra.mxu0 0
      %2675 = vmatpush.bf16.msra.mxu0 0
      %2676 = vmatpush.bf16.msra.mxu0 0
      %2677 = vmatpush.bf16.msra.mxu0 %v2638
      %2678 = vmatpush.bf16.msra.mxu0 %v2634
      %2679 = vmatpush.bf16.msra.mxu0 %v2630
      %2680 = vmatpush.bf16.msra.mxu0 %v2626
      %2681 = vmatmul.bf16.gmra.mxu0 %v2658
      %v2682 = vpop.f32.mrf.mxu0
      %v2683 = vadd.f32 0.0, %v2682
      %v2684 = vpop.f32.mrf.mxu0
      %2685 = vdwg.mxu0
      %2686 = vmatpush.bf16.msra.mxu0 0
      %2687 = vmatpush.bf16.msra.mxu0 0
      %2688 = vmatpush.bf16.msra.mxu0 0
      %2689 = vmatpush.bf16.msra.mxu0 0
      %2690 = vmatpush.bf16.msra.mxu0 %v2639
      %2691 = vmatpush.bf16.msra.mxu0 %v2635
      %2692 = vmatpush.bf16.msra.mxu0 %v2631
      %2693 = vmatpush.bf16.msra.mxu0 %v2627
      %2694 = vmatmul.bf16.gmra.mxu0 %v2658
      %v2695 = vpop.f32.mrf.mxu0
      %v2696 = vadd.f32 0.0, %v2695
      %v2697 = vpop.f32.mrf.mxu0
      %2698 = vdwg.mxu0
      %2699 = vmatpush.bf16.msra.mxu0 0
      %2700 = vmatpush.bf16.msra.mxu0 0
      %2701 = vmatpush.bf16.msra.mxu0 0
      %2702 = vmatpush.bf16.msra.mxu0 0
      %2703 = vmatpush.bf16.msra.mxu0 %v2640
      %2704 = vmatpush.bf16.msra.mxu0 %v2636
      %2705 = vmatpush.bf16.msra.mxu0 %v2632
      %2706 = vmatpush.bf16.msra.mxu0 %v2628
      %2707 = vmatmul.bf16.gmra.mxu0 %v2658
      %v2708 = vpop.f32.mrf.mxu0
      %v2709 = vadd.f32 0.0, %v2708
      %v2710 = vpop.f32.mrf.mxu0
      %2711 = vdwg.mxu0
      %v2712 = vadd.f32 %v2549, %v2670
      %v2713 = vadd.f32 %v2550, %v2683
      %v2714 = vadd.f32 %v2551, %v2696
      %v2715 = vadd.f32 %v2552, %v2709
      %s2716 = sadd.s32 %s2389, 3
      %s2717 = smul.u32 %s2716, 8
      %s2718 = sshra.s32 %s2717, 3
      %s2719 = sand.u32 %s2717, 7
      %s2720 = smul.addr %s2718, 4
      %s2721 = scalar_lea.vmem [#allocation2], %s2720
      %v2722 = vld [vmem:[%s2721] sm:$0xf]
      %s2723 = scalar_lea.vmem %s267, 384
      %v2724 = vld [vmem:[%s2723] sm:$0xff]
      %v2725 = vld [vmem:[%s2723 + $0x8] sm:$0xff]
      %v2726 = vld [vmem:[%s2723 + $0x10] sm:$0xff]
      %v2727 = vld [vmem:[%s2723 + $0x18] sm:$0xff]
      %v2728 = vld [vmem:[%s2723 + $0x20] sm:$0xff]
      %v2729 = vld [vmem:[%s2723 + $0x28] sm:$0xff]
      %v2730 = vld [vmem:[%s2723 + $0x30] sm:$0xff]
      %v2731 = vld [vmem:[%s2723 + $0x38] sm:$0xff]
      %v2732 = vld [vmem:[%s2723 + $0x40] sm:$0xff]
      %v2733 = vld [vmem:[%s2723 + $0x48] sm:$0xff]
      %v2734 = vld [vmem:[%s2723 + $0x50] sm:$0xff]
      %v2735 = vld [vmem:[%s2723 + $0x58] sm:$0xff]
      %v2736 = vld [vmem:[%s2723 + $0x60] sm:$0xff]
      %v2737 = vld [vmem:[%s2723 + $0x68] sm:$0xff]
      %v2738 = vld [vmem:[%s2723 + $0x70] sm:$0xff]
      %v2739 = vld [vmem:[%s2723 + $0x78] sm:$0xff]
      %v2756 = vunpack.c.l.b16 %v2724
      %v2757 = vunpack.c.h.b16 %v2724
      %v2758 = vunpack.c.l.b16 %v2725
      %v2759 = vunpack.c.h.b16 %v2725
      %v2760 = vunpack.c.l.b16 %v2726
      %v2761 = vunpack.c.h.b16 %v2726
      %v2762 = vunpack.c.l.b16 %v2727
      %v2763 = vunpack.c.h.b16 %v2727
      %v2764 = vunpack.c.l.b16 %v2728
      %v2765 = vunpack.c.h.b16 %v2728
      %v2766 = vunpack.c.l.b16 %v2729
      %v2767 = vunpack.c.h.b16 %v2729
      %v2768 = vunpack.c.l.b16 %v2730
      %v2769 = vunpack.c.h.b16 %v2730
      %v2770 = vunpack.c.l.b16 %v2731
      %v2771 = vunpack.c.h.b16 %v2731
      %v2772 = vunpack.c.l.b16 %v2732
      %v2773 = vunpack.c.h.b16 %v2732
      %v2774 = vunpack.c.l.b16 %v2733
      %v2775 = vunpack.c.h.b16 %v2733
      %v2776 = vunpack.c.l.b16 %v2734
      %v2777 = vunpack.c.h.b16 %v2734
      %v2778 = vunpack.c.l.b16 %v2735
      %v2779 = vunpack.c.h.b16 %v2735
      %v2780 = vunpack.c.l.b16 %v2736
      %v2781 = vunpack.c.h.b16 %v2736
      %v2782 = vunpack.c.l.b16 %v2737
      %v2783 = vunpack.c.h.b16 %v2737
      %v2784 = vunpack.c.l.b16 %v2738
      %v2785 = vunpack.c.h.b16 %v2738
      %v2786 = vunpack.c.l.b16 %v2739
      %v2787 = vunpack.c.h.b16 %v2739
      %v2788 = vpack.c.b16 %v2760, %v2756
      %v2789 = vpack.c.b16 %v2761, %v2757
      %v2790 = vpack.c.b16 %v2762, %v2758
      %v2791 = vpack.c.b16 %v2763, %v2759
      %v2792 = vpack.c.b16 %v2768, %v2764
      %v2793 = vpack.c.b16 %v2769, %v2765
      %v2794 = vpack.c.b16 %v2770, %v2766
      %v2795 = vpack.c.b16 %v2771, %v2767
      %v2796 = vpack.c.b16 %v2776, %v2772
      %v2797 = vpack.c.b16 %v2777, %v2773
      %v2798 = vpack.c.b16 %v2778, %v2774
      %v2799 = vpack.c.b16 %v2779, %v2775
      %v2800 = vpack.c.b16 %v2784, %v2780
      %v2801 = vpack.c.b16 %v2785, %v2781
      %v2802 = vpack.c.b16 %v2786, %v2782
      %v2803 = vpack.c.b16 %v2787, %v2783
      %v2821 = vsel %vm2329, %v2722, 0
      %2823 = vmatpush.bf16.msra.mxu0 0
      %2824 = vmatpush.bf16.msra.mxu0 0
      %2825 = vmatpush.bf16.msra.mxu0 0
      %2826 = vmatpush.bf16.msra.mxu0 0
      %2827 = vmatpush.bf16.msra.mxu0 %v2800
      %2828 = vmatpush.bf16.msra.mxu0 %v2796
      %2829 = vmatpush.bf16.msra.mxu0 %v2792
      %2830 = vmatpush.bf16.msra.mxu0 %v2788
      %2831 = vmatmul.bf16.gmra.mxu0 %v2821
      %v2832 = vpop.f32.mrf.mxu0
      %v2833 = vadd.f32 0.0, %v2832
      %v2834 = vpop.f32.mrf.mxu0
      %2835 = vdwg.mxu0
      %2836 = vmatpush.bf16.msra.mxu0 0
      %2837 = vmatpush.bf16.msra.mxu0 0
      %2838 = vmatpush.bf16.msra.mxu0 0
      %2839 = vmatpush.bf16.msra.mxu0 0
      %2840 = vmatpush.bf16.msra.mxu0 %v2801
      %2841 = vmatpush.bf16.msra.mxu0 %v2797
      %2842 = vmatpush.bf16.msra.mxu0 %v2793
      %2843 = vmatpush.bf16.msra.mxu0 %v2789
      %2844 = vmatmul.bf16.gmra.mxu0 %v2821
      %v2845 = vpop.f32.mrf.mxu0
      %v2846 = vadd.f32 0.0, %v2845
      %v2847 = vpop.f32.mrf.mxu0
      %2848 = vdwg.mxu0
      %2849 = vmatpush.bf16.msra.mxu0 0
      %2850 = vmatpush.bf16.msra.mxu0 0
      %2851 = vmatpush.bf16.msra.mxu0 0
      %2852 = vmatpush.bf16.msra.mxu0 0
      %2853 = vmatpush.bf16.msra.mxu0 %v2802
      %2854 = vmatpush.bf16.msra.mxu0 %v2798
      %2855 = vmatpush.bf16.msra.mxu0 %v2794
      %2856 = vmatpush.bf16.msra.mxu0 %v2790
      %2857 = vmatmul.bf16.gmra.mxu0 %v2821
      %v2858 = vpop.f32.mrf.mxu0
      %v2859 = vadd.f32 0.0, %v2858
      %v2860 = vpop.f32.mrf.mxu0
      %2861 = vdwg.mxu0
      %2862 = vmatpush.bf16.msra.mxu0 0
      %2863 = vmatpush.bf16.msra.mxu0 0
      %2864 = vmatpush.bf16.msra.mxu0 0
      %2865 = vmatpush.bf16.msra.mxu0 0
      %2866 = vmatpush.bf16.msra.mxu0 %v2803
      %2867 = vmatpush.bf16.msra.mxu0 %v2799
      %2868 = vmatpush.bf16.msra.mxu0 %v2795
      %2869 = vmatpush.bf16.msra.mxu0 %v2791
      %2870 = vmatmul.bf16.gmra.mxu0 %v2821
      %v2871 = vpop.f32.mrf.mxu0
      %v2872 = vadd.f32 0.0, %v2871
      %v2873 = vpop.f32.mrf.mxu0
      %2874 = vdwg.mxu0
      %v2875 = vadd.f32 %v2712, %v2833
      %v2876 = vadd.f32 %v2713, %v2846
      %v2877 = vadd.f32 %v2714, %v2859
      %v2878 = vadd.f32 %v2715, %v2872
      %s2879 = sadd.s32 %s2389, 4
      %s2880 = smul.u32 %s2879, 8
      %s2881 = sshra.s32 %s2880, 3
      %s2882 = sand.u32 %s2880, 7
      %s2883 = smul.addr %s2881, 4
      %s2884 = scalar_lea.vmem [#allocation2], %s2883
      %v2885 = vld [vmem:[%s2884] sm:$0xf]
      %s2886 = scalar_lea.vmem %s267, 512
      %v2887 = vld [vmem:[%s2886] sm:$0xff]
      %v2888 = vld [vmem:[%s2886 + $0x8] sm:$0xff]
      %v2889 = vld [vmem:[%s2886 + $0x10] sm:$0xff]
      %v2890 = vld [vmem:[%s2886 + $0x18] sm:$0xff]
      %v2891 = vld [vmem:[%s2886 + $0x20] sm:$0xff]
      %v2892 = vld [vmem:[%s2886 + $0x28] sm:$0xff]
      %v2893 = vld [vmem:[%s2886 + $0x30] sm:$0xff]
      %v2894 = vld [vmem:[%s2886 + $0x38] sm:$0xff]
      %v2895 = vld [vmem:[%s2886 + $0x40] sm:$0xff]
      %v2896 = vld [vmem:[%s2886 + $0x48] sm:$0xff]
      %v2897 = vld [vmem:[%s2886 + $0x50] sm:$0xff]
      %v2898 = vld [vmem:[%s2886 + $0x58] sm:$0xff]
      %v2899 = vld [vmem:[%s2886 + $0x60] sm:$0xff]
      %v2900 = vld [vmem:[%s2886 + $0x68] sm:$0xff]
      %v2901 = vld [vmem:[%s2886 + $0x70] sm:$0xff]
      %v2902 = vld [vmem:[%s2886 + $0x78] sm:$0xff]
      %v2919 = vunpack.c.l.b16 %v2887
      %v2920 = vunpack.c.h.b16 %v2887
      %v2921 = vunpack.c.l.b16 %v2888
      %v2922 = vunpack.c.h.b16 %v2888
      %v2923 = vunpack.c.l.b16 %v2889
      %v2924 = vunpack.c.h.b16 %v2889
      %v2925 = vunpack.c.l.b16 %v2890
      %v2926 = vunpack.c.h.b16 %v2890
      %v2927 = vunpack.c.l.b16 %v2891
      %v2928 = vunpack.c.h.b16 %v2891
      %v2929 = vunpack.c.l.b16 %v2892
      %v2930 = vunpack.c.h.b16 %v2892
      %v2931 = vunpack.c.l.b16 %v2893
      %v2932 = vunpack.c.h.b16 %v2893
      %v2933 = vunpack.c.l.b16 %v2894
      %v2934 = vunpack.c.h.b16 %v2894
      %v2935 = vunpack.c.l.b16 %v2895
      %v2936 = vunpack.c.h.b16 %v2895
      %v2937 = vunpack.c.l.b16 %v2896
      %v2938 = vunpack.c.h.b16 %v2896
      %v2939 = vunpack.c.l.b16 %v2897
      %v2940 = vunpack.c.h.b16 %v2897
      %v2941 = vunpack.c.l.b16 %v2898
      %v2942 = vunpack.c.h.b16 %v2898
      %v2943 = vunpack.c.l.b16 %v2899
      %v2944 = vunpack.c.h.b16 %v2899
      %v2945 = vunpack.c.l.b16 %v2900
      %v2946 = vunpack.c.h.b16 %v2900
      %v2947 = vunpack.c.l.b16 %v2901
      %v2948 = vunpack.c.h.b16 %v2901
      %v2949 = vunpack.c.l.b16 %v2902
      %v2950 = vunpack.c.h.b16 %v2902
      %v2951 = vpack.c.b16 %v2923, %v2919
      %v2952 = vpack.c.b16 %v2924, %v2920
      %v2953 = vpack.c.b16 %v2925, %v2921
      %v2954 = vpack.c.b16 %v2926, %v2922
      %v2955 = vpack.c.b16 %v2931, %v2927
      %v2956 = vpack.c.b16 %v2932, %v2928
      %v2957 = vpack.c.b16 %v2933, %v2929
      %v2958 = vpack.c.b16 %v2934, %v2930
      %v2959 = vpack.c.b16 %v2939, %v2935
      %v2960 = vpack.c.b16 %v2940, %v2936
      %v2961 = vpack.c.b16 %v2941, %v2937
      %v2962 = vpack.c.b16 %v2942, %v2938
      %v2963 = vpack.c.b16 %v2947, %v2943
      %v2964 = vpack.c.b16 %v2948, %v2944
      %v2965 = vpack.c.b16 %v2949, %v2945
      %v2966 = vpack.c.b16 %v2950, %v2946
      %v2984 = vsel %vm2329, %v2885, 0
      %2986 = vmatpush.bf16.msra.mxu0 0
      %2987 = vmatpush.bf16.msra.mxu0 0
      %2988 = vmatpush.bf16.msra.mxu0 0
      %2989 = vmatpush.bf16.msra.mxu0 0
      %2990 = vmatpush.bf16.msra.mxu0 %v2963
      %2991 = vmatpush.bf16.msra.mxu0 %v2959
      %2992 = vmatpush.bf16.msra.mxu0 %v2955
      %2993 = vmatpush.bf16.msra.mxu0 %v2951
      %2994 = vmatmul.bf16.gmra.mxu0 %v2984
      %v2995 = vpop.f32.mrf.mxu0
      %v2996 = vadd.f32 0.0, %v2995
      %v2997 = vpop.f32.mrf.mxu0
      %2998 = vdwg.mxu0
      %2999 = vmatpush.bf16.msra.mxu0 0
      %3000 = vmatpush.bf16.msra.mxu0 0
      %3001 = vmatpush.bf16.msra.mxu0 0
      %3002 = vmatpush.bf16.msra.mxu0 0
      %3003 = vmatpush.bf16.msra.mxu0 %v2964
      %3004 = vmatpush.bf16.msra.mxu0 %v2960
      %3005 = vmatpush.bf16.msra.mxu0 %v2956
      %3006 = vmatpush.bf16.msra.mxu0 %v2952
      %3007 = vmatmul.bf16.gmra.mxu0 %v2984
      %v3008 = vpop.f32.mrf.mxu0
      %v3009 = vadd.f32 0.0, %v3008
      %v3010 = vpop.f32.mrf.mxu0
      %3011 = vdwg.mxu0
      %3012 = vmatpush.bf16.msra.mxu0 0
      %3013 = vmatpush.bf16.msra.mxu0 0
      %3014 = vmatpush.bf16.msra.mxu0 0
      %3015 = vmatpush.bf16.msra.mxu0 0
      %3016 = vmatpush.bf16.msra.mxu0 %v2965
      %3017 = vmatpush.bf16.msra.mxu0 %v2961
      %3018 = vmatpush.bf16.msra.mxu0 %v2957
      %3019 = vmatpush.bf16.msra.mxu0 %v2953
      %3020 = vmatmul.bf16.gmra.mxu0 %v2984
      %v3021 = vpop.f32.mrf.mxu0
      %v3022 = vadd.f32 0.0, %v3021
      %v3023 = vpop.f32.mrf.mxu0
      %3024 = vdwg.mxu0
      %3025 = vmatpush.bf16.msra.mxu0 0
      %3026 = vmatpush.bf16.msra.mxu0 0
      %3027 = vmatpush.bf16.msra.mxu0 0
      %3028 = vmatpush.bf16.msra.mxu0 0
      %3029 = vmatpush.bf16.msra.mxu0 %v2966
      %3030 = vmatpush.bf16.msra.mxu0 %v2962
      %3031 = vmatpush.bf16.msra.mxu0 %v2958
      %3032 = vmatpush.bf16.msra.mxu0 %v2954
      %3033 = vmatmul.bf16.gmra.mxu0 %v2984
      %v3034 = vpop.f32.mrf.mxu0
      %v3035 = vadd.f32 0.0, %v3034
      %v3036 = vpop.f32.mrf.mxu0
      %3037 = vdwg.mxu0
      %v3038 = vadd.f32 %v2875, %v2996
      %v3039 = vadd.f32 %v2876, %v3009
      %v3040 = vadd.f32 %v2877, %v3022
      %v3041 = vadd.f32 %v2878, %v3035
      %s3042 = sadd.s32 %s2389, 5
      %s3043 = smul.u32 %s3042, 8
      %s3044 = sshra.s32 %s3043, 3
      %s3045 = sand.u32 %s3043, 7
      %s3046 = smul.addr %s3044, 4
      %s3047 = scalar_lea.vmem [#allocation2], %s3046
      %v3048 = vld [vmem:[%s3047] sm:$0xf]
      %s3049 = scalar_lea.vmem %s267, 640
      %v3050 = vld [vmem:[%s3049] sm:$0xff]
      %v3051 = vld [vmem:[%s3049 + $0x8] sm:$0xff]
      %v3052 = vld [vmem:[%s3049 + $0x10] sm:$0xff]
      %v3053 = vld [vmem:[%s3049 + $0x18] sm:$0xff]
      %v3054 = vld [vmem:[%s3049 + $0x20] sm:$0xff]
      %v3055 = vld [vmem:[%s3049 + $0x28] sm:$0xff]
      %v3056 = vld [vmem:[%s3049 + $0x30] sm:$0xff]
      %v3057 = vld [vmem:[%s3049 + $0x38] sm:$0xff]
      %v3058 = vld [vmem:[%s3049 + $0x40] sm:$0xff]
      %v3059 = vld [vmem:[%s3049 + $0x48] sm:$0xff]
      %v3060 = vld [vmem:[%s3049 + $0x50] sm:$0xff]
      %v3061 = vld [vmem:[%s3049 + $0x58] sm:$0xff]
      %v3062 = vld [vmem:[%s3049 + $0x60] sm:$0xff]
      %v3063 = vld [vmem:[%s3049 + $0x68] sm:$0xff]
      %v3064 = vld [vmem:[%s3049 + $0x70] sm:$0xff]
      %v3065 = vld [vmem:[%s3049 + $0x78] sm:$0xff]
      %v3082 = vunpack.c.l.b16 %v3050
      %v3083 = vunpack.c.h.b16 %v3050
      %v3084 = vunpack.c.l.b16 %v3051
      %v3085 = vunpack.c.h.b16 %v3051
      %v3086 = vunpack.c.l.b16 %v3052
      %v3087 = vunpack.c.h.b16 %v3052
      %v3088 = vunpack.c.l.b16 %v3053
      %v3089 = vunpack.c.h.b16 %v3053
      %v3090 = vunpack.c.l.b16 %v3054
      %v3091 = vunpack.c.h.b16 %v3054
      %v3092 = vunpack.c.l.b16 %v3055
      %v3093 = vunpack.c.h.b16 %v3055
      %v3094 = vunpack.c.l.b16 %v3056
      %v3095 = vunpack.c.h.b16 %v3056
      %v3096 = vunpack.c.l.b16 %v3057
      %v3097 = vunpack.c.h.b16 %v3057
      %v3098 = vunpack.c.l.b16 %v3058
      %v3099 = vunpack.c.h.b16 %v3058
      %v3100 = vunpack.c.l.b16 %v3059
      %v3101 = vunpack.c.h.b16 %v3059
      %v3102 = vunpack.c.l.b16 %v3060
      %v3103 = vunpack.c.h.b16 %v3060
      %v3104 = vunpack.c.l.b16 %v3061
      %v3105 = vunpack.c.h.b16 %v3061
      %v3106 = vunpack.c.l.b16 %v3062
      %v3107 = vunpack.c.h.b16 %v3062
      %v3108 = vunpack.c.l.b16 %v3063
      %v3109 = vunpack.c.h.b16 %v3063
      %v3110 = vunpack.c.l.b16 %v3064
      %v3111 = vunpack.c.h.b16 %v3064
      %v3112 = vunpack.c.l.b16 %v3065
      %v3113 = vunpack.c.h.b16 %v3065
      %v3114 = vpack.c.b16 %v3086, %v3082
      %v3115 = vpack.c.b16 %v3087, %v3083
      %v3116 = vpack.c.b16 %v3088, %v3084
      %v3117 = vpack.c.b16 %v3089, %v3085
      %v3118 = vpack.c.b16 %v3094, %v3090
      %v3119 = vpack.c.b16 %v3095, %v3091
      %v3120 = vpack.c.b16 %v3096, %v3092
      %v3121 = vpack.c.b16 %v3097, %v3093
      %v3122 = vpack.c.b16 %v3102, %v3098
      %v3123 = vpack.c.b16 %v3103, %v3099
      %v3124 = vpack.c.b16 %v3104, %v3100
      %v3125 = vpack.c.b16 %v3105, %v3101
      %v3126 = vpack.c.b16 %v3110, %v3106
      %v3127 = vpack.c.b16 %v3111, %v3107
      %v3128 = vpack.c.b16 %v3112, %v3108
      %v3129 = vpack.c.b16 %v3113, %v3109
      %v3147 = vsel %vm2329, %v3048, 0
      %3149 = vmatpush.bf16.msra.mxu0 0
      %3150 = vmatpush.bf16.msra.mxu0 0
      %3151 = vmatpush.bf16.msra.mxu0 0
      %3152 = vmatpush.bf16.msra.mxu0 0
      %3153 = vmatpush.bf16.msra.mxu0 %v3126
      %3154 = vmatpush.bf16.msra.mxu0 %v3122
      %3155 = vmatpush.bf16.msra.mxu0 %v3118
      %3156 = vmatpush.bf16.msra.mxu0 %v3114
      %3157 = vmatmul.bf16.gmra.mxu0 %v3147
      %v3158 = vpop.f32.mrf.mxu0
      %v3159 = vadd.f32 0.0, %v3158
      %v3160 = vpop.f32.mrf.mxu0
      %3161 = vdwg.mxu0
      %3162 = vmatpush.bf16.msra.mxu0 0
      %3163 = vmatpush.bf16.msra.mxu0 0
      %3164 = vmatpush.bf16.msra.mxu0 0
      %3165 = vmatpush.bf16.msra.mxu0 0
      %3166 = vmatpush.bf16.msra.mxu0 %v3127
      %3167 = vmatpush.bf16.msra.mxu0 %v3123
      %3168 = vmatpush.bf16.msra.mxu0 %v3119
      %3169 = vmatpush.bf16.msra.mxu0 %v3115
      %3170 = vmatmul.bf16.gmra.mxu0 %v3147
      %v3171 = vpop.f32.mrf.mxu0
      %v3172 = vadd.f32 0.0, %v3171
      %v3173 = vpop.f32.mrf.mxu0
      %3174 = vdwg.mxu0
      %3175 = vmatpush.bf16.msra.mxu0 0
      %3176 = vmatpush.bf16.msra.mxu0 0
      %3177 = vmatpush.bf16.msra.mxu0 0
      %3178 = vmatpush.bf16.msra.mxu0 0
      %3179 = vmatpush.bf16.msra.mxu0 %v3128
      %3180 = vmatpush.bf16.msra.mxu0 %v3124
      %3181 = vmatpush.bf16.msra.mxu0 %v3120
      %3182 = vmatpush.bf16.msra.mxu0 %v3116
      %3183 = vmatmul.bf16.gmra.mxu0 %v3147
      %v3184 = vpop.f32.mrf.mxu0
      %v3185 = vadd.f32 0.0, %v3184
      %v3186 = vpop.f32.mrf.mxu0
      %3187 = vdwg.mxu0
      %3188 = vmatpush.bf16.msra.mxu0 0
      %3189 = vmatpush.bf16.msra.mxu0 0
      %3190 = vmatpush.bf16.msra.mxu0 0
      %3191 = vmatpush.bf16.msra.mxu0 0
      %3192 = vmatpush.bf16.msra.mxu0 %v3129
      %3193 = vmatpush.bf16.msra.mxu0 %v3125
      %3194 = vmatpush.bf16.msra.mxu0 %v3121
      %3195 = vmatpush.bf16.msra.mxu0 %v3117
      %3196 = vmatmul.bf16.gmra.mxu0 %v3147
      %v3197 = vpop.f32.mrf.mxu0
      %v3198 = vadd.f32 0.0, %v3197
      %v3199 = vpop.f32.mrf.mxu0
      %3200 = vdwg.mxu0
      %v3201 = vadd.f32 %v3038, %v3159
      %v3202 = vadd.f32 %v3039, %v3172
      %v3203 = vadd.f32 %v3040, %v3185
      %v3204 = vadd.f32 %v3041, %v3198
      %s3205 = sadd.s32 %s2389, 6
      %s3206 = smul.u32 %s3205, 8
      %s3207 = sshra.s32 %s3206, 3
      %s3208 = sand.u32 %s3206, 7
      %s3209 = smul.addr %s3207, 4
      %s3210 = scalar_lea.vmem [#allocation2], %s3209
      %v3211 = vld [vmem:[%s3210] sm:$0xf]
      %s3212 = scalar_lea.vmem %s267, 768
      %v3213 = vld [vmem:[%s3212] sm:$0xff]
      %v3214 = vld [vmem:[%s3212 + $0x8] sm:$0xff]
      %v3215 = vld [vmem:[%s3212 + $0x10] sm:$0xff]
      %v3216 = vld [vmem:[%s3212 + $0x18] sm:$0xff]
      %v3217 = vld [vmem:[%s3212 + $0x20] sm:$0xff]
      %v3218 = vld [vmem:[%s3212 + $0x28] sm:$0xff]
      %v3219 = vld [vmem:[%s3212 + $0x30] sm:$0xff]
      %v3220 = vld [vmem:[%s3212 + $0x38] sm:$0xff]
      %v3221 = vld [vmem:[%s3212 + $0x40] sm:$0xff]
      %v3222 = vld [vmem:[%s3212 + $0x48] sm:$0xff]
      %v3223 = vld [vmem:[%s3212 + $0x50] sm:$0xff]
      %v3224 = vld [vmem:[%s3212 + $0x58] sm:$0xff]
      %v3225 = vld [vmem:[%s3212 + $0x60] sm:$0xff]
      %v3226 = vld [vmem:[%s3212 + $0x68] sm:$0xff]
      %v3227 = vld [vmem:[%s3212 + $0x70] sm:$0xff]
      %v3228 = vld [vmem:[%s3212 + $0x78] sm:$0xff]
      %v3245 = vunpack.c.l.b16 %v3213
      %v3246 = vunpack.c.h.b16 %v3213
      %v3247 = vunpack.c.l.b16 %v3214
      %v3248 = vunpack.c.h.b16 %v3214
      %v3249 = vunpack.c.l.b16 %v3215
      %v3250 = vunpack.c.h.b16 %v3215
      %v3251 = vunpack.c.l.b16 %v3216
      %v3252 = vunpack.c.h.b16 %v3216
      %v3253 = vunpack.c.l.b16 %v3217
      %v3254 = vunpack.c.h.b16 %v3217
      %v3255 = vunpack.c.l.b16 %v3218
      %v3256 = vunpack.c.h.b16 %v3218
      %v3257 = vunpack.c.l.b16 %v3219
      %v3258 = vunpack.c.h.b16 %v3219
      %v3259 = vunpack.c.l.b16 %v3220
      %v3260 = vunpack.c.h.b16 %v3220
      %v3261 = vunpack.c.l.b16 %v3221
      %v3262 = vunpack.c.h.b16 %v3221
      %v3263 = vunpack.c.l.b16 %v3222
      %v3264 = vunpack.c.h.b16 %v3222
      %v3265 = vunpack.c.l.b16 %v3223
      %v3266 = vunpack.c.h.b16 %v3223
      %v3267 = vunpack.c.l.b16 %v3224
      %v3268 = vunpack.c.h.b16 %v3224
      %v3269 = vunpack.c.l.b16 %v3225
      %v3270 = vunpack.c.h.b16 %v3225
      %v3271 = vunpack.c.l.b16 %v3226
      %v3272 = vunpack.c.h.b16 %v3226
      %v3273 = vunpack.c.l.b16 %v3227
      %v3274 = vunpack.c.h.b16 %v3227
      %v3275 = vunpack.c.l.b16 %v3228
      %v3276 = vunpack.c.h.b16 %v3228
      %v3277 = vpack.c.b16 %v3249, %v3245
      %v3278 = vpack.c.b16 %v3250, %v3246
      %v3279 = vpack.c.b16 %v3251, %v3247
      %v3280 = vpack.c.b16 %v3252, %v3248
      %v3281 = vpack.c.b16 %v3257, %v3253
      %v3282 = vpack.c.b16 %v3258, %v3254
      %v3283 = vpack.c.b16 %v3259, %v3255
      %v3284 = vpack.c.b16 %v3260, %v3256
      %v3285 = vpack.c.b16 %v3265, %v3261
      %v3286 = vpack.c.b16 %v3266, %v3262
      %v3287 = vpack.c.b16 %v3267, %v3263
      %v3288 = vpack.c.b16 %v3268, %v3264
      %v3289 = vpack.c.b16 %v3273, %v3269
      %v3290 = vpack.c.b16 %v3274, %v3270
      %v3291 = vpack.c.b16 %v3275, %v3271
      %v3292 = vpack.c.b16 %v3276, %v3272
      %v3310 = vsel %vm2329, %v3211, 0
      %3312 = vmatpush.bf16.msra.mxu0 0
      %3313 = vmatpush.bf16.msra.mxu0 0
      %3314 = vmatpush.bf16.msra.mxu0 0
      %3315 = vmatpush.bf16.msra.mxu0 0
      %3316 = vmatpush.bf16.msra.mxu0 %v3289
      %3317 = vmatpush.bf16.msra.mxu0 %v3285
      %3318 = vmatpush.bf16.msra.mxu0 %v3281
      %3319 = vmatpush.bf16.msra.mxu0 %v3277
      %3320 = vmatmul.bf16.gmra.mxu0 %v3310
      %v3321 = vpop.f32.mrf.mxu0
      %v3322 = vadd.f32 0.0, %v3321
      %v3323 = vpop.f32.mrf.mxu0
      %3324 = vdwg.mxu0
      %3325 = vmatpush.bf16.msra.mxu0 0
      %3326 = vmatpush.bf16.msra.mxu0 0
      %3327 = vmatpush.bf16.msra.mxu0 0
      %3328 = vmatpush.bf16.msra.mxu0 0
      %3329 = vmatpush.bf16.msra.mxu0 %v3290
      %3330 = vmatpush.bf16.msra.mxu0 %v3286
      %3331 = vmatpush.bf16.msra.mxu0 %v3282
      %3332 = vmatpush.bf16.msra.mxu0 %v3278
      %3333 = vmatmul.bf16.gmra.mxu0 %v3310
      %v3334 = vpop.f32.mrf.mxu0
      %v3335 = vadd.f32 0.0, %v3334
      %v3336 = vpop.f32.mrf.mxu0
      %3337 = vdwg.mxu0
      %3338 = vmatpush.bf16.msra.mxu0 0
      %3339 = vmatpush.bf16.msra.mxu0 0
      %3340 = vmatpush.bf16.msra.mxu0 0
      %3341 = vmatpush.bf16.msra.mxu0 0
      %3342 = vmatpush.bf16.msra.mxu0 %v3291
      %3343 = vmatpush.bf16.msra.mxu0 %v3287
      %3344 = vmatpush.bf16.msra.mxu0 %v3283
      %3345 = vmatpush.bf16.msra.mxu0 %v3279
      %3346 = vmatmul.bf16.gmra.mxu0 %v3310
      %v3347 = vpop.f32.mrf.mxu0
      %v3348 = vadd.f32 0.0, %v3347
      %v3349 = vpop.f32.mrf.mxu0
      %3350 = vdwg.mxu0
      %3351 = vmatpush.bf16.msra.mxu0 0
      %3352 = vmatpush.bf16.msra.mxu0 0
      %3353 = vmatpush.bf16.msra.mxu0 0
      %3354 = vmatpush.bf16.msra.mxu0 0
      %3355 = vmatpush.bf16.msra.mxu0 %v3292
      %3356 = vmatpush.bf16.msra.mxu0 %v3288
      %3357 = vmatpush.bf16.msra.mxu0 %v3284
      %3358 = vmatpush.bf16.msra.mxu0 %v3280
      %3359 = vmatmul.bf16.gmra.mxu0 %v3310
      %v3360 = vpop.f32.mrf.mxu0
      %v3361 = vadd.f32 0.0, %v3360
      %v3362 = vpop.f32.mrf.mxu0
      %3363 = vdwg.mxu0
      %v3364 = vadd.f32 %v3201, %v3322
      %v3365 = vadd.f32 %v3202, %v3335
      %v3366 = vadd.f32 %v3203, %v3348
      %v3367 = vadd.f32 %v3204, %v3361
      %3368 = vst [vmem:[#allocation3] sm:$0xff] %v3364
      %3369 = vst [vmem:[#allocation3 + $0x8] sm:$0xff] %v3365
      %3370 = vst [vmem:[#allocation3 + $0x10] sm:$0xff] %v3366
      %3371 = vst [vmem:[#allocation3 + $0x18] sm:$0xff] %v3367
      %p3372 = scmp.eq.s32.totalorder %s18, 6
      // Predicated region
      $region53: #{net_forward.5} parent=47 // pred_check
        %p3373 = pneg %p3372
      $region54: #{net_forward.5} parent=47 // pred_check_branch
        %3375 = sbr.rel (%p3373) target = $region56
      $region55: #{net_forward.5} parent=47 // pred_region
        %v3376 = vld [vmem:[#allocation3] sm:$0xff]
        %v3377 = vld [vmem:[#allocation3 + $0x8] sm:$0xff]
        %v3378 = vld [vmem:[#allocation3 + $0x10] sm:$0xff]
        %v3379 = vld [vmem:[#allocation3 + $0x18] sm:$0xff]
        %v3380 = vld [vmem:[%s4] sm:$0xf]
        %v3382 = vperm.slane %v3380, 0
        %v3383 = vperm.slane %v3380, 1
        %v3384 = vperm.slane %v3380, 2
        %v3385 = vperm.slane %v3380, 3
        %v3390 = vadd.f32 %v3376, %v3382
        %v3391 = vadd.f32 %v3377, %v3383
        %v3392 = vadd.f32 %v3378, %v3384
        %v3393 = vadd.f32 %v3379, %v3385
        %v3394 = vmax.f32 %v3390, 0.0
        %v3395 = vmax.f32 %v3391, 0.0
        %v3396 = vmax.f32 %v3392, 0.0
        %v3397 = vmax.f32 %v3393, 0.0
        %v3398 = vpack.c.bf16 %v3394, %v3394
        %v3399 = vpack.c.bf16 %v3395, %v3395
        %v3400 = vpack.c.bf16 %v3396, %v3396
        %v3401 = vpack.c.bf16 %v3397, %v3397
        %v3402 = vld [vmem:[%s5] sm:$0xf]
        %v3403 = vld [vmem:[%s5 + $0x4] sm:$0xf]
        %v3404 = vld [vmem:[%s5 + $0x8] sm:$0xf]
        %v3405 = vld [vmem:[%s5 + $0xc] sm:$0xf]
        %v3406 = vld [vmem:[%s5 + $0x10] sm:$0xf]
        %v3407 = vld [vmem:[%s5 + $0x14] sm:$0xf]
        %v3408 = vld [vmem:[%s5 + $0x18] sm:$0xf]
        %v3409 = vld [vmem:[%s5 + $0x1c] sm:$0xf]
        %v3410 = vld [vmem:[%s5 + $0x20] sm:$0xf]
        %v3411 = vld [vmem:[%s5 + $0x24] sm:$0xf]
        %v3412 = vld [vmem:[%s5 + $0x28] sm:$0xf]
        %v3413 = vld [vmem:[%s5 + $0x2c] sm:$0xf]
        %v3414 = vld [vmem:[%s5 + $0x30] sm:$0xf]
        %v3415 = vld [vmem:[%s5 + $0x34] sm:$0xf]
        %v3416 = vld [vmem:[%s5 + $0x38] sm:$0xf]
        %v3417 = vld [vmem:[%s5 + $0x3c] sm:$0xf]
        %v3418 = vld [vmem:[%s5 + $0x40] sm:$0xf]
        %v3419 = vld [vmem:[%s5 + $0x44] sm:$0xf]
        %v3420 = vld [vmem:[%s5 + $0x48] sm:$0xf]
        %v3421 = vld [vmem:[%s5 + $0x4c] sm:$0xf]
        %v3422 = vld [vmem:[%s5 + $0x50] sm:$0xf]
        %v3423 = vld [vmem:[%s5 + $0x54] sm:$0xf]
        %v3424 = vld [vmem:[%s5 + $0x58] sm:$0xf]
        %v3425 = vld [vmem:[%s5 + $0x5c] sm:$0xf]
        %v3426 = vld [vmem:[%s5 + $0x60] sm:$0xf]
        %v3427 = vld [vmem:[%s5 + $0x64] sm:$0xf]
        %v3428 = vld [vmem:[%s5 + $0x68] sm:$0xf]
        %v3429 = vld [vmem:[%s5 + $0x6c] sm:$0xf]
        %v3430 = vld [vmem:[%s5 + $0x70] sm:$0xf]
        %v3431 = vld [vmem:[%s5 + $0x74] sm:$0xf]
        %v3432 = vld [vmem:[%s5 + $0x78] sm:$0xf]
        %v3433 = vld [vmem:[%s5 + $0x7c] sm:$0xf]
        %v3434 = vld [vmem:[%s5 + $0x80] sm:$0xf]
        %v3435 = vld [vmem:[%s5 + $0x84] sm:$0xf]
        %v3436 = vld [vmem:[%s5 + $0x88] sm:$0xf]
        %v3437 = vld [vmem:[%s5 + $0x8c] sm:$0xf]
        %v3438 = vld [vmem:[%s5 + $0x90] sm:$0xf]
        %v3439 = vld [vmem:[%s5 + $0x94] sm:$0xf]
        %v3440 = vld [vmem:[%s5 + $0x98] sm:$0xf]
        %v3441 = vld [vmem:[%s5 + $0x9c] sm:$0xf]
        %v3442 = vld [vmem:[%s5 + $0xa0] sm:$0xf]
        %v3443 = vld [vmem:[%s5 + $0xa4] sm:$0xf]
        %v3444 = vld [vmem:[%s5 + $0xa8] sm:$0xf]
        %v3445 = vld [vmem:[%s5 + $0xac] sm:$0xf]
        %v3446 = vld [vmem:[%s5 + $0xb0] sm:$0xf]
        %v3447 = vld [vmem:[%s5 + $0xb4] sm:$0xf]
        %v3448 = vld [vmem:[%s5 + $0xb8] sm:$0xf]
        %v3449 = vld [vmem:[%s5 + $0xbc] sm:$0xf]
        %v3450 = vld [vmem:[%s5 + $0xc0] sm:$0xf]
        %v3451 = vld [vmem:[%s5 + $0xc4] sm:$0xf]
        %v3452 = vld [vmem:[%s5 + $0xc8] sm:$0xf]
        %v3453 = vld [vmem:[%s5 + $0xcc] sm:$0xf]
        %v3454 = vld [vmem:[%s5 + $0xd0] sm:$0xf]
        %v3455 = vld [vmem:[%s5 + $0xd4] sm:$0xf]
        %v3456 = vld [vmem:[%s5 + $0xd8] sm:$0xf]
        %v3457 = vld [vmem:[%s5 + $0xdc] sm:$0xf]
        %v3458 = vld [vmem:[%s5 + $0xe0] sm:$0xf]
        %v3459 = vld [vmem:[%s5 + $0xe4] sm:$0xf]
        %v3460 = vld [vmem:[%s5 + $0xe8] sm:$0xf]
        %v3461 = vld [vmem:[%s5 + $0xec] sm:$0xf]
        %v3462 = vld [vmem:[%s5 + $0xf0] sm:$0xf]
        %v3463 = vld [vmem:[%s5 + $0xf4] sm:$0xf]
        %v3464 = vld [vmem:[%s5 + $0xf8] sm:$0xf]
        %v3465 = vld [vmem:[%s5 + $0xfc] sm:$0xf]
        %v3466 = vld [vmem:[%s6] sm:$0x1]
        %v3468 = vperm.slane %v3466, 0
        %v3534 = vunpack.c.l.b16 %v3402
        %v3535 = vunpack.c.l.b16 %v3403
        %v3536 = vunpack.c.l.b16 %v3404
        %v3537 = vunpack.c.l.b16 %v3405
        %v3538 = vunpack.c.l.b16 %v3406
        %v3539 = vunpack.c.l.b16 %v3407
        %v3540 = vunpack.c.l.b16 %v3408
        %v3541 = vunpack.c.l.b16 %v3409
        %v3542 = vunpack.c.l.b16 %v3410
        %v3543 = vunpack.c.l.b16 %v3411
        %v3544 = vunpack.c.l.b16 %v3412
        %v3545 = vunpack.c.l.b16 %v3413
        %v3546 = vunpack.c.l.b16 %v3414
        %v3547 = vunpack.c.l.b16 %v3415
        %v3548 = vunpack.c.l.b16 %v3416
        %v3549 = vunpack.c.l.b16 %v3417
        %v3550 = vunpack.c.l.b16 %v3418
        %v3551 = vunpack.c.l.b16 %v3419
        %v3552 = vunpack.c.l.b16 %v3420
        %v3553 = vunpack.c.l.b16 %v3421
        %v3554 = vunpack.c.l.b16 %v3422
        %v3555 = vunpack.c.l.b16 %v3423
        %v3556 = vunpack.c.l.b16 %v3424
        %v3557 = vunpack.c.l.b16 %v3425
        %v3558 = vunpack.c.l.b16 %v3426
        %v3559 = vunpack.c.l.b16 %v3427
        %v3560 = vunpack.c.l.b16 %v3428
        %v3561 = vunpack.c.l.b16 %v3429
        %v3562 = vunpack.c.l.b16 %v3430
        %v3563 = vunpack.c.l.b16 %v3431
        %v3564 = vunpack.c.l.b16 %v3432
        %v3565 = vunpack.c.l.b16 %v3433
        %v3566 = vunpack.c.l.b16 %v3434
        %v3567 = vunpack.c.l.b16 %v3435
        %v3568 = vunpack.c.l.b16 %v3436
        %v3569 = vunpack.c.l.b16 %v3437
        %v3570 = vunpack.c.l.b16 %v3438
        %v3571 = vunpack.c.l.b16 %v3439
        %v3572 = vunpack.c.l.b16 %v3440
        %v3573 = vunpack.c.l.b16 %v3441
        %v3574 = vunpack.c.l.b16 %v3442
        %v3575 = vunpack.c.l.b16 %v3443
        %v3576 = vunpack.c.l.b16 %v3444
        %v3577 = vunpack.c.l.b16 %v3445
        %v3578 = vunpack.c.l.b16 %v3446
        %v3579 = vunpack.c.l.b16 %v3447
        %v3580 = vunpack.c.l.b16 %v3448
        %v3581 = vunpack.c.l.b16 %v3449
        %v3582 = vunpack.c.l.b16 %v3450
        %v3583 = vunpack.c.l.b16 %v3451
        %v3584 = vunpack.c.l.b16 %v3452
        %v3585 = vunpack.c.l.b16 %v3453
        %v3586 = vunpack.c.l.b16 %v3454
        %v3587 = vunpack.c.l.b16 %v3455
        %v3588 = vunpack.c.l.b16 %v3456
        %v3589 = vunpack.c.l.b16 %v3457
        %v3590 = vunpack.c.l.b16 %v3458
        %v3591 = vunpack.c.l.b16 %v3459
        %v3592 = vunpack.c.l.b16 %v3460
        %v3593 = vunpack.c.l.b16 %v3461
        %v3594 = vunpack.c.l.b16 %v3462
        %v3595 = vunpack.c.l.b16 %v3463
        %v3596 = vunpack.c.l.b16 %v3464
        %v3597 = vunpack.c.l.b16 %v3465
        %v3598 = vpack.c.b16 %v3535, %v3534
        %v3599 = vpack.c.b16 %v3537, %v3536
        %v3600 = vpack.c.b16 %v3539, %v3538
        %v3601 = vpack.c.b16 %v3541, %v3540
        %v3602 = vpack.c.b16 %v3543, %v3542
        %v3603 = vpack.c.b16 %v3545, %v3544
        %v3604 = vpack.c.b16 %v3547, %v3546
        %v3605 = vpack.c.b16 %v3549, %v3548
        %v3606 = vpack.c.b16 %v3551, %v3550
        %v3607 = vpack.c.b16 %v3553, %v3552
        %v3608 = vpack.c.b16 %v3555, %v3554
        %v3609 = vpack.c.b16 %v3557, %v3556
        %v3610 = vpack.c.b16 %v3559, %v3558
        %v3611 = vpack.c.b16 %v3561, %v3560
        %v3612 = vpack.c.b16 %v3563, %v3562
        %v3613 = vpack.c.b16 %v3565, %v3564
        %v3614 = vpack.c.b16 %v3567, %v3566
        %v3615 = vpack.c.b16 %v3569, %v3568
        %v3616 = vpack.c.b16 %v3571, %v3570
        %v3617 = vpack.c.b16 %v3573, %v3572
        %v3618 = vpack.c.b16 %v3575, %v3574
        %v3619 = vpack.c.b16 %v3577, %v3576
        %v3620 = vpack.c.b16 %v3579, %v3578
        %v3621 = vpack.c.b16 %v3581, %v3580
        %v3622 = vpack.c.b16 %v3583, %v3582
        %v3623 = vpack.c.b16 %v3585, %v3584
        %v3624 = vpack.c.b16 %v3587, %v3586
        %v3625 = vpack.c.b16 %v3589, %v3588
        %v3626 = vpack.c.b16 %v3591, %v3590
        %v3627 = vpack.c.b16 %v3593, %v3592
        %v3628 = vpack.c.b16 %v3595, %v3594
        %v3629 = vpack.c.b16 %v3597, %v3596
        %3662 = vmatpush.bf16.msra.mxu0 %v3605
        %3663 = vmatpush.bf16.msra.mxu0 %v3604
        %3664 = vmatpush.bf16.msra.mxu0 %v3603
        %3665 = vmatpush.bf16.msra.mxu0 %v3602
        %3666 = vmatpush.bf16.msra.mxu0 %v3601
        %3667 = vmatpush.bf16.msra.mxu0 %v3600
        %3668 = vmatpush.bf16.msra.mxu0 %v3599
        %3669 = vmatpush.bf16.msra.mxu0 %v3598
        %3670 = vmatmul.bf16.gmra.mxu0 %v3398
        %v3671 = vpop.f32.mrf.mxu0
        %v3672 = vadd.f32 %v3468, %v3671
        %v3673 = vpop.f32.mrf.mxu0
        %3674 = vdwg.mxu0
        %3675 = vmatpush.bf16.msra.mxu0 %v3613
        %3676 = vmatpush.bf16.msra.mxu0 %v3612
        %3677 = vmatpush.bf16.msra.mxu0 %v3611
        %3678 = vmatpush.bf16.msra.mxu0 %v3610
        %3679 = vmatpush.bf16.msra.mxu0 %v3609
        %3680 = vmatpush.bf16.msra.mxu0 %v3608
        %3681 = vmatpush.bf16.msra.mxu0 %v3607
        %3682 = vmatpush.bf16.msra.mxu0 %v3606
        %3683 = vmatmul.bf16.gmra.mxu0 %v3399
        %v3684 = vpop.f32.mrf.mxu0
        %v3685 = vadd.f32 %v3672, %v3684
        %v3686 = vpop.f32.mrf.mxu0
        %3687 = vdwg.mxu0
        %3688 = vmatpush.bf16.msra.mxu0 %v3621
        %3689 = vmatpush.bf16.msra.mxu0 %v3620
        %3690 = vmatpush.bf16.msra.mxu0 %v3619
        %3691 = vmatpush.bf16.msra.mxu0 %v3618
        %3692 = vmatpush.bf16.msra.mxu0 %v3617
        %3693 = vmatpush.bf16.msra.mxu0 %v3616
        %3694 = vmatpush.bf16.msra.mxu0 %v3615
        %3695 = vmatpush.bf16.msra.mxu0 %v3614
        %3696 = vmatmul.bf16.gmra.mxu0 %v3400
        %v3697 = vpop.f32.mrf.mxu0
        %v3698 = vadd.f32 %v3685, %v3697
        %v3699 = vpop.f32.mrf.mxu0
        %3700 = vdwg.mxu0
        %3701 = vmatpush.bf16.msra.mxu0 %v3629
        %3702 = vmatpush.bf16.msra.mxu0 %v3628
        %3703 = vmatpush.bf16.msra.mxu0 %v3627
        %3704 = vmatpush.bf16.msra.mxu0 %v3626
        %3705 = vmatpush.bf16.msra.mxu0 %v3625
        %3706 = vmatpush.bf16.msra.mxu0 %v3624
        %3707 = vmatpush.bf16.msra.mxu0 %v3623
        %3708 = vmatpush.bf16.msra.mxu0 %v3622
        %3709 = vmatmul.bf16.gmra.mxu0 %v3401
        %v3710 = vpop.f32.mrf.mxu0
        %v3711 = vadd.f32 %v3698, %v3710
        %v3712 = vpop.f32.mrf.mxu0
        %3713 = vdwg.mxu0
        %3714 = vst [vmem:[%s7] sm:$0xff] %v3711
      $region56: #{net_forward.5} parent=47 // pred_fallthru
        _
      // Predicated region
      $region57: #{net_forward.5} parent=47 // pred_check
        %p3715 = pneg %p183
      $region58: #{net_forward.5} parent=47 // pred_check_branch
        %3717 = sbr.rel (%p3715) target = $region60
      $region59: #{net_forward.5} parent=47 // pred_region
        _
      $region60: #{net_forward.5} parent=47 // pred_fallthru
        _
      // Predicated region
      $region61: #{net_forward.5} parent=47 // pred_check
        %p3718 = pneg %p183
      $region62: #{net_forward.5} parent=47 // pred_check_branch
        %3720 = sbr.rel (%p3718) target = $region64
      $region63: #{net_forward.5} parent=47 // pred_region
        _
      $region64: #{net_forward.5} parent=47 // pred_fallthru
        _
    $region48: #{net_forward.5} parent=5 // pred_fallthru
      _
    %p3721 = scmp.le.s32.totalorder 2, %s13
    // Predicated region
    $region65: #{net_forward.5} parent=5 // pred_check
      %p3722 = pneg %p3721
    $region66: #{net_forward.5} parent=5 // pred_check_branch
      %3724 = sbr.rel (%p3722) target = $region68
    $region67: #{net_forward.5} parent=5 // pred_region
      %s3725 = ssub.s32 %s13, 2
    $region68: #{net_forward.5} parent=5 // pred_fallthru
      _
  $region6: #{net_forward.5} parent=0 // loop_footer
    %s17 = sadd.s32 1, %s13
  $region7: #{net_forward.5} parent=0 // loop_footer_branch
    %12 = sbr.rel target = $region3
  $region8: #{net_forward.5} parent=0 // loop_exit
    _

</llo_original>
